<compile_context>
chip_gen: v6e
topology: v6e:2x2x1
jax: 0.10.0
libtpu: 0.0.40
codegen_flags: <defaults>
</compile_context>

<pallas_src>
import numpy as np
import jax
import jax.numpy as jnp
from jax.experimental import pallas as pl
from jax.experimental.pallas import tpu as pltpu

# ------------------------- problem sizes (small demo; reference uses NXD=128) -------------------
NXD = 16
NPHI = NXD
NRD = int(NXD * 1.42)          # 22
NUM_ITER = 3
EPS = 1e-9

N_IMG = NXD * NXD              # image pixels   (lane axis of the back-projection output)
M_SINO = NRD * NPHI            # sinogram bins  (lane axis of the forward-projection output)


def _round_up(x, m):
    return ((x + m - 1) // m) * m


# Pad the sinogram axis so 2048-wide tiles divide it exactly at production size
# (NXD=128 -> M_SINO = 181*128 = 23168 has prime factor 181, which previously collapsed
# the FP output tile / BP K tile to 128 and exploded the grid to ~1450 steps).
SINO_ALIGN = 2048 if M_SINO >= 2048 else 128
M_PAD = _round_up(M_SINO, SINO_ALIGN)


# ------------------------- per-generation knobs --------------------------------------------------
def _tpu_vmem_bytes():
    try:
        return int(pltpu.get_tpu_info().vmem_capacity_bytes)
    except Exception:
        # Conservative fallback (v7x-sized).  Only affects the scoped-VMEM limit below,
        # not correctness; tile sizes are the same on all generations now.
        return 64 * 1024 * 1024


_BIG_VMEM = _tpu_vmem_bytes() >= 100 * 1024 * 1024    # v5e/v6e: 128 MiB, v7x: 64 MiB
# 2048x2048 tiles on every generation: an int8 tile double-buffered is 8 MiB
# (bf16 fallback: 16 MiB), comfortably inside even v7x's 32 MiB scoped VMEM.
MATVEC_TK_TARGET = 2048
MATVEC_TN_TARGET = 2048
CONV_TN_TARGET = 4096 if _BIG_VMEM else 2048
VMEM_LIMIT_BYTES = (64 if _BIG_VMEM else 32) * 1024 * 1024
FUSED_STEP_VMEM_BUDGET = 16 * 1024 * 1024              # both matrices resident -> one-kernel step


def _pick_tile(dim, target):
    """Largest multiple of 128 that divides `dim` and is <= target; else full extent."""
    if dim <= target:
        return dim
    t = (target // 128) * 128
    while t >= 128:
        if dim % t == 0:
            return t
        t -= 128
    return dim


# ------------------------- system matrix (same construction as make_torch_system_matrix) --------
def make_system_matrix(nxd, nrd, nphi):
    sm = np.zeros((nrd * nphi, nxd * nxd), dtype=np.float32)
    xv = np.arange(nxd, dtype=np.float64)
    for ph in range(nphi):
        th = ph * np.pi / nphi
        for yv in range(nxd):
            yp = -(xv - nxd * 0.5) * np.sin(th) + (yv - nxd * 0.5) * np.cos(th)
            yp_bin = (yp + nrd / 2.0).astype(np.int64)   # trunc-toward-zero == python int()
            sm[yp_bin + ph * nrd, np.arange(nxd) + yv * nxd] = 1.0
    return sm


# ------------------------- fused projection kernels (tiled / production-size path) ---------------
def fp_ratio_kernel(x_ref, at_ref, sino_ref, ratio_ref, acc_ref):
    """fp_row = recon_row @ A^T, accumulated over the K grid axis on the bf16 MXU path;
    epilogue fuses ratio = sino / (fp + eps) with an exact divide."""
    k = pl.program_id(1)

    @pl.when(k == 0)
    def _():
        acc_ref[...] = jnp.zeros_like(acc_ref)

    # Matrix tile streams from HBM in its narrow storage dtype (int8, exact for {0,1});
    # dequant to bf16 feeds the native bf16 MXU path -- no (tk, tn) f32 temp, and only
    # the tiny (1, tk) vector is cast.
    acc_ref[...] += jnp.dot(x_ref[...].astype(jnp.bfloat16),
                            at_ref[...].astype(jnp.bfloat16),
                            preferred_element_type=jnp.float32)

    @pl.when(k == pl.num_programs(1) - 1)
    def _():
        ratio_ref[...] = sino_ref[...] / (acc_ref[...] + EPS)


def bp_update_kernel(ratio_ref, a_ref, recon_ref, invsens_ref, out_ref, acc_ref):
    """bp_row = ratio_row @ A, accumulated over the K grid axis;
    epilogue fuses the MLEM update recon * bp * inv_sens."""
    k = pl.program_id(1)

    @pl.when(k == 0)
    def _():
        acc_ref[...] = jnp.zeros_like(acc_ref)

    acc_ref[...] += jnp.dot(ratio_ref[...].astype(jnp.bfloat16),
                            a_ref[...].astype(jnp.bfloat16),
                            preferred_element_type=jnp.float32)

    @pl.when(k == pl.num_programs(1) - 1)
    def _():
        out_ref[...] = recon_ref[...] * acc_ref[...] * invsens_ref[...]


def _fused_matvec(kernel, vec_row, mat, extra_rows, tk=None, tn=None):
    """out_row(1, N) = epilogue(vec_row(1, K) @ mat(K, N), *extra_rows).
    Grid: (N tiles [parallel, lane-dense output, megacore-sharded], K tiles [arbitrary])."""
    K, N = mat.shape
    tk = tk if tk is not None else _pick_tile(K, MATVEC_TK_TARGET)
    tn = tn if tn is not None else _pick_tile(N, MATVEC_TN_TARGET)
    grid = (N // tn, K // tk)
    in_specs = [pl.BlockSpec((1, tk), lambda n, k: (0, k)),
                pl.BlockSpec((tk, tn), lambda n, k: (k, n))]
    in_specs += [pl.BlockSpec((1, tn), lambda n, k: (0, n)) for _ in extra_rows]
    return pl.pallas_call(
        kernel,
        out_shape=jax.ShapeDtypeStruct((1, N), jnp.float32),
        grid=grid,
        in_specs=in_specs,
        out_specs=pl.BlockSpec((1, tn), lambda n, k: (0, n)),
        scratch_shapes=[pltpu.VMEM((1, tn), jnp.float32)],
        compiler_params=pltpu.CompilerParams(
            dimension_semantics=("parallel", "arbitrary"),
            vmem_limit_bytes=VMEM_LIMIT_BYTES),
    )(vec_row, mat, *extra_rows)


def forward_proj_ratio(recon_row, sys_mat_T, sino_row, tk=None, tn=None):
    # torch: fpsino = A @ recon ; ratio = sino / (fpsino + 1e-9)      (fused epilogue)
    return _fused_matvec(fp_ratio_kernel, recon_row, sys_mat_T, (sino_row,), tk, tn)


def back_proj_update(ratio_row, sys_mat, recon_row, invsens_row, tk=None, tn=None):
    # torch: recon * (A^T @ ratio) / (sens + 1e-9)                    (fused epilogue)
    return _fused_matvec(bp_update_kernel, ratio_row, sys_mat,
                         (recon_row, invsens_row), tk, tn)


# ------------------------- fully fused MLEM step (small-size / launch-bound path) ----------------
def mlem_step_fused_kernel(recon_ref, at_ref, a_ref, sino_ref, invsens_ref, out_ref):
    """Whole MLEM projection step in one kernel (both matrices VMEM-resident):
    fp = recon @ A^T ; ratio = sino/(fp+eps) ; bp = ratio @ A ; out = recon*bp*inv_sens."""
    x = recon_ref[...].astype(jnp.bfloat16)
    fp = jnp.dot(x, at_ref[...].astype(jnp.bfloat16),
                 preferred_element_type=jnp.float32)                      # (1, M_PAD)
    ratio = sino_ref[...] / (fp + EPS)
    bp = jnp.dot(ratio.astype(jnp.bfloat16), a_ref[...].astype(jnp.bfloat16),
                 preferred_element_type=jnp.float32)                      # (1, N_IMG)
    out_ref[...] = recon_ref[...] * bp * invsens_ref[...]


def mlem_step_fused(recon_row, sys_mat_T, sys_mat, sino_row, invsens_row):
    return pl.pallas_call(
        mlem_step_fused_kernel,
        out_shape=jax.ShapeDtypeStruct((1, N_IMG), jnp.float32),
        compiler_params=pltpu.CompilerParams(vmem_limit_bytes=VMEM_LIMIT_BYTES),
    )(recon_row, sys_mat_T, sys_mat, sino_row, invsens_row)


# ------------------------- CNN: 7x7 conv + PReLU as lane-tiled matmul ----------------------------
def conv_prelu_kernel(w_ref, cols_ref, b_ref, alpha_ref, o_ref):
    acc = jnp.dot(w_ref[...], cols_ref[...], preferred_element_type=jnp.float32)
    acc = acc + b_ref[...]                       # (Cout, 1) broadcast over lanes
    a = alpha_ref[0]                             # PReLU slope from SMEM
    o_ref[...] = jnp.where(acc >= 0.0, acc, a * acc)


def conv_prelu_resabs_kernel(w_ref, cols_ref, b_ref, alpha_ref, res_ref, o_ref):
    # Last layer: fuse recon_new = |recon + PReLU(conv(recon))|
    acc = jnp.dot(w_ref[...], cols_ref[...], preferred_element_type=jnp.float32)
    acc = acc + b_ref[...]
    a = alpha_ref[0]
    acc = jnp.where(acc >= 0.0, acc, a * acc)
    o_ref[...] = jnp.abs(res_ref[...] + acc)


def im2col_7x7_bf16(x_chw):
    """(C, H, W) -> (C*49, H*W) bf16, rows ordered (dy*7 + dx)*C + c (JAX glue).
    Built directly in bf16 so there is no extra f32->bf16 pass over the cols array.
    TODO(synk): fold im2col into the conv kernel with the padded activation resident in VMEM."""
    C, H, W = x_chw.shape
    xp = jnp.pad(x_chw.astype(jnp.bfloat16), ((0, 0), (3, 3), (3, 3)))
    cols = []
    for dy in range(7):
        for dx in range(7):
            cols.append(xp[:, dy:dy + H, dx:dx + W].reshape(C, H * W))
    return jnp.concatenate(cols, axis=0)


def conv7_prelu(x_chw, w2, b_col, alpha_arr, residual_row=None):
    """Conv2d(cin, cout, 7, padding=3) + PReLU.  Resident bf16 weights/bias, cols streamed
    over lane tiles of H*W; optional fused |residual + PReLU(conv)| epilogue."""
    cout, ck_pad = w2.shape
    _, H, W = x_chw.shape
    hw = H * W

    cols = im2col_7x7_bf16(x_chw)                              # (cin*49, H*W) bf16
    ck = cols.shape[0]
    if ck_pad > ck:                                            # zero-pad contraction dim (exact)
        cols = jnp.pad(cols, ((0, ck_pad - ck), (0, 0)))

    tn = _pick_tile(hw, CONV_TN_TARGET)
    grid = (hw // tn,)

    in_specs = [pl.BlockSpec((cout, ck_pad), lambda n: (0, 0)),        # resident bf16 weights
                pl.BlockSpec((ck_pad, tn), lambda n: (0, n)),          # streamed bf16 cols
                pl.BlockSpec((cout, 1), lambda n: (0, 0)),             # resident bias
                pl.BlockSpec(memory_space=pltpu.MemorySpace.SMEM)]     # PReLU alpha (scalar)
    args = [w2, cols, b_col, alpha_arr]
    kernel = conv_prelu_kernel
    if residual_row is not None:
        in_specs.append(pl.BlockSpec((1, tn), lambda n: (0, n)))
        args.append(residual_row)
        kernel = conv_prelu_resabs_kernel

    out = pl.pallas_call(
        kernel,
        out_shape=jax.ShapeDtypeStruct((cout, hw), jnp.float32),
        grid=grid,
        in_specs=in_specs,
        out_specs=pl.BlockSpec((cout, tn), lambda n: (0, n)),
        compiler_params=pltpu.CompilerParams(
            dimension_semantics=("parallel",),
            vmem_limit_bytes=VMEM_LIMIT_BYTES),
    )(*args)
    return out.reshape(cout, H, W)


def init_cnn_params(key):
    """Torch CNN: Conv2d(1,8,7)+PReLU, 3x Conv2d(8,8,7)+PReLU, Conv2d(8,1,7)+PReLU."""
    params = []
    chans = [(1, 8), (8, 8), (8, 8), (8, 8), (8, 1)]
    for (cin, cout) in chans:
        key, kw, kb = jax.random.split(key, 3)
        fan_in = cin * 49
        w = jax.random.normal(kw, (cout, cin, 7, 7), jnp.float32) * (0.05 / np.sqrt(fan_in))
        b = jax.random.normal(kb, (cout,), jnp.float32) * 0.01
        alpha = 0.25                                           # torch nn.PReLU() default
        params.append((w, b, alpha))
    return params


def prepack_cnn_params(raw_params):
    """Hoist the weight transpose/reshape/pad + bf16 cast out of the iteration loop."""
    packed = []
    for (w, b, alpha) in raw_params:
        cout, cin = w.shape[0], w.shape[1]
        ck = 49 * cin
        ck_pad = ((ck + 15) // 16) * 16                        # align contraction dim for bf16
        w2 = jnp.transpose(w, (0, 2, 3, 1)).reshape(cout, ck)  # matches im2col row order
        w2 = jnp.pad(w2, ((0, 0), (0, ck_pad - ck))).astype(jnp.bfloat16)
        packed.append((w2,
                       b.reshape(cout, 1).astype(jnp.float32),
                       jnp.full((1,), alpha, jnp.float32)))
    return packed


def cnn_apply_and_update(recon, recon_row, packed_params):
    """recon_new = |recon + CNN(recon)|, with the abs-add fused into the last conv layer."""
    x = recon[None, :, :]                                      # (1, H, W)
    last = len(packed_params) - 1
    for li, (w2, b_col, alpha_arr) in enumerate(packed_params):
        res = recon_row if li == last else None
        x = conv7_prelu(x, w2, b_col, alpha_arr, residual_row=res)
    return x.reshape(NXD, NXD)                                 # last layer has cout=1


# ------------------------- MLEM_CNN_net.forward ---------------------------------------------------
def mlem_cnn_forward(sino_row, sys_mat, sys_mat_T, inv_sens_row, packed_params, num_iter):
    # Whole-step fusion whenever both (padded) matrices fit the VMEM budget: at small
    # sizes the run is launch-bound, so one kernel per iteration beats four.
    mat_bytes = 2 * M_PAD * N_IMG * sys_mat.dtype.itemsize
    use_fused_step = mat_bytes <= FUSED_STEP_VMEM_BUDGET

    recon = jnp.ones((NXD, NXD), jnp.float32)
    for _ in range(num_iter):
        recon_row = recon.reshape(1, N_IMG)
        if use_fused_step:
            recon_row = mlem_step_fused(recon_row, sys_mat_T, sys_mat, sino_row, inv_sens_row)
        else:
            ratio_row = forward_proj_ratio(recon_row, sys_mat_T, sino_row)     # (1, M_PAD)
            recon_row = back_proj_update(ratio_row, sys_mat, recon_row, inv_sens_row)
        recon = recon_row.reshape(NXD, NXD)
        recon = cnn_apply_and_update(recon, recon_row, packed_params)          # |recon + cnn|
    # TODO(synk): cv2 visualization (cv2disp / cv2.waitKey) of the reference is not translated.
    return recon


# ------------------------- main -------------------------------------------------------------------
if __name__ == "__main__":
    key = jax.random.PRNGKey(0)
    k_sino, k_cnn = jax.random.split(key)

    sino_for_reconstruction = jax.random.uniform(
        k_sino, (NPHI, NRD), jnp.float32, minval=0.5, maxval=1.5)
    packed_params = prepack_cnn_params(init_cnn_params(k_cnn))

    # System matrix (exactly {0,1}), zero-padded along the sinogram axis to M_PAD.
    sm_np = np.zeros((M_PAD, N_IMG), dtype=np.float32)
    sm_np[:M_SINO, :] = make_system_matrix(NXD, NRD, NPHI)
    smT_np = np.ascontiguousarray(sm_np.T)

    # int8 storage halves the dominant HBM stream (values are exactly 0/1); dequantized to
    # bf16 in-kernel, so no dependence on an integer MXU path (valid on v7x too).
    mats = {
        jnp.int8: (jnp.asarray(sm_np, jnp.int8), jnp.asarray(smT_np, jnp.int8)),
        jnp.bfloat16: (jnp.asarray(sm_np, jnp.bfloat16), jnp.asarray(smT_np, jnp.bfloat16)),
    }

    # Sinogram flattened row-major (== torch reshape order) and zero-padded to M_PAD.
    sino_row = jnp.zeros((1, M_PAD), jnp.float32).at[0, :M_SINO].set(
        sino_for_reconstruction.reshape(-1))

    # sens_image = back_proj(ones_sino) == column sums of A; reciprocal hoisted out of the loop.
    inv_sens_row = jnp.asarray(
        1.0 / (sm_np.sum(axis=0, dtype=np.float32) + EPS)).reshape(1, N_IMG)

    fwd = jax.jit(mlem_cnn_forward, static_argnums=(5,))

    recon = None
    used_dtype = None
    for dt in (jnp.int8, jnp.bfloat16):     # int8 fast path; bf16 portability fallback
        A_dev, AT_dev = mats[dt]
        try:
            recon = jax.block_until_ready(
                fwd(sino_row, A_dev, AT_dev, inv_sens_row, packed_params, NUM_ITER))
            used_dtype = dt
            break
        except Exception:
            if dt == jnp.bfloat16:
                raise
    assert recon.shape == (NXD, NXD) and bool(jnp.all(jnp.isfinite(recon)))

    # ---- correctness: one MLEM projection step vs a pure-JAX f32 reference ----------------------
    A_f32 = jnp.asarray(sm_np)
    recon0 = jnp.ones((1, N_IMG), jnp.float32)
    fp_ref = recon0 @ A_f32.T
    ratio_ref = sino_row / (fp_ref + EPS)
    upd_ref = recon0 * (ratio_ref @ A_f32) * inv_sens_row

    A_dev, AT_dev = mats[used_dtype]
    upd_fused = mlem_step_fused(recon0, AT_dev, A_dev, sino_row, inv_sens_row)
    np.testing.assert_allclose(np.asarray(upd_fused), np.asarray(upd_ref),
                               rtol=5e-2, atol=1e-3)

    # Tiled (production-size) path, with small forced tiles to exercise the K accumulation.
    ratio_t = forward_proj_ratio(recon0, AT_dev, sino_row, tk=128, tn=128)
    upd_t = back_proj_update(ratio_t, A_dev, recon0, inv_sens_row, tk=128, tn=128)
    np.testing.assert_allclose(np.asarray(ratio_t), np.asarray(ratio_ref),
                               rtol=5e-2, atol=1e-3)
    np.testing.assert_allclose(np.asarray(upd_t), np.asarray(upd_ref),
                               rtol=5e-2, atol=1e-3)

    print("KERNEL_OK")
</pallas_src>

<mosaic_0001>
module attributes {stable_mosaic.version = 11 : i64} {
  func.func @mlem_step_fused_kernel(%arg0: memref<1x256xf32, #tpu.memory_space<vmem>>, %arg1: memref<256x384xi8, #tpu.memory_space<vmem>>, %arg2: memref<384x256xi8, #tpu.memory_space<vmem>>, %arg3: memref<1x384xf32, #tpu.memory_space<vmem>>, %arg4: memref<1x256xf32, #tpu.memory_space<vmem>>, %arg5: memref<1x256xf32, #tpu.memory_space<vmem>>) attributes {dimension_semantics = [], scalar_prefetch = 0 : i64, scratch_operands = 0 : i64, tpu.core_type = #tpu.core_type<tc>} {
    %c0 = arith.constant 0 : index
    %c0_0 = arith.constant 0 : index
    %0 = vector.load %arg0[%c0, %c0_0] : memref<1x256xf32, #tpu.memory_space<vmem>>, vector<1x256xf32>
    %1 = arith.truncf %0 : vector<1x256xf32> to vector<1x256xbf16>
    %c0_1 = arith.constant 0 : index
    %c0_2 = arith.constant 0 : index
    %2 = vector.load %arg1[%c0_1, %c0_2] : memref<256x384xi8, #tpu.memory_space<vmem>>, vector<256x384xi8>
    %3 = arith.sitofp %2 : vector<256x384xi8> to vector<256x384xbf16>
    %cst = arith.constant dense<0.000000e+00> : vector<1x384xf32>
    %4 = tpu.matmul %1, %3, %cst {dimension_numbers = #tpu.dot_dimension_numbers<[1], [0], [0], [1], [0, 0, 1, 1], [], []>} : vector<1x256xbf16>, vector<256x384xbf16>, vector<1x384xf32> -> vector<1x384xf32>
    %c0_3 = arith.constant 0 : index
    %c0_4 = arith.constant 0 : index
    %5 = vector.load %arg3[%c0_3, %c0_4] : memref<1x384xf32, #tpu.memory_space<vmem>>, vector<1x384xf32>
    %cst_5 = arith.constant 9.99999971E-10 : f32
    %6 = vector.broadcast %cst_5 : f32 to vector<1x384xf32>
    %7 = arith.addf %4, %6 : vector<1x384xf32>
    %8 = arith.divf %5, %7 : vector<1x384xf32>
    %9 = arith.truncf %8 : vector<1x384xf32> to vector<1x384xbf16>
    %c0_6 = arith.constant 0 : index
    %c0_7 = arith.constant 0 : index
    %10 = vector.load %arg2[%c0_6, %c0_7] : memref<384x256xi8, #tpu.memory_space<vmem>>, vector<384x256xi8>
    %11 = arith.sitofp %10 : vector<384x256xi8> to vector<384x256xbf16>
    %cst_8 = arith.constant dense<0.000000e+00> : vector<1x256xf32>
    %12 = tpu.matmul %9, %11, %cst_8 {dimension_numbers = #tpu.dot_dimension_numbers<[1], [0], [0], [1], [0, 0, 1, 1], [], []>} : vector<1x384xbf16>, vector<384x256xbf16>, vector<1x256xf32> -> vector<1x256xf32>
    %c0_9 = arith.constant 0 : index
    %c0_10 = arith.constant 0 : index
    %13 = vector.load %arg0[%c0_9, %c0_10] : memref<1x256xf32, #tpu.memory_space<vmem>>, vector<1x256xf32>
    %14 = arith.mulf %13, %12 : vector<1x256xf32>
    %c0_11 = arith.constant 0 : index
    %c0_12 = arith.constant 0 : index
    %15 = vector.load %arg4[%c0_11, %c0_12] : memref<1x256xf32, #tpu.memory_space<vmem>>, vector<1x256xf32>
    %16 = arith.mulf %14, %15 : vector<1x256xf32>
    %c0_13 = arith.constant 0 : index
    %c0_14 = arith.constant 0 : index
    %17 = vector.load %arg5[%c0_13, %c0_14] : memref<1x256xf32, #tpu.memory_space<vmem>>, vector<1x256xf32>
    tpu.vector_store %arg5[%c0_13, %c0_14], %16 {strides = array<i32>} : memref<1x256xf32, #tpu.memory_space<vmem>>, vector<1x256xf32>,
    return
  }
}

module attributes {stable_mosaic.version = 11 : i64} {
  func.func @conv_prelu_kernel(%arg0: i32, %arg1: memref<8x64xbf16, #tpu.memory_space<vmem>>, %arg2: memref<64x256xbf16, #tpu.memory_space<vmem>>, %arg3: memref<8x1xf32, #tpu.memory_space<vmem>>, %arg4: memref<1xf32, #tpu.memory_space<smem>>, %arg5: memref<8x256xf32, #tpu.memory_space<vmem>>) attributes {dimension_semantics = [#tpu.dimension_semantics<parallel>], iteration_bounds = array<i64: 1>, scalar_prefetch = 0 : i64, scratch_operands = 0 : i64, tpu.core_type = #tpu.core_type<tc>, window_params = [{pipeline_mode = #tpu.pipeline_mode<synchronous>, transform_indices = @transform_0, window_bounds = array<i64: 8, 64>}, {transform_indices = @transform_1, window_bounds = array<i64: 64, 256>}, {pipeline_mode = #tpu.pipeline_mode<synchronous>, transform_indices = @transform_2, window_bounds = array<i64: 8, 1>}, {transform_indices = @transform_3, window_bounds = array<i64: 1>}, {transform_indices = @transform_4, window_bounds = array<i64: 8, 256>}]} {
    %c0 = arith.constant 0 : index
    %c0_0 = arith.constant 0 : index
    %0 = vector.load %arg1[%c0, %c0_0] : memref<8x64xbf16, #tpu.memory_space<vmem>>, vector<8x64xbf16>
    %c0_1 = arith.constant 0 : index
    %c0_2 = arith.constant 0 : index
    %1 = vector.load %arg2[%c0_1, %c0_2] : memref<64x256xbf16, #tpu.memory_space<vmem>>, vector<64x256xbf16>
    %cst = arith.constant dense<0.000000e+00> : vector<8x256xf32>
    %2 = tpu.matmul %0, %1, %cst {dimension_numbers = #tpu.dot_dimension_numbers<[1], [0], [0], [1], [0, 0, 1, 1], [], []>} : vector<8x64xbf16>, vector<64x256xbf16>, vector<8x256xf32> -> vector<8x256xf32>
    %c0_3 = arith.constant 0 : index
    %c0_4 = arith.constant 0 : index
    %3 = vector.load %arg3[%c0_3, %c0_4] : memref<8x1xf32, #tpu.memory_space<vmem>>, vector<8x1xf32>
    %4 = vector.broadcast %3 : vector<8x1xf32> to vector<8x256xf32>
    %5 = arith.addf %2, %4 : vector<8x256xf32>
    %c0_5 = arith.constant 0 : index
    %6 = memref.load %arg4[%c0_5] : memref<1xf32, #tpu.memory_space<smem>>
    %cst_6 = arith.constant 0.000000e+00 : f32
    %7 = vector.broadcast %cst_6 : f32 to vector<8x256xf32>
    %8 = arith.cmpf oge, %5, %7 : vector<8x256xf32>
    %9 = vector.broadcast %6 : f32 to vector<8x256xf32>
    %10 = arith.mulf %9, %5 : vector<8x256xf32>
    %11 = arith.select %8, %5, %10 : vector<8x256xi1>, vector<8x256xf32>
    %c0_7 = arith.constant 0 : index
    %c0_8 = arith.constant 0 : index
    %12 = vector.load %arg5[%c0_7, %c0_8] : memref<8x256xf32, #tpu.memory_space<vmem>>, vector<8x256xf32>
    tpu.vector_store %arg5[%c0_7, %c0_8], %11 {strides = array<i32>} : memref<8x256xf32, #tpu.memory_space<vmem>>, vector<8x256xf32>,
    return
  }
  func.func @transform_0(%arg0: i32) -> (i32, i32) {
    %c0_i32 = arith.constant 0 : i32
    %c0_i32_0 = arith.constant 0 : i32
    %c0_i32_1 = arith.constant 0 : i32
    return %c0_i32, %c0_i32_0 : i32, i32
  }
  func.func @transform_1(%arg0: i32) -> (i32, i32) {
    %c0_i32 = arith.constant 0 : i32
    %c0_i32_0 = arith.constant 0 : i32
    return %c0_i32, %arg0 : i32, i32
  }
  func.func @transform_2(%arg0: i32) -> (i32, i32) {
    %c0_i32 = arith.constant 0 : i32
    %c0_i32_0 = arith.constant 0 : i32
    %c0_i32_1 = arith.constant 0 : i32
    return %c0_i32, %c0_i32_0 : i32, i32
  }
  func.func @transform_3(%arg0: i32) -> i32 {
    %c0_i32 = arith.constant 0 : i32
    %c0_i32_0 = arith.constant 0 : i32
    return %c0_i32 : i32
  }
  func.func @transform_4(%arg0: i32) -> (i32, i32) {
    %c0_i32 = arith.constant 0 : i32
    %c0_i32_0 = arith.constant 0 : i32
    return %c0_i32, %arg0 : i32, i32
  }
}

module attributes {stable_mosaic.version = 11 : i64} {
  func.func @conv_prelu_kernel(%arg0: i32, %arg1: memref<8x400xbf16, #tpu.memory_space<vmem>>, %arg2: memref<400x256xbf16, #tpu.memory_space<vmem>>, %arg3: memref<8x1xf32, #tpu.memory_space<vmem>>, %arg4: memref<1xf32, #tpu.memory_space<smem>>, %arg5: memref<8x256xf32, #tpu.memory_space<vmem>>) attributes {dimension_semantics = [#tpu.dimension_semantics<parallel>], iteration_bounds = array<i64: 1>, scalar_prefetch = 0 : i64, scratch_operands = 0 : i64, tpu.core_type = #tpu.core_type<tc>, window_params = [{pipeline_mode = #tpu.pipeline_mode<synchronous>, transform_indices = @transform_0, window_bounds = array<i64: 8, 400>}, {transform_indices = @transform_1, window_bounds = array<i64: 400, 256>}, {pipeline_mode = #tpu.pipeline_mode<synchronous>, transform_indices = @transform_2, window_bounds = array<i64: 8, 1>}, {transform_indices = @transform_3, window_bounds = array<i64: 1>}, {transform_indices = @transform_4, window_bounds = array<i64: 8, 256>}]} {
    %c0 = arith.constant 0 : index
    %c0_0 = arith.constant 0 : index
    %0 = vector.load %arg1[%c0, %c0_0] : memref<8x400xbf16, #tpu.memory_space<vmem>>, vector<8x400xbf16>
    %c0_1 = arith.constant 0 : index
    %c0_2 = arith.constant 0 : index
    %1 = vector.load %arg2[%c0_1, %c0_2] : memref<400x256xbf16, #tpu.memory_space<vmem>>, vector<400x256xbf16>
    %cst = arith.constant dense<0.000000e+00> : vector<8x256xf32>
    %2 = tpu.matmul %0, %1, %cst {dimension_numbers = #tpu.dot_dimension_numbers<[1], [0], [0], [1], [0, 0, 1, 1], [], []>} : vector<8x400xbf16>, vector<400x256xbf16>, vector<8x256xf32> -> vector<8x256xf32>
    %c0_3 = arith.constant 0 : index
    %c0_4 = arith.constant 0 : index
    %3 = vector.load %arg3[%c0_3, %c0_4] : memref<8x1xf32, #tpu.memory_space<vmem>>, vector<8x1xf32>
    %4 = vector.broadcast %3 : vector<8x1xf32> to vector<8x256xf32>
    %5 = arith.addf %2, %4 : vector<8x256xf32>
    %c0_5 = arith.constant 0 : index
    %6 = memref.load %arg4[%c0_5] : memref<1xf32, #tpu.memory_space<smem>>
    %cst_6 = arith.constant 0.000000e+00 : f32
    %7 = vector.broadcast %cst_6 : f32 to vector<8x256xf32>
    %8 = arith.cmpf oge, %5, %7 : vector<8x256xf32>
    %9 = vector.broadcast %6 : f32 to vector<8x256xf32>
    %10 = arith.mulf %9, %5 : vector<8x256xf32>
    %11 = arith.select %8, %5, %10 : vector<8x256xi1>, vector<8x256xf32>
    %c0_7 = arith.constant 0 : index
    %c0_8 = arith.constant 0 : index
    %12 = vector.load %arg5[%c0_7, %c0_8] : memref<8x256xf32, #tpu.memory_space<vmem>>, vector<8x256xf32>
    tpu.vector_store %arg5[%c0_7, %c0_8], %11 {strides = array<i32>} : memref<8x256xf32, #tpu.memory_space<vmem>>, vector<8x256xf32>,
    return
  }
  func.func @transform_0(%arg0: i32) -> (i32, i32) {
    %c0_i32 = arith.constant 0 : i32
    %c0_i32_0 = arith.constant 0 : i32
    %c0_i32_1 = arith.constant 0 : i32
    return %c0_i32, %c0_i32_0 : i32, i32
  }
  func.func @transform_1(%arg0: i32) -> (i32, i32) {
    %c0_i32 = arith.constant 0 : i32
    %c0_i32_0 = arith.constant 0 : i32
    return %c0_i32, %arg0 : i32, i32
  }
  func.func @transform_2(%arg0: i32) -> (i32, i32) {
    %c0_i32 = arith.constant 0 : i32
    %c0_i32_0 = arith.constant 0 : i32
    %c0_i32_1 = arith.constant 0 : i32
    return %c0_i32, %c0_i32_0 : i32, i32
  }
  func.func @transform_3(%arg0: i32) -> i32 {
    %c0_i32 = arith.constant 0 : i32
    %c0_i32_0 = arith.constant 0 : i32
    return %c0_i32 : i32
  }
  func.func @transform_4(%arg0: i32) -> (i32, i32) {
    %c0_i32 = arith.constant 0 : i32
    %c0_i32_0 = arith.constant 0 : i32
    return %c0_i32, %arg0 : i32, i32
  }
}

module attributes {stable_mosaic.version = 11 : i64} {
  func.func @conv_prelu_resabs_kernel(%arg0: i32, %arg1: memref<1x400xbf16, #tpu.memory_space<vmem>>, %arg2: memref<400x256xbf16, #tpu.memory_space<vmem>>, %arg3: memref<1x1xf32, #tpu.memory_space<vmem>>, %arg4: memref<1xf32, #tpu.memory_space<smem>>, %arg5: memref<1x256xf32, #tpu.memory_space<vmem>>, %arg6: memref<1x256xf32, #tpu.memory_space<vmem>>) attributes {dimension_semantics = [#tpu.dimension_semantics<parallel>], iteration_bounds = array<i64: 1>, scalar_prefetch = 0 : i64, scratch_operands = 0 : i64, tpu.core_type = #tpu.core_type<tc>, window_params = [{pipeline_mode = #tpu.pipeline_mode<synchronous>, transform_indices = @transform_0, window_bounds = array<i64: 1, 400>}, {transform_indices = @transform_1, window_bounds = array<i64: 400, 256>}, {pipeline_mode = #tpu.pipeline_mode<synchronous>, transform_indices = @transform_2, window_bounds = array<i64: 1, 1>}, {transform_indices = @transform_3, window_bounds = array<i64: 1>}, {transform_indices = @transform_4, window_bounds = array<i64: 1, 256>}, {transform_indices = @transform_5, window_bounds = array<i64: 1, 256>}]} {
    %c0 = arith.constant 0 : index
    %c0_0 = arith.constant 0 : index
    %0 = vector.load %arg1[%c0, %c0_0] : memref<1x400xbf16, #tpu.memory_space<vmem>>, vector<1x400xbf16>
    %c0_1 = arith.constant 0 : index
    %c0_2 = arith.constant 0 : index
    %1 = vector.load %arg2[%c0_1, %c0_2] : memref<400x256xbf16, #tpu.memory_space<vmem>>, vector<400x256xbf16>
    %cst = arith.constant dense<0.000000e+00> : vector<1x256xf32>
    %2 = tpu.matmul %0, %1, %cst {dimension_numbers = #tpu.dot_dimension_numbers<[1], [0], [0], [1], [0, 0, 1, 1], [], []>} : vector<1x400xbf16>, vector<400x256xbf16>, vector<1x256xf32> -> vector<1x256xf32>
    %c0_3 = arith.constant 0 : index
    %c0_4 = arith.constant 0 : index
    %3 = vector.load %arg3[%c0_3, %c0_4] : memref<1x1xf32, #tpu.memory_space<vmem>>, vector<1x1xf32>
    %4 = vector.broadcast %3 : vector<1x1xf32> to vector<1x256xf32>
    %5 = arith.addf %2, %4 : vector<1x256xf32>
    %c0_5 = arith.constant 0 : index
    %6 = memref.load %arg4[%c0_5] : memref<1xf32, #tpu.memory_space<smem>>
    %cst_6 = arith.constant 0.000000e+00 : f32
    %7 = vector.broadcast %cst_6 : f32 to vector<1x256xf32>
    %8 = arith.cmpf oge, %5, %7 : vector<1x256xf32>
    %9 = vector.broadcast %6 : f32 to vector<1x256xf32>
    %10 = arith.mulf %9, %5 : vector<1x256xf32>
    %11 = arith.select %8, %5, %10 : vector<1x256xi1>, vector<1x256xf32>
    %c0_7 = arith.constant 0 : index
    %c0_8 = arith.constant 0 : index
    %12 = vector.load %arg5[%c0_7, %c0_8] : memref<1x256xf32, #tpu.memory_space<vmem>>, vector<1x256xf32>
    %13 = arith.addf %12, %11 : vector<1x256xf32>
    %14 = math.absf %13 : vector<1x256xf32>
    %c0_9 = arith.constant 0 : index
    %c0_10 = arith.constant 0 : index
    %15 = vector.load %arg6[%c0_9, %c0_10] : memref<1x256xf32, #tpu.memory_space<vmem>>, vector<1x256xf32>
    tpu.vector_store %arg6[%c0_9, %c0_10], %14 {strides = array<i32>} : memref<1x256xf32, #tpu.memory_space<vmem>>, vector<1x256xf32>,
    return
  }
  func.func @transform_0(%arg0: i32) -> (i32, i32) {
    %c0_i32 = arith.constant 0 : i32
    %c0_i32_0 = arith.constant 0 : i32
    %c0_i32_1 = arith.constant 0 : i32
    return %c0_i32, %c0_i32_0 : i32, i32
  }
  func.func @transform_1(%arg0: i32) -> (i32, i32) {
    %c0_i32 = arith.constant 0 : i32
    %c0_i32_0 = arith.constant 0 : i32
    return %c0_i32, %arg0 : i32, i32
  }
  func.func @transform_2(%arg0: i32) -> (i32, i32) {
    %c0_i32 = arith.constant 0 : i32
    %c0_i32_0 = arith.constant 0 : i32
    %c0_i32_1 = arith.constant 0 : i32
    return %c0_i32, %c0_i32_0 : i32, i32
  }
  func.func @transform_3(%arg0: i32) -> i32 {
    %c0_i32 = arith.constant 0 : i32
    %c0_i32_0 = arith.constant 0 : i32
    return %c0_i32 : i32
  }
  func.func @transform_4(%arg0: i32) -> (i32, i32) {
    %c0_i32 = arith.constant 0 : i32
    %c0_i32_0 = arith.constant 0 : i32
    return %c0_i32, %arg0 : i32, i32
  }
  func.func @transform_5(%arg0: i32) -> (i32, i32) {
    %c0_i32 = arith.constant 0 : i32
    %c0_i32_0 = arith.constant 0 : i32
    return %c0_i32, %arg0 : i32, i32
  }
}

module attributes {stable_mosaic.version = 11 : i64} {
  func.func @mlem_step_fused_kernel(%arg0: memref<1x256xf32, #tpu.memory_space<vmem>>, %arg1: memref<256x384xi8, #tpu.memory_space<vmem>>, %arg2: memref<384x256xi8, #tpu.memory_space<vmem>>, %arg3: memref<1x384xf32, #tpu.memory_space<vmem>>, %arg4: memref<1x256xf32, #tpu.memory_space<vmem>>, %arg5: memref<1x256xf32, #tpu.memory_space<vmem>>) attributes {dimension_semantics = [], scalar_prefetch = 0 : i64, scratch_operands = 0 : i64, tpu.core_type = #tpu.core_type<tc>} {
    %c0 = arith.constant 0 : index
    %c0_0 = arith.constant 0 : index
    %0 = vector.load %arg0[%c0, %c0_0] : memref<1x256xf32, #tpu.memory_space<vmem>>, vector<1x256xf32>
    %1 = arith.truncf %0 : vector<1x256xf32> to vector<1x256xbf16>
    %c0_1 = arith.constant 0 : index
    %c0_2 = arith.constant 0 : index
    %2 = vector.load %arg1[%c0_1, %c0_2] : memref<256x384xi8, #tpu.memory_space<vmem>>, vector<256x384xi8>
    %3 = arith.sitofp %2 : vector<256x384xi8> to vector<256x384xbf16>
    %cst = arith.constant dense<0.000000e+00> : vector<1x384xf32>
    %4 = tpu.matmul %1, %3, %cst {dimension_numbers = #tpu.dot_dimension_numbers<[1], [0], [0], [1], [0, 0, 1, 1], [], []>} : vector<1x256xbf16>, vector<256x384xbf16>, vector<1x384xf32> -> vector<1x384xf32>
    %c0_3 = arith.constant 0 : index
    %c0_4 = arith.constant 0 : index
    %5 = vector.load %arg3[%c0_3, %c0_4] : memref<1x384xf32, #tpu.memory_space<vmem>>, vector<1x384xf32>
    %cst_5 = arith.constant 9.99999971E-10 : f32
    %6 = vector.broadcast %cst_5 : f32 to vector<1x384xf32>
    %7 = arith.addf %4, %6 : vector<1x384xf32>
    %8 = arith.divf %5, %7 : vector<1x384xf32>
    %9 = arith.truncf %8 : vector<1x384xf32> to vector<1x384xbf16>
    %c0_6 = arith.constant 0 : index
    %c0_7 = arith.constant 0 : index
    %10 = vector.load %arg2[%c0_6, %c0_7] : memref<384x256xi8, #tpu.memory_space<vmem>>, vector<384x256xi8>
    %11 = arith.sitofp %10 : vector<384x256xi8> to vector<384x256xbf16>
    %cst_8 = arith.constant dense<0.000000e+00> : vector<1x256xf32>
    %12 = tpu.matmul %9, %11, %cst_8 {dimension_numbers = #tpu.dot_dimension_numbers<[1], [0], [0], [1], [0, 0, 1, 1], [], []>} : vector<1x384xbf16>, vector<384x256xbf16>, vector<1x256xf32> -> vector<1x256xf32>
    %c0_9 = arith.constant 0 : index
    %c0_10 = arith.constant 0 : index
    %13 = vector.load %arg0[%c0_9, %c0_10] : memref<1x256xf32, #tpu.memory_space<vmem>>, vector<1x256xf32>
    %14 = arith.mulf %13, %12 : vector<1x256xf32>
    %c0_11 = arith.constant 0 : index
    %c0_12 = arith.constant 0 : index
    %15 = vector.load %arg4[%c0_11, %c0_12] : memref<1x256xf32, #tpu.memory_space<vmem>>, vector<1x256xf32>
    %16 = arith.mulf %14, %15 : vector<1x256xf32>
    %c0_13 = arith.constant 0 : index
    %c0_14 = arith.constant 0 : index
    %17 = vector.load %arg5[%c0_13, %c0_14] : memref<1x256xf32, #tpu.memory_space<vmem>>, vector<1x256xf32>
    tpu.vector_store %arg5[%c0_13, %c0_14], %16 {strides = array<i32>} : memref<1x256xf32, #tpu.memory_space<vmem>>, vector<1x256xf32>,
    return
  }
}

module attributes {stable_mosaic.version = 11 : i64} {
  func.func @mlem_step_fused_kernel(%arg0: memref<1x256xf32, #tpu.memory_space<vmem>>, %arg1: memref<256x384xbf16, #tpu.memory_space<vmem>>, %arg2: memref<384x256xbf16, #tpu.memory_space<vmem>>, %arg3: memref<1x384xf32, #tpu.memory_space<vmem>>, %arg4: memref<1x256xf32, #tpu.memory_space<vmem>>, %arg5: memref<1x256xf32, #tpu.memory_space<vmem>>) attributes {dimension_semantics = [], scalar_prefetch = 0 : i64, scratch_operands = 0 : i64, tpu.core_type = #tpu.core_type<tc>} {
    %c0 = arith.constant 0 : index
    %c0_0 = arith.constant 0 : index
    %0 = vector.load %arg0[%c0, %c0_0] : memref<1x256xf32, #tpu.memory_space<vmem>>, vector<1x256xf32>
    %1 = arith.truncf %0 : vector<1x256xf32> to vector<1x256xbf16>
    %c0_1 = arith.constant 0 : index
    %c0_2 = arith.constant 0 : index
    %2 = vector.load %arg1[%c0_1, %c0_2] : memref<256x384xbf16, #tpu.memory_space<vmem>>, vector<256x384xbf16>
    %cst = arith.constant dense<0.000000e+00> : vector<1x384xf32>
    %3 = tpu.matmul %1, %2, %cst {dimension_numbers = #tpu.dot_dimension_numbers<[1], [0], [0], [1], [0, 0, 1, 1], [], []>} : vector<1x256xbf16>, vector<256x384xbf16>, vector<1x384xf32> -> vector<1x384xf32>
    %c0_3 = arith.constant 0 : index
    %c0_4 = arith.constant 0 : index
    %4 = vector.load %arg3[%c0_3, %c0_4] : memref<1x384xf32, #tpu.memory_space<vmem>>, vector<1x384xf32>
    %cst_5 = arith.constant 9.99999971E-10 : f32
    %5 = vector.broadcast %cst_5 : f32 to vector<1x384xf32>
    %6 = arith.addf %3, %5 : vector<1x384xf32>
    %7 = arith.divf %4, %6 : vector<1x384xf32>
    %8 = arith.truncf %7 : vector<1x384xf32> to vector<1x384xbf16>
    %c0_6 = arith.constant 0 : index
    %c0_7 = arith.constant 0 : index
    %9 = vector.load %arg2[%c0_6, %c0_7] : memref<384x256xbf16, #tpu.memory_space<vmem>>, vector<384x256xbf16>
    %cst_8 = arith.constant dense<0.000000e+00> : vector<1x256xf32>
    %10 = tpu.matmul %8, %9, %cst_8 {dimension_numbers = #tpu.dot_dimension_numbers<[1], [0], [0], [1], [0, 0, 1, 1], [], []>} : vector<1x384xbf16>, vector<384x256xbf16>, vector<1x256xf32> -> vector<1x256xf32>
    %c0_9 = arith.constant 0 : index
    %c0_10 = arith.constant 0 : index
    %11 = vector.load %arg0[%c0_9, %c0_10] : memref<1x256xf32, #tpu.memory_space<vmem>>, vector<1x256xf32>
    %12 = arith.mulf %11, %10 : vector<1x256xf32>
    %c0_11 = arith.constant 0 : index
    %c0_12 = arith.constant 0 : index
    %13 = vector.load %arg4[%c0_11, %c0_12] : memref<1x256xf32, #tpu.memory_space<vmem>>, vector<1x256xf32>
    %14 = arith.mulf %12, %13 : vector<1x256xf32>
    %c0_13 = arith.constant 0 : index
    %c0_14 = arith.constant 0 : index
    %15 = vector.load %arg5[%c0_13, %c0_14] : memref<1x256xf32, #tpu.memory_space<vmem>>, vector<1x256xf32>
    tpu.vector_store %arg5[%c0_13, %c0_14], %14 {strides = array<i32>} : memref<1x256xf32, #tpu.memory_space<vmem>>, vector<1x256xf32>,
    return
  }
}

module attributes {stable_mosaic.version = 11 : i64} {
  func.func @conv_prelu_kernel(%arg0: i32, %arg1: memref<8x64xbf16, #tpu.memory_space<vmem>>, %arg2: memref<64x256xbf16, #tpu.memory_space<vmem>>, %arg3: memref<8x1xf32, #tpu.memory_space<vmem>>, %arg4: memref<1xf32, #tpu.memory_space<smem>>, %arg5: memref<8x256xf32, #tpu.memory_space<vmem>>) attributes {dimension_semantics = [#tpu.dimension_semantics<parallel>], iteration_bounds = array<i64: 1>, scalar_prefetch = 0 : i64, scratch_operands = 0 : i64, tpu.core_type = #tpu.core_type<tc>, window_params = [{pipeline_mode = #tpu.pipeline_mode<synchronous>, transform_indices = @transform_0, window_bounds = array<i64: 8, 64>}, {transform_indices = @transform_1, window_bounds = array<i64: 64, 256>}, {pipeline_mode = #tpu.pipeline_mode<synchronous>, transform_indices = @transform_2, window_bounds = array<i64: 8, 1>}, {transform_indices = @transform_3, window_bounds = array<i64: 1>}, {transform_indices = @transform_4, window_bounds = array<i64: 8, 256>}]} {
    %c0 = arith.constant 0 : index
    %c0_0 = arith.constant 0 : index
    %0 = vector.load %arg1[%c0, %c0_0] : memref<8x64xbf16, #tpu.memory_space<vmem>>, vector<8x64xbf16>
    %c0_1 = arith.constant 0 : index
    %c0_2 = arith.constant 0 : index
    %1 = vector.load %arg2[%c0_1, %c0_2] : memref<64x256xbf16, #tpu.memory_space<vmem>>, vector<64x256xbf16>
    %cst = arith.constant dense<0.000000e+00> : vector<8x256xf32>
    %2 = tpu.matmul %0, %1, %cst {dimension_numbers = #tpu.dot_dimension_numbers<[1], [0], [0], [1], [0, 0, 1, 1], [], []>} : vector<8x64xbf16>, vector<64x256xbf16>, vector<8x256xf32> -> vector<8x256xf32>
    %c0_3 = arith.constant 0 : index
    %c0_4 = arith.constant 0 : index
    %3 = vector.load %arg3[%c0_3, %c0_4] : memref<8x1xf32, #tpu.memory_space<vmem>>, vector<8x1xf32>
    %4 = vector.broadcast %3 : vector<8x1xf32> to vector<8x256xf32>
    %5 = arith.addf %2, %4 : vector<8x256xf32>
    %c0_5 = arith.constant 0 : index
    %6 = memref.load %arg4[%c0_5] : memref<1xf32, #tpu.memory_space<smem>>
    %cst_6 = arith.constant 0.000000e+00 : f32
    %7 = vector.broadcast %cst_6 : f32 to vector<8x256xf32>
    %8 = arith.cmpf oge, %5, %7 : vector<8x256xf32>
    %9 = vector.broadcast %6 : f32 to vector<8x256xf32>
    %10 = arith.mulf %9, %5 : vector<8x256xf32>
    %11 = arith.select %8, %5, %10 : vector<8x256xi1>, vector<8x256xf32>
    %c0_7 = arith.constant 0 : index
    %c0_8 = arith.constant 0 : index
    %12 = vector.load %arg5[%c0_7, %c0_8] : memref<8x256xf32, #tpu.memory_space<vmem>>, vector<8x256xf32>
    tpu.vector_store %arg5[%c0_7, %c0_8], %11 {strides = array<i32>} : memref<8x256xf32, #tpu.memory_space<vmem>>, vector<8x256xf32>,
    return
  }
  func.func @transform_0(%arg0: i32) -> (i32, i32) {
    %c0_i32 = arith.constant 0 : i32
    %c0_i32_0 = arith.constant 0 : i32
    %c0_i32_1 = arith.constant 0 : i32
    return %c0_i32, %c0_i32_0 : i32, i32
  }
  func.func @transform_1(%arg0: i32) -> (i32, i32) {
    %c0_i32 = arith.constant 0 : i32
    %c0_i32_0 = arith.constant 0 : i32
    return %c0_i32, %arg0 : i32, i32
  }
  func.func @transform_2(%arg0: i32) -> (i32, i32) {
    %c0_i32 = arith.constant 0 : i32
    %c0_i32_0 = arith.constant 0 : i32
    %c0_i32_1 = arith.constant 0 : i32
    return %c0_i32, %c0_i32_0 : i32, i32
  }
  func.func @transform_3(%arg0: i32) -> i32 {
    %c0_i32 = arith.constant 0 : i32
    %c0_i32_0 = arith.constant 0 : i32
    return %c0_i32 : i32
  }
  func.func @transform_4(%arg0: i32) -> (i32, i32) {
    %c0_i32 = arith.constant 0 : i32
    %c0_i32_0 = arith.constant 0 : i32
    return %c0_i32, %arg0 : i32, i32
  }
}

module attributes {stable_mosaic.version = 11 : i64} {
  func.func @conv_prelu_kernel(%arg0: i32, %arg1: memref<8x400xbf16, #tpu.memory_space<vmem>>, %arg2: memref<400x256xbf16, #tpu.memory_space<vmem>>, %arg3: memref<8x1xf32, #tpu.memory_space<vmem>>, %arg4: memref<1xf32, #tpu.memory_space<smem>>, %arg5: memref<8x256xf32, #tpu.memory_space<vmem>>) attributes {dimension_semantics = [#tpu.dimension_semantics<parallel>], iteration_bounds = array<i64: 1>, scalar_prefetch = 0 : i64, scratch_operands = 0 : i64, tpu.core_type = #tpu.core_type<tc>, window_params = [{pipeline_mode = #tpu.pipeline_mode<synchronous>, transform_indices = @transform_0, window_bounds = array<i64: 8, 400>}, {transform_indices = @transform_1, window_bounds = array<i64: 400, 256>}, {pipeline_mode = #tpu.pipeline_mode<synchronous>, transform_indices = @transform_2, window_bounds = array<i64: 8, 1>}, {transform_indices = @transform_3, window_bounds = array<i64: 1>}, {transform_indices = @transform_4, window_bounds = array<i64: 8, 256>}]} {
    %c0 = arith.constant 0 : index
    %c0_0 = arith.constant 0 : index
    %0 = vector.load %arg1[%c0, %c0_0] : memref<8x400xbf16, #tpu.memory_space<vmem>>, vector<8x400xbf16>
    %c0_1 = arith.constant 0 : index
    %c0_2 = arith.constant 0 : index
    %1 = vector.load %arg2[%c0_1, %c0_2] : memref<400x256xbf16, #tpu.memory_space<vmem>>, vector<400x256xbf16>
    %cst = arith.constant dense<0.000000e+00> : vector<8x256xf32>
    %2 = tpu.matmul %0, %1, %cst {dimension_numbers = #tpu.dot_dimension_numbers<[1], [0], [0], [1], [0, 0, 1, 1], [], []>} : vector<8x400xbf16>, vector<400x256xbf16>, vector<8x256xf32> -> vector<8x256xf32>
    %c0_3 = arith.constant 0 : index
    %c0_4 = arith.constant 0 : index
    %3 = vector.load %arg3[%c0_3, %c0_4] : memref<8x1xf32, #tpu.memory_space<vmem>>, vector<8x1xf32>
    %4 = vector.broadcast %3 : vector<8x1xf32> to vector<8x256xf32>
    %5 = arith.addf %2, %4 : vector<8x256xf32>
    %c0_5 = arith.constant 0 : index
    %6 = memref.load %arg4[%c0_5] : memref<1xf32, #tpu.memory_space<smem>>
    %cst_6 = arith.constant 0.000000e+00 : f32
    %7 = vector.broadcast %cst_6 : f32 to vector<8x256xf32>
    %8 = arith.cmpf oge, %5, %7 : vector<8x256xf32>
    %9 = vector.broadcast %6 : f32 to vector<8x256xf32>
    %10 = arith.mulf %9, %5 : vector<8x256xf32>
    %11 = arith.select %8, %5, %10 : vector<8x256xi1>, vector<8x256xf32>
    %c0_7 = arith.constant 0 : index
    %c0_8 = arith.constant 0 : index
    %12 = vector.load %arg5[%c0_7, %c0_8] : memref<8x256xf32, #tpu.memory_space<vmem>>, vector<8x256xf32>
    tpu.vector_store %arg5[%c0_7, %c0_8], %11 {strides = array<i32>} : memref<8x256xf32, #tpu.memory_space<vmem>>, vector<8x256xf32>,
    return
  }
  func.func @transform_0(%arg0: i32) -> (i32, i32) {
    %c0_i32 = arith.constant 0 : i32
    %c0_i32_0 = arith.constant 0 : i32
    %c0_i32_1 = arith.constant 0 : i32
    return %c0_i32, %c0_i32_0 : i32, i32
  }
  func.func @transform_1(%arg0: i32) -> (i32, i32) {
    %c0_i32 = arith.constant 0 : i32
    %c0_i32_0 = arith.constant 0 : i32
    return %c0_i32, %arg0 : i32, i32
  }
  func.func @transform_2(%arg0: i32) -> (i32, i32) {
    %c0_i32 = arith.constant 0 : i32
    %c0_i32_0 = arith.constant 0 : i32
    %c0_i32_1 = arith.constant 0 : i32
    return %c0_i32, %c0_i32_0 : i32, i32
  }
  func.func @transform_3(%arg0: i32) -> i32 {
    %c0_i32 = arith.constant 0 : i32
    %c0_i32_0 = arith.constant 0 : i32
    return %c0_i32 : i32
  }
  func.func @transform_4(%arg0: i32) -> (i32, i32) {
    %c0_i32 = arith.constant 0 : i32
    %c0_i32_0 = arith.constant 0 : i32
    return %c0_i32, %arg0 : i32, i32
  }
}

module attributes {stable_mosaic.version = 11 : i64} {
  func.func @conv_prelu_resabs_kernel(%arg0: i32, %arg1: memref<1x400xbf16, #tpu.memory_space<vmem>>, %arg2: memref<400x256xbf16, #tpu.memory_space<vmem>>, %arg3: memref<1x1xf32, #tpu.memory_space<vmem>>, %arg4: memref<1xf32, #tpu.memory_space<smem>>, %arg5: memref<1x256xf32, #tpu.memory_space<vmem>>, %arg6: memref<1x256xf32, #tpu.memory_space<vmem>>) attributes {dimension_semantics = [#tpu.dimension_semantics<parallel>], iteration_bounds = array<i64: 1>, scalar_prefetch = 0 : i64, scratch_operands = 0 : i64, tpu.core_type = #tpu.core_type<tc>, window_params = [{pipeline_mode = #tpu.pipeline_mode<synchronous>, transform_indices = @transform_0, window_bounds = array<i64: 1, 400>}, {transform_indices = @transform_1, window_bounds = array<i64: 400, 256>}, {pipeline_mode = #tpu.pipeline_mode<synchronous>, transform_indices = @transform_2, window_bounds = array<i64: 1, 1>}, {transform_indices = @transform_3, window_bounds = array<i64: 1>}, {transform_indices = @transform_4, window_bounds = array<i64: 1, 256>}, {transform_indices = @transform_5, window_bounds = array<i64: 1, 256>}]} {
    %c0 = arith.constant 0 : index
    %c0_0 = arith.constant 0 : index
    %0 = vector.load %arg1[%c0, %c0_0] : memref<1x400xbf16, #tpu.memory_space<vmem>>, vector<1x400xbf16>
    %c0_1 = arith.constant 0 : index
    %c0_2 = arith.constant 0 : index
    %1 = vector.load %arg2[%c0_1, %c0_2] : memref<400x256xbf16, #tpu.memory_space<vmem>>, vector<400x256xbf16>
    %cst = arith.constant dense<0.000000e+00> : vector<1x256xf32>
    %2 = tpu.matmul %0, %1, %cst {dimension_numbers = #tpu.dot_dimension_numbers<[1], [0], [0], [1], [0, 0, 1, 1], [], []>} : vector<1x400xbf16>, vector<400x256xbf16>, vector<1x256xf32> -> vector<1x256xf32>
    %c0_3 = arith.constant 0 : index
    %c0_4 = arith.constant 0 : index
    %3 = vector.load %arg3[%c0_3, %c0_4] : memref<1x1xf32, #tpu.memory_space<vmem>>, vector<1x1xf32>
    %4 = vector.broadcast %3 : vector<1x1xf32> to vector<1x256xf32>
    %5 = arith.addf %2, %4 : vector<1x256xf32>
    %c0_5 = arith.constant 0 : index
    %6 = memref.load %arg4[%c0_5] : memref<1xf32, #tpu.memory_space<smem>>
    %cst_6 = arith.constant 0.000000e+00 : f32
    %7 = vector.broadcast %cst_6 : f32 to vector<1x256xf32>
    %8 = arith.cmpf oge, %5, %7 : vector<1x256xf32>
    %9 = vector.broadcast %6 : f32 to vector<1x256xf32>
    %10 = arith.mulf %9, %5 : vector<1x256xf32>
    %11 = arith.select %8, %5, %10 : vector<1x256xi1>, vector<1x256xf32>
    %c0_7 = arith.constant 0 : index
    %c0_8 = arith.constant 0 : index
    %12 = vector.load %arg5[%c0_7, %c0_8] : memref<1x256xf32, #tpu.memory_space<vmem>>, vector<1x256xf32>
    %13 = arith.addf %12, %11 : vector<1x256xf32>
    %14 = math.absf %13 : vector<1x256xf32>
    %c0_9 = arith.constant 0 : index
    %c0_10 = arith.constant 0 : index
    %15 = vector.load %arg6[%c0_9, %c0_10] : memref<1x256xf32, #tpu.memory_space<vmem>>, vector<1x256xf32>
    tpu.vector_store %arg6[%c0_9, %c0_10], %14 {strides = array<i32>} : memref<1x256xf32, #tpu.memory_space<vmem>>, vector<1x256xf32>,
    return
  }
  func.func @transform_0(%arg0: i32) -> (i32, i32) {
    %c0_i32 = arith.constant 0 : i32
    %c0_i32_0 = arith.constant 0 : i32
    %c0_i32_1 = arith.constant 0 : i32
    return %c0_i32, %c0_i32_0 : i32, i32
  }
  func.func @transform_1(%arg0: i32) -> (i32, i32) {
    %c0_i32 = arith.constant 0 : i32
    %c0_i32_0 = arith.constant 0 : i32
    return %c0_i32, %arg0 : i32, i32
  }
  func.func @transform_2(%arg0: i32) -> (i32, i32) {
    %c0_i32 = arith.constant 0 : i32
    %c0_i32_0 = arith.constant 0 : i32
    %c0_i32_1 = arith.constant 0 : i32
    return %c0_i32, %c0_i32_0 : i32, i32
  }
  func.func @transform_3(%arg0: i32) -> i32 {
    %c0_i32 = arith.constant 0 : i32
    %c0_i32_0 = arith.constant 0 : i32
    return %c0_i32 : i32
  }
  func.func @transform_4(%arg0: i32) -> (i32, i32) {
    %c0_i32 = arith.constant 0 : i32
    %c0_i32_0 = arith.constant 0 : i32
    return %c0_i32, %arg0 : i32, i32
  }
  func.func @transform_5(%arg0: i32) -> (i32, i32) {
    %c0_i32 = arith.constant 0 : i32
    %c0_i32_0 = arith.constant 0 : i32
    return %c0_i32, %arg0 : i32, i32
  }
}

module attributes {stable_mosaic.version = 11 : i64} {
  func.func @mlem_step_fused_kernel(%arg0: memref<1x256xf32, #tpu.memory_space<vmem>>, %arg1: memref<256x384xbf16, #tpu.memory_space<vmem>>, %arg2: memref<384x256xbf16, #tpu.memory_space<vmem>>, %arg3: memref<1x384xf32, #tpu.memory_space<vmem>>, %arg4: memref<1x256xf32, #tpu.memory_space<vmem>>, %arg5: memref<1x256xf32, #tpu.memory_space<vmem>>) attributes {dimension_semantics = [], scalar_prefetch = 0 : i64, scratch_operands = 0 : i64, tpu.core_type = #tpu.core_type<tc>} {
    %c0 = arith.constant 0 : index
    %c0_0 = arith.constant 0 : index
    %0 = vector.load %arg0[%c0, %c0_0] : memref<1x256xf32, #tpu.memory_space<vmem>>, vector<1x256xf32>
    %1 = arith.truncf %0 : vector<1x256xf32> to vector<1x256xbf16>
    %c0_1 = arith.constant 0 : index
    %c0_2 = arith.constant 0 : index
    %2 = vector.load %arg1[%c0_1, %c0_2] : memref<256x384xbf16, #tpu.memory_space<vmem>>, vector<256x384xbf16>
    %cst = arith.constant dense<0.000000e+00> : vector<1x384xf32>
    %3 = tpu.matmul %1, %2, %cst {dimension_numbers = #tpu.dot_dimension_numbers<[1], [0], [0], [1], [0, 0, 1, 1], [], []>} : vector<1x256xbf16>, vector<256x384xbf16>, vector<1x384xf32> -> vector<1x384xf32>
    %c0_3 = arith.constant 0 : index
    %c0_4 = arith.constant 0 : index
    %4 = vector.load %arg3[%c0_3, %c0_4] : memref<1x384xf32, #tpu.memory_space<vmem>>, vector<1x384xf32>
    %cst_5 = arith.constant 9.99999971E-10 : f32
    %5 = vector.broadcast %cst_5 : f32 to vector<1x384xf32>
    %6 = arith.addf %3, %5 : vector<1x384xf32>
    %7 = arith.divf %4, %6 : vector<1x384xf32>
    %8 = arith.truncf %7 : vector<1x384xf32> to vector<1x384xbf16>
    %c0_6 = arith.constant 0 : index
    %c0_7 = arith.constant 0 : index
    %9 = vector.load %arg2[%c0_6, %c0_7] : memref<384x256xbf16, #tpu.memory_space<vmem>>, vector<384x256xbf16>
    %cst_8 = arith.constant dense<0.000000e+00> : vector<1x256xf32>
    %10 = tpu.matmul %8, %9, %cst_8 {dimension_numbers = #tpu.dot_dimension_numbers<[1], [0], [0], [1], [0, 0, 1, 1], [], []>} : vector<1x384xbf16>, vector<384x256xbf16>, vector<1x256xf32> -> vector<1x256xf32>
    %c0_9 = arith.constant 0 : index
    %c0_10 = arith.constant 0 : index
    %11 = vector.load %arg0[%c0_9, %c0_10] : memref<1x256xf32, #tpu.memory_space<vmem>>, vector<1x256xf32>
    %12 = arith.mulf %11, %10 : vector<1x256xf32>
    %c0_11 = arith.constant 0 : index
    %c0_12 = arith.constant 0 : index
    %13 = vector.load %arg4[%c0_11, %c0_12] : memref<1x256xf32, #tpu.memory_space<vmem>>, vector<1x256xf32>
    %14 = arith.mulf %12, %13 : vector<1x256xf32>
    %c0_13 = arith.constant 0 : index
    %c0_14 = arith.constant 0 : index
    %15 = vector.load %arg5[%c0_13, %c0_14] : memref<1x256xf32, #tpu.memory_space<vmem>>, vector<1x256xf32>
    tpu.vector_store %arg5[%c0_13, %c0_14], %14 {strides = array<i32>} : memref<1x256xf32, #tpu.memory_space<vmem>>, vector<1x256xf32>,
    return
  }
}

</mosaic_0001>

<llo_original>
// kernel: mlem_cnn_forward.18
$region0: #{mlem_cnn_forward.18}
  #allocation0 [shape = 'u32[]', space=smem, size = 0x4, offset = 0x4, fixed_abs, tag = 'smem constant byte address 0x4 - core index']
  #allocation1 [shape = 'u32[144,128]{1,0:T(1,128)}', space=vmem, size = 0x12000, scoped, tag = 'internal scratch']
  %s0 = inlined_call_operand.vmem [shape: f32[1,256], index: 0, kind: input, shape index: {}]
  %s1 = inlined_call_operand.hbm [shape: s8[256,384], index: 1, kind: input, shape index: {}]
  %s2 = inlined_call_operand.hbm [shape: s8[384,256], index: 2, kind: input, shape index: {}]
  %s3 = inlined_call_operand.vmem [shape: f32[1,384], index: 3, kind: input, shape index: {}]
  %s4 = inlined_call_operand.vmem [shape: f32[1,256], index: 4, kind: input, shape index: {}]
  %s5 = inlined_call_operand.vmem [shape: f32[1,256], index: 5, kind: output, shape index: {}]
  %s6 = sld [smem:[#allocation0]]
  $region38: #{mlem_cnn_forward.18} parent=0
    _
  %s8 = ssub.s32 1, %s6
  %s9 = scalar_select 0, %s8, %s6
  $region1: #{mlem_cnn_forward.18} parent=0
    #allocation2 [shape = 'u8[98304]{0}', space=vmem, size = 0x18000, scoped, tag = 'input window, operand 1, single buffered']
    #allocation3 [shape = 's32[1]{0}', space=sflag, size = 0x4, scoped, tag = 'scoped memory for mlem_cnn_forward.18']
    #allocation4 [shape = 'u8[98304]{0}', space=vmem, size = 0x18000, scoped, tag = 'input window, operand 2, single buffered']
    #allocation5 [shape = 's32[1]{0}', space=sflag, size = 0x4, scoped, tag = 'scoped memory for mlem_cnn_forward.18']
    %10 = vsyncpa [#allocation3], 0
    %11 = vsyncpa [#allocation5], 0
    // Predicated region
    $region2: #{mlem_cnn_forward.18} parent=1 // pred_check
      _
    $region3: #{mlem_cnn_forward.18} parent=1 // pred_check_branch
      %13 = sbr.rel (0) target = $region5
    $region4: #{mlem_cnn_forward.18} parent=1 // pred_region
      _
    $region5: #{mlem_cnn_forward.18} parent=1 // pred_fallthru
      _
    // Predicated region
    $region6: #{mlem_cnn_forward.18} parent=1 // pred_check
      _
    $region7: #{mlem_cnn_forward.18} parent=1 // pred_check_branch
      %15 = sbr.rel (0) target = $region9
    $region8: #{mlem_cnn_forward.18} parent=1 // pred_region
      %s17 = ssub.s32 3072, 3072
      %18 = vsyncadd [#allocation3], %s17
      %s19 = sshll.u32 [#allocation2], 4
      %s20 = int_to_ptr.vmem [resolvable:$true] %s19
      %25 = dma.hbm_to_vmem [thread:$0]  %s1, 3072, %s20, [#allocation3], 384, 384, 24
    $region9: #{mlem_cnn_forward.18} parent=1 // pred_fallthru
      _
    // Predicated region
    $region10: #{mlem_cnn_forward.18} parent=1 // pred_check
      _
    $region11: #{mlem_cnn_forward.18} parent=1 // pred_check_branch
      %27 = sbr.rel (0) target = $region13
    $region12: #{mlem_cnn_forward.18} parent=1 // pred_region
      %s29 = ssub.s32 3072, 3072
      %30 = vsyncadd [#allocation5], %s29
      %s31 = sshll.u32 [#allocation4], 4
      %s32 = int_to_ptr.vmem [resolvable:$true] %s31
      %37 = dma.hbm_to_vmem [thread:$0]  %s2, 3072, %s32, [#allocation5], 256, 256, 16
    $region13: #{mlem_cnn_forward.18} parent=1 // pred_fallthru
      _
    // Predicated region
    $region14: #{mlem_cnn_forward.18} parent=1 // pred_check
      _
    $region15: #{mlem_cnn_forward.18} parent=1 // pred_check_branch
      %39 = sbr.rel (0) target = $region17
    $region16: #{mlem_cnn_forward.18} parent=1 // pred_region
      _
    $region17: #{mlem_cnn_forward.18} parent=1 // pred_fallthru
      _
    // Predicated region
    $region18: #{mlem_cnn_forward.18} parent=1 // pred_check
      _
    $region19: #{mlem_cnn_forward.18} parent=1 // pred_check_branch
      %41 = sbr.rel (0) target = $region21
    $region20: #{mlem_cnn_forward.18} parent=1 // pred_region
      _
    $region21: #{mlem_cnn_forward.18} parent=1 // pred_fallthru
      _
    // Predicated region
    $region22: #{mlem_cnn_forward.18} parent=1 // pred_check
      _
    $region23: #{mlem_cnn_forward.18} parent=1 // pred_check_branch
      %43 = sbr.rel (0) target = $region25
    $region24: #{mlem_cnn_forward.18} parent=1 // pred_region
      %44 = dma.done [#allocation3], 3072
    $region25: #{mlem_cnn_forward.18} parent=1 // pred_fallthru
      _
    // Predicated region
    $region26: #{mlem_cnn_forward.18} parent=1 // pred_check
      _
    $region27: #{mlem_cnn_forward.18} parent=1 // pred_check_branch
      %46 = sbr.rel (0) target = $region29
    $region28: #{mlem_cnn_forward.18} parent=1 // pred_region
      %47 = dma.done [#allocation5], 3072
    $region29: #{mlem_cnn_forward.18} parent=1 // pred_fallthru
      _
    %v49 = vld [vmem:[%s0] sm:$0x3]
    %v51 = vlaneseq
    %v52 = vshrl.u32 %v51, 7
    %v53 = vsub.s32 0, %v52
    %v54 = vrot.slane %v49, %v53
    %v55 = vlaneseq
    %v56 = vshrl.u32 %v55, 7
    %v57 = vsub.s32 1, %v56
    %v58 = vrot.slane %v49, %v57
    %v61 = vpack.c.bf16 %v54, %v54
    %v62 = vpack.c.bf16 %v58, %v58
    %v63 = vld [vmem:[#allocation2] sm:$0xff]
    %v64 = vld [vmem:[#allocation2 + $0x8] sm:$0xff]
    %v65 = vld [vmem:[#allocation2 + $0x10] sm:$0xff]
    %v66 = vld [vmem:[#allocation2 + $0x18] sm:$0xff]
    %v67 = vld [vmem:[#allocation2 + $0x20] sm:$0xff]
    %v68 = vld [vmem:[#allocation2 + $0x28] sm:$0xff]
    %v69 = vld [vmem:[#allocation2 + $0x30] sm:$0xff]
    %v70 = vld [vmem:[#allocation2 + $0x38] sm:$0xff]
    %v71 = vld [vmem:[#allocation2 + $0x40] sm:$0xff]
    %v72 = vld [vmem:[#allocation2 + $0x48] sm:$0xff]
    %v73 = vld [vmem:[#allocation2 + $0x50] sm:$0xff]
    %v74 = vld [vmem:[#allocation2 + $0x58] sm:$0xff]
    %v75 = vld [vmem:[#allocation2 + $0x60] sm:$0xff]
    %v76 = vld [vmem:[#allocation2 + $0x68] sm:$0xff]
    %v77 = vld [vmem:[#allocation2 + $0x70] sm:$0xff]
    %v78 = vld [vmem:[#allocation2 + $0x78] sm:$0xff]
    %v79 = vld [vmem:[#allocation2 + $0x80] sm:$0xff]
    %v80 = vld [vmem:[#allocation2 + $0x88] sm:$0xff]
    %v81 = vld [vmem:[#allocation2 + $0x90] sm:$0xff]
    %v82 = vld [vmem:[#allocation2 + $0x98] sm:$0xff]
    %v83 = vld [vmem:[#allocation2 + $0xa0] sm:$0xff]
    %v84 = vld [vmem:[#allocation2 + $0xa8] sm:$0xff]
    %v85 = vld [vmem:[#allocation2 + $0xb0] sm:$0xff]
    %v86 = vld [vmem:[#allocation2 + $0xb8] sm:$0xff]
    %v87 = vunpack.c.l.s8.bf16 %v63
    %v88 = vunpack.c.l.s8.bf16 %v64
    %v89 = vunpack.c.l.s8.bf16 %v65
    %v90 = vunpack.c.h.s8.bf16 %v63
    %v91 = vunpack.c.h.s8.bf16 %v64
    %v92 = vunpack.c.h.s8.bf16 %v65
    %v93 = vunpack.c.l.s8.bf16 %v66
    %v94 = vunpack.c.l.s8.bf16 %v67
    %v95 = vunpack.c.l.s8.bf16 %v68
    %v96 = vunpack.c.h.s8.bf16 %v66
    %v97 = vunpack.c.h.s8.bf16 %v67
    %v98 = vunpack.c.h.s8.bf16 %v68
    %v99 = vunpack.c.l.s8.bf16 %v69
    %v100 = vunpack.c.l.s8.bf16 %v70
    %v101 = vunpack.c.l.s8.bf16 %v71
    %v102 = vunpack.c.h.s8.bf16 %v69
    %v103 = vunpack.c.h.s8.bf16 %v70
    %v104 = vunpack.c.h.s8.bf16 %v71
    %v105 = vunpack.c.l.s8.bf16 %v72
    %v106 = vunpack.c.l.s8.bf16 %v73
    %v107 = vunpack.c.l.s8.bf16 %v74
    %v108 = vunpack.c.h.s8.bf16 %v72
    %v109 = vunpack.c.h.s8.bf16 %v73
    %v110 = vunpack.c.h.s8.bf16 %v74
    %v111 = vunpack.c.l.s8.bf16 %v75
    %v112 = vunpack.c.l.s8.bf16 %v76
    %v113 = vunpack.c.l.s8.bf16 %v77
    %v114 = vunpack.c.h.s8.bf16 %v75
    %v115 = vunpack.c.h.s8.bf16 %v76
    %v116 = vunpack.c.h.s8.bf16 %v77
    %v117 = vunpack.c.l.s8.bf16 %v78
    %v118 = vunpack.c.l.s8.bf16 %v79
    %v119 = vunpack.c.l.s8.bf16 %v80
    %v120 = vunpack.c.h.s8.bf16 %v78
    %v121 = vunpack.c.h.s8.bf16 %v79
    %v122 = vunpack.c.h.s8.bf16 %v80
    %v123 = vunpack.c.l.s8.bf16 %v81
    %v124 = vunpack.c.l.s8.bf16 %v82
    %v125 = vunpack.c.l.s8.bf16 %v83
    %v126 = vunpack.c.h.s8.bf16 %v81
    %v127 = vunpack.c.h.s8.bf16 %v82
    %v128 = vunpack.c.h.s8.bf16 %v83
    %v129 = vunpack.c.l.s8.bf16 %v84
    %v130 = vunpack.c.l.s8.bf16 %v85
    %v131 = vunpack.c.l.s8.bf16 %v86
    %v132 = vunpack.c.h.s8.bf16 %v84
    %v133 = vunpack.c.h.s8.bf16 %v85
    %v134 = vunpack.c.h.s8.bf16 %v86
    %v135 = vld [vmem:[%s3] sm:$0x7]
    %136 = vmatprep.subr.bf16.mxu0 %v109
    %137 = vmatpush1.bf16.msra.mxu0 %v108
    %138 = vmatprep.subr.bf16.mxu0 %v106
    %139 = vmatpush1.bf16.msra.mxu0 %v105
    %140 = vmatprep.subr.bf16.mxu0 %v103
    %141 = vmatpush1.bf16.msra.mxu0 %v102
    %142 = vmatprep.subr.bf16.mxu0 %v100
    %143 = vmatpush1.bf16.msra.mxu0 %v99
    %144 = vmatprep.subr.bf16.mxu0 %v97
    %145 = vmatpush1.bf16.msra.mxu0 %v96
    %146 = vmatprep.subr.bf16.mxu0 %v94
    %147 = vmatpush1.bf16.msra.mxu0 %v93
    %148 = vmatprep.subr.bf16.mxu0 %v91
    %149 = vmatpush1.bf16.msra.mxu0 %v90
    %150 = vmatprep.subr.bf16.mxu0 %v88
    %151 = vmatpush1.bf16.msra.mxu0 %v87
    %152 = vmatprep.subr.bf16.mxu0 %v133
    %153 = vmatpush2.bf16.msra.mxu0 %v132
    %154 = vmatprep.subr.bf16.mxu0 %v130
    %155 = vmatpush2.bf16.msra.mxu0 %v129
    %156 = vmatprep.subr.bf16.mxu0 %v127
    %157 = vmatpush2.bf16.msra.mxu0 %v126
    %158 = vmatprep.subr.bf16.mxu0 %v124
    %159 = vmatpush2.bf16.msra.mxu0 %v123
    %160 = vmatprep.subr.bf16.mxu0 %v121
    %161 = vmatpush2.bf16.msra.mxu0 %v120
    %162 = vmatprep.subr.bf16.mxu0 %v118
    %163 = vmatpush2.bf16.msra.mxu0 %v117
    %164 = vmatprep.subr.bf16.mxu0 %v115
    %165 = vmatpush2.bf16.msra.mxu0 %v114
    %166 = vmatprep.subr.bf16.mxu0 %v112
    %167 = vmatpush2.bf16.msra.mxu0 %v111
    %168 = vmatprep.mubr.bf16.mxu0 %v62
    %169 = vmatmul.mubr.bf16.gmra.mxu0 %v61
    %v170 = vpop.f32.mrf.mxu0
    %v171 = vadd.f32 1e-09, %v170
    %v172 = vpop.f32.mrf.mxu0
    %v173 = vadd.f32 1e-09, %v172
    %v174 = vpop.f32.mrf.mxu0
    %v175 = vpop.f32.mrf.mxu0
    %176 = vdwg.mxu0
    %177 = vmatprep.subr.bf16.mxu0 0
    %178 = vmatpush1.bf16.msra.mxu0 %v110
    %179 = vmatprep.subr.bf16.mxu0 0
    %180 = vmatpush1.bf16.msra.mxu0 %v107
    %181 = vmatprep.subr.bf16.mxu0 0
    %182 = vmatpush1.bf16.msra.mxu0 %v104
    %183 = vmatprep.subr.bf16.mxu0 0
    %184 = vmatpush1.bf16.msra.mxu0 %v101
    %185 = vmatprep.subr.bf16.mxu0 0
    %186 = vmatpush1.bf16.msra.mxu0 %v98
    %187 = vmatprep.subr.bf16.mxu0 0
    %188 = vmatpush1.bf16.msra.mxu0 %v95
    %189 = vmatprep.subr.bf16.mxu0 0
    %190 = vmatpush1.bf16.msra.mxu0 %v92
    %191 = vmatprep.subr.bf16.mxu0 0
    %192 = vmatpush1.bf16.msra.mxu0 %v89
    %193 = vmatprep.subr.bf16.mxu0 0
    %194 = vmatpush2.bf16.msra.mxu0 %v134
    %195 = vmatprep.subr.bf16.mxu0 0
    %196 = vmatpush2.bf16.msra.mxu0 %v131
    %197 = vmatprep.subr.bf16.mxu0 0
    %198 = vmatpush2.bf16.msra.mxu0 %v128
    %199 = vmatprep.subr.bf16.mxu0 0
    %200 = vmatpush2.bf16.msra.mxu0 %v125
    %201 = vmatprep.subr.bf16.mxu0 0
    %202 = vmatpush2.bf16.msra.mxu0 %v122
    %203 = vmatprep.subr.bf16.mxu0 0
    %204 = vmatpush2.bf16.msra.mxu0 %v119
    %205 = vmatprep.subr.bf16.mxu0 0
    %206 = vmatpush2.bf16.msra.mxu0 %v116
    %207 = vmatprep.subr.bf16.mxu0 0
    %208 = vmatpush2.bf16.msra.mxu0 %v113
    %209 = vmatprep.mubr.bf16.mxu0 %v62
    %210 = vmatmul.mubr.bf16.gmra.mxu0 %v61
    %v211 = vpop.f32.mrf.mxu0
    %v212 = vadd.f32 1e-09, %v211
    %v213 = vpop.f32.mrf.mxu0
    %v214 = vpop.f32.mrf.mxu0
    %v215 = vpop.f32.mrf.mxu0
    %216 = vdwg.mxu0
    %v220 = vcombine.low %v171, %v173
    %v222 = vunpack.c.l.s4 1966171168
    %v223 = vunpack.c.0.s8 %v222
    %v224 = vlaneseq
    %v225 = vshrl.u32 %v224, 7
    %v226 = vsub.s32 %v223, %v225
    %v227 = vrot.slane %v220, %v226
    %v229 = vunpack.c.l.s4 1966171168
    %v230 = vunpack.c.0.s8 %v229
    %v231 = vlaneseq
    %v232 = vshrl.u32 %v231, 7
    %v233 = vsub.s32 %v230, %v232
    %v234 = vrot.slane %v212, %v233
    %v235 = vcombine.low %v227, %v234
    %v237 = vunpack.c.l.s4 1966171168
    %v238 = vunpack.c.0.s8 %v237
    %v239 = vlaneseq
    %v240 = vshrl.u32 %v239, 7
    %v241 = vsub.s32 %v238, %v240
    %v242 = vrot.slane %v235, %v241
    %v244 = vrcp.pop %v242
    %v245 = vmul.f32 %v135, %v244
    %v247 = vlaneseq
    %v248 = vshrl.u32 %v247, 7
    %v249 = vsub.s32 0, %v248
    %v250 = vrot.slane %v245, %v249
    %v251 = vlaneseq
    %v252 = vshrl.u32 %v251, 7
    %v253 = vsub.s32 1, %v252
    %v254 = vrot.slane %v245, %v253
    %v255 = vlaneseq
    %v256 = vshrl.u32 %v255, 7
    %v257 = vsub.s32 2, %v256
    %v258 = vrot.slane %v245, %v257
    %v262 = vpack.c.bf16 %v250, %v250
    %v263 = vpack.c.bf16 %v254, %v254
    %v264 = vpack.c.bf16 %v258, %v258
    %v265 = vld [vmem:[#allocation4] sm:$0xff]
    %v266 = vld [vmem:[#allocation4 + $0x8] sm:$0xff]
    %v267 = vld [vmem:[#allocation4 + $0x10] sm:$0xff]
    %v268 = vld [vmem:[#allocation4 + $0x18] sm:$0xff]
    %v269 = vld [vmem:[#allocation4 + $0x20] sm:$0xff]
    %v270 = vld [vmem:[#allocation4 + $0x28] sm:$0xff]
    %v271 = vld [vmem:[#allocation4 + $0x30] sm:$0xff]
    %v272 = vld [vmem:[#allocation4 + $0x38] sm:$0xff]
    %v273 = vld [vmem:[#allocation4 + $0x40] sm:$0xff]
    %v274 = vld [vmem:[#allocation4 + $0x48] sm:$0xff]
    %v275 = vld [vmem:[#allocation4 + $0x50] sm:$0xff]
    %v276 = vld [vmem:[#allocation4 + $0x58] sm:$0xff]
    %v277 = vld [vmem:[#allocation4 + $0x60] sm:$0xff]
    %v278 = vld [vmem:[#allocation4 + $0x68] sm:$0xff]
    %v279 = vld [vmem:[#allocation4 + $0x70] sm:$0xff]
    %v280 = vld [vmem:[#allocation4 + $0x78] sm:$0xff]
    %v281 = vld [vmem:[#allocation4 + $0x80] sm:$0xff]
    %v282 = vld [vmem:[#allocation4 + $0x88] sm:$0xff]
    %v283 = vld [vmem:[#allocation4 + $0x90] sm:$0xff]
    %v284 = vld [vmem:[#allocation4 + $0x98] sm:$0xff]
    %v285 = vld [vmem:[#allocation4 + $0xa0] sm:$0xff]
    %v286 = vld [vmem:[#allocation4 + $0xa8] sm:$0xff]
    %v287 = vld [vmem:[#allocation4 + $0xb0] sm:$0xff]
    %v288 = vld [vmem:[#allocation4 + $0xb8] sm:$0xff]
    %v289 = vunpack.c.l.s8.bf16 %v265
    %v290 = vunpack.c.l.s8.bf16 %v266
    %v291 = vunpack.c.h.s8.bf16 %v265
    %v292 = vunpack.c.h.s8.bf16 %v266
    %v293 = vunpack.c.l.s8.bf16 %v267
    %v294 = vunpack.c.l.s8.bf16 %v268
    %v295 = vunpack.c.h.s8.bf16 %v267
    %v296 = vunpack.c.h.s8.bf16 %v268
    %v297 = vunpack.c.l.s8.bf16 %v269
    %v298 = vunpack.c.l.s8.bf16 %v270
    %v299 = vunpack.c.h.s8.bf16 %v269
    %v300 = vunpack.c.h.s8.bf16 %v270
    %v301 = vunpack.c.l.s8.bf16 %v271
    %v302 = vunpack.c.l.s8.bf16 %v272
    %v303 = vunpack.c.h.s8.bf16 %v271
    %v304 = vunpack.c.h.s8.bf16 %v272
    %v305 = vunpack.c.l.s8.bf16 %v273
    %v306 = vunpack.c.l.s8.bf16 %v274
    %v307 = vunpack.c.h.s8.bf16 %v273
    %v308 = vunpack.c.h.s8.bf16 %v274
    %v309 = vunpack.c.l.s8.bf16 %v275
    %v310 = vunpack.c.l.s8.bf16 %v276
    %v311 = vunpack.c.h.s8.bf16 %v275
    %v312 = vunpack.c.h.s8.bf16 %v276
    %v313 = vunpack.c.l.s8.bf16 %v277
    %v314 = vunpack.c.l.s8.bf16 %v278
    %v315 = vunpack.c.h.s8.bf16 %v277
    %v316 = vunpack.c.h.s8.bf16 %v278
    %v317 = vunpack.c.l.s8.bf16 %v279
    %v318 = vunpack.c.l.s8.bf16 %v280
    %v319 = vunpack.c.h.s8.bf16 %v279
    %v320 = vunpack.c.h.s8.bf16 %v280
    %v321 = vunpack.c.l.s8.bf16 %v281
    %v322 = vunpack.c.l.s8.bf16 %v282
    %v323 = vunpack.c.h.s8.bf16 %v281
    %v324 = vunpack.c.h.s8.bf16 %v282
    %v325 = vunpack.c.l.s8.bf16 %v283
    %v326 = vunpack.c.l.s8.bf16 %v284
    %v327 = vunpack.c.h.s8.bf16 %v283
    %v328 = vunpack.c.h.s8.bf16 %v284
    %v329 = vunpack.c.l.s8.bf16 %v285
    %v330 = vunpack.c.l.s8.bf16 %v286
    %v331 = vunpack.c.h.s8.bf16 %v285
    %v332 = vunpack.c.h.s8.bf16 %v286
    %v333 = vunpack.c.l.s8.bf16 %v287
    %v334 = vunpack.c.l.s8.bf16 %v288
    %v335 = vunpack.c.h.s8.bf16 %v287
    %v336 = vunpack.c.h.s8.bf16 %v288
    %337 = vmatprep.subr.bf16.mxu0 %v304
    %338 = vmatpush1.bf16.msra.mxu0 %v303
    %339 = vmatprep.subr.bf16.mxu0 %v302
    %340 = vmatpush1.bf16.msra.mxu0 %v301
    %341 = vmatprep.subr.bf16.mxu0 %v300
    %342 = vmatpush1.bf16.msra.mxu0 %v299
    %343 = vmatprep.subr.bf16.mxu0 %v298
    %344 = vmatpush1.bf16.msra.mxu0 %v297
    %345 = vmatprep.subr.bf16.mxu0 %v296
    %346 = vmatpush1.bf16.msra.mxu0 %v295
    %347 = vmatprep.subr.bf16.mxu0 %v294
    %348 = vmatpush1.bf16.msra.mxu0 %v293
    %349 = vmatprep.subr.bf16.mxu0 %v292
    %350 = vmatpush1.bf16.msra.mxu0 %v291
    %351 = vmatprep.subr.bf16.mxu0 %v290
    %352 = vmatpush1.bf16.msra.mxu0 %v289
    %353 = vmatprep.subr.bf16.mxu0 %v320
    %354 = vmatpush2.bf16.msra.mxu0 %v319
    %355 = vmatprep.subr.bf16.mxu0 %v318
    %356 = vmatpush2.bf16.msra.mxu0 %v317
    %357 = vmatprep.subr.bf16.mxu0 %v316
    %358 = vmatpush2.bf16.msra.mxu0 %v315
    %359 = vmatprep.subr.bf16.mxu0 %v314
    %360 = vmatpush2.bf16.msra.mxu0 %v313
    %361 = vmatprep.subr.bf16.mxu0 %v312
    %362 = vmatpush2.bf16.msra.mxu0 %v311
    %363 = vmatprep.subr.bf16.mxu0 %v310
    %364 = vmatpush2.bf16.msra.mxu0 %v309
    %365 = vmatprep.subr.bf16.mxu0 %v308
    %366 = vmatpush2.bf16.msra.mxu0 %v307
    %367 = vmatprep.subr.bf16.mxu0 %v306
    %368 = vmatpush2.bf16.msra.mxu0 %v305
    %369 = vmatprep.mubr.bf16.mxu0 %v263
    %370 = vmatmul.mubr.bf16.gmra.mxu0 %v262
    %v371 = vpop.f32.mrf.mxu0
    %v372 = vadd.f32 0.0, %v371
    %v373 = vpop.f32.mrf.mxu0
    %v374 = vadd.f32 0.0, %v373
    %v375 = vpop.f32.mrf.mxu0
    %v376 = vpop.f32.mrf.mxu0
    %377 = vdwg.mxu0
    %378 = vmatprep.subr.bf16.mxu0 %v336
    %379 = vmatpush1.bf16.msra.mxu0 %v335
    %380 = vmatprep.subr.bf16.mxu0 %v334
    %381 = vmatpush1.bf16.msra.mxu0 %v333
    %382 = vmatprep.subr.bf16.mxu0 %v332
    %383 = vmatpush1.bf16.msra.mxu0 %v331
    %384 = vmatprep.subr.bf16.mxu0 %v330
    %385 = vmatpush1.bf16.msra.mxu0 %v329
    %386 = vmatprep.subr.bf16.mxu0 %v328
    %387 = vmatpush1.bf16.msra.mxu0 %v327
    %388 = vmatprep.subr.bf16.mxu0 %v326
    %389 = vmatpush1.bf16.msra.mxu0 %v325
    %390 = vmatprep.subr.bf16.mxu0 %v324
    %391 = vmatpush1.bf16.msra.mxu0 %v323
    %392 = vmatprep.subr.bf16.mxu0 %v322
    %393 = vmatpush1.bf16.msra.mxu0 %v321
    %394 = vmatprep.subr.bf16.mxu0 0
    %395 = vmatpush2.bf16.msra.mxu0 0
    %396 = vmatprep.subr.bf16.mxu0 0
    %397 = vmatpush2.bf16.msra.mxu0 0
    %398 = vmatprep.subr.bf16.mxu0 0
    %399 = vmatpush2.bf16.msra.mxu0 0
    %400 = vmatprep.subr.bf16.mxu0 0
    %401 = vmatpush2.bf16.msra.mxu0 0
    %402 = vmatprep.subr.bf16.mxu0 0
    %403 = vmatpush2.bf16.msra.mxu0 0
    %404 = vmatprep.subr.bf16.mxu0 0
    %405 = vmatpush2.bf16.msra.mxu0 0
    %406 = vmatprep.subr.bf16.mxu0 0
    %407 = vmatpush2.bf16.msra.mxu0 0
    %408 = vmatprep.subr.bf16.mxu0 0
    %409 = vmatpush2.bf16.msra.mxu0 0
    %410 = vmatprep.mubr.bf16.mxu0 0
    %411 = vmatmul.mubr.bf16.gmra.mxu0 %v264
    %v412 = vpop.f32.mrf.mxu0
    %v413 = vadd.f32 %v372, %v412
    %v414 = vpop.f32.mrf.mxu0
    %v415 = vadd.f32 %v374, %v414
    %v416 = vpop.f32.mrf.mxu0
    %v417 = vpop.f32.mrf.mxu0
    %418 = vdwg.mxu0
    %v421 = vcombine.low %v413, %v415
    %v423 = vunpack.c.l.s4 1966171168
    %v424 = vunpack.c.0.s8 %v423
    %v425 = vlaneseq
    %v426 = vshrl.u32 %v425, 7
    %v427 = vsub.s32 %v424, %v426
    %v428 = vrot.slane %v421, %v427
    %v430 = vunpack.c.l.s4 1966171168
    %v431 = vunpack.c.0.s8 %v430
    %v432 = vlaneseq
    %v433 = vshrl.u32 %v432, 7
    %v434 = vsub.s32 %v431, %v433
    %v435 = vrot.slane %v428, %v434
    %v437 = vmul.f32 %v49, %v435
    %v438 = vld [vmem:[%s4] sm:$0x3]
    %v439 = vmul.f32 %v437, %v438
    %v440 = vlaneseq
    %vm441 = vcmp.ge.s32.totalorder %v440, 0
    %vm442 = vcmp.lt.s32.totalorder %v440, 256
    %vm443 = vmand %vm441, %vm442
    %444 = vst.msk [vmem:[%s5] sm:$0x3] %vm443, %v439
    // Predicated region
    $region30: #{mlem_cnn_forward.18} parent=1 // pred_check
      _
    $region31: #{mlem_cnn_forward.18} parent=1 // pred_check_branch
      %446 = sbr.rel (0) target = $region33
    $region32: #{mlem_cnn_forward.18} parent=1 // pred_region
      _
    $region33: #{mlem_cnn_forward.18} parent=1 // pred_fallthru
      _
    // Predicated region
    $region34: #{mlem_cnn_forward.18} parent=1 // pred_check
      _
    $region35: #{mlem_cnn_forward.18} parent=1 // pred_check_branch
      %448 = sbr.rel (0) target = $region37
    $region36: #{mlem_cnn_forward.18} parent=1 // pred_region
      _
    $region37: #{mlem_cnn_forward.18} parent=1 // pred_fallthru
      _
    %449 = vsyncpa [#allocation3], 1
    %450 = vsyncpa [#allocation5], 1

// kernel: mlem_cnn_forward.19
$region0: #{mlem_cnn_forward.19}
  #allocation0 [shape = 'u32[]', space=smem, size = 0x4, offset = 0x4, fixed_abs, tag = 'smem constant byte address 0x4 - core index']
  #allocation1 [shape = 'u32[144,128]{1,0:T(1,128)}', space=vmem, size = 0x12000, scoped, tag = 'internal scratch']
  #allocation2 [shape = 'f32[1]{0:T(128)S(6)}', space=smem, size = 0x200, scoped, tag = 'scoped memory for mlem_cnn_forward.19']
  %s0 = inlined_call_operand.vmem [shape: bf16[8,64], index: 0, kind: input, shape index: {}]
  %s1 = inlined_call_operand.vmem [shape: bf16[64,256], index: 1, kind: input, shape index: {}]
  %s2 = inlined_call_operand.vmem [shape: f32[8,1], index: 2, kind: input, shape index: {}]
  %s3 = inlined_call_operand.<no memory space> [shape: f32[1], index: 3, kind: input, shape index: {}]
  %s4 = inlined_call_operand.vmem [shape: f32[8,256], index: 4, kind: output, shape index: {}]
  %s5 = sld [smem:[#allocation0]]
  $region26: #{mlem_cnn_forward.19} parent=0
    _
  %s7 = ssub.s32 1, %s5
  %s8 = scalar_select 0, %s7, %s5
  %9 = sst [smem:[#allocation2]] %s3
  // Predicated region
  $region2: #{mlem_cnn_forward.19} parent=0 // pred_check
    _
  $region3: #{mlem_cnn_forward.19} parent=0 // pred_check_branch
    %11 = sbr.rel (0) target = $region5
  $region4: #{mlem_cnn_forward.19} parent=0 // pred_region
    _
  $region5: #{mlem_cnn_forward.19} parent=0 // pred_fallthru
    _
  // Predicated region
  $region6: #{mlem_cnn_forward.19} parent=0 // pred_check
    _
  $region7: #{mlem_cnn_forward.19} parent=0 // pred_check_branch
    %13 = sbr.rel (0) target = $region9
  $region8: #{mlem_cnn_forward.19} parent=0 // pred_region
    _
  $region9: #{mlem_cnn_forward.19} parent=0 // pred_fallthru
    _
  // Predicated region
  $region10: #{mlem_cnn_forward.19} parent=0 // pred_check
    _
  $region11: #{mlem_cnn_forward.19} parent=0 // pred_check_branch
    %15 = sbr.rel (0) target = $region13
  $region12: #{mlem_cnn_forward.19} parent=0 // pred_region
    _
  $region13: #{mlem_cnn_forward.19} parent=0 // pred_fallthru
    _
  // Predicated region
  $region14: #{mlem_cnn_forward.19} parent=0 // pred_check
    _
  $region15: #{mlem_cnn_forward.19} parent=0 // pred_check_branch
    %17 = sbr.rel (0) target = $region17
  $region16: #{mlem_cnn_forward.19} parent=0 // pred_region
    _
  $region17: #{mlem_cnn_forward.19} parent=0 // pred_fallthru
    _
  %v19 = vld [vmem:[%s0] sm:$0xf]
  %v20 = vld [vmem:[%s1] sm:$0xff]
  %v21 = vld [vmem:[%s1 + $0x8] sm:$0xff]
  %v22 = vld [vmem:[%s1 + $0x10] sm:$0xff]
  %v23 = vld [vmem:[%s1 + $0x18] sm:$0xff]
  %v24 = vld [vmem:[%s1 + $0x20] sm:$0xff]
  %v25 = vld [vmem:[%s1 + $0x28] sm:$0xff]
  %v26 = vld [vmem:[%s1 + $0x30] sm:$0xff]
  %v27 = vld [vmem:[%s1 + $0x38] sm:$0xff]
  %v28 = vld [vmem:[%s2] sm:$0xff]
  %30 = vset.pattern.permute.xlu0 0
  %31 = vperm.xlu0 %30, %v28
  %v32 = vpop.permute.xlu0 %31
  %v42 = vunpack.c.l.b16 %v20
  %v43 = vunpack.c.h.b16 %v20
  %v44 = vunpack.c.l.b16 %v21
  %v45 = vunpack.c.h.b16 %v21
  %v46 = vunpack.c.l.b16 %v22
  %v47 = vunpack.c.h.b16 %v22
  %v48 = vunpack.c.l.b16 %v23
  %v49 = vunpack.c.h.b16 %v23
  %v50 = vunpack.c.l.b16 %v24
  %v51 = vunpack.c.h.b16 %v24
  %v52 = vunpack.c.l.b16 %v25
  %v53 = vunpack.c.h.b16 %v25
  %v54 = vunpack.c.l.b16 %v26
  %v55 = vunpack.c.h.b16 %v26
  %v56 = vunpack.c.l.b16 %v27
  %v57 = vunpack.c.h.b16 %v27
  %v58 = vpack.c.b16 %v44, %v42
  %v59 = vpack.c.b16 %v45, %v43
  %v60 = vpack.c.b16 %v48, %v46
  %v61 = vpack.c.b16 %v49, %v47
  %v62 = vpack.c.b16 %v52, %v50
  %v63 = vpack.c.b16 %v53, %v51
  %v64 = vpack.c.b16 %v56, %v54
  %v65 = vpack.c.b16 %v57, %v55
  %vm74 = vcmask 523264
  %v76 = vsel %vm74, %v19, 0
  %78 = vmatprep.subr.bf16.mxu0 0
  %79 = vmatpush1.bf16.msra.mxu0 0
  %80 = vmatprep.subr.bf16.mxu0 0
  %81 = vmatpush1.bf16.msra.mxu0 0
  %82 = vmatprep.subr.bf16.mxu0 0
  %83 = vmatpush1.bf16.msra.mxu0 0
  %84 = vmatprep.subr.bf16.mxu0 0
  %85 = vmatpush1.bf16.msra.mxu0 0
  %86 = vmatprep.subr.bf16.mxu0 %v65
  %87 = vmatpush1.bf16.msra.mxu0 %v64
  %88 = vmatprep.subr.bf16.mxu0 %v63
  %89 = vmatpush1.bf16.msra.mxu0 %v62
  %90 = vmatprep.subr.bf16.mxu0 %v61
  %91 = vmatpush1.bf16.msra.mxu0 %v60
  %92 = vmatprep.subr.bf16.mxu0 %v59
  %93 = vmatpush1.bf16.msra.mxu0 %v58
  %94 = vmatprep.subr.bf16.mxu0 0
  %95 = vmatpush2.bf16.msra.mxu0 0
  %96 = vmatprep.subr.bf16.mxu0 0
  %97 = vmatpush2.bf16.msra.mxu0 0
  %98 = vmatprep.subr.bf16.mxu0 0
  %99 = vmatpush2.bf16.msra.mxu0 0
  %100 = vmatprep.subr.bf16.mxu0 0
  %101 = vmatpush2.bf16.msra.mxu0 0
  %102 = vmatprep.subr.bf16.mxu0 0
  %103 = vmatpush2.bf16.msra.mxu0 0
  %104 = vmatprep.subr.bf16.mxu0 0
  %105 = vmatpush2.bf16.msra.mxu0 0
  %106 = vmatprep.subr.bf16.mxu0 0
  %107 = vmatpush2.bf16.msra.mxu0 0
  %108 = vmatprep.subr.bf16.mxu0 0
  %109 = vmatpush2.bf16.msra.mxu0 0
  %110 = vmatprep.mubr.bf16.mxu0 0
  %111 = vmatmul.mubr.bf16.gmra.mxu0 %v76
  %v112 = vpop.f32.mrf.mxu0
  %v113 = vadd.f32 %v32, %v112
  %v114 = vpop.f32.mrf.mxu0
  %v115 = vadd.f32 %v32, %v114
  %v116 = vpop.f32.mrf.mxu0
  %v117 = vpop.f32.mrf.mxu0
  %118 = vdwg.mxu0
  %s119 = sld [smem:[#allocation2]]
  %vm120 = vcmp.ge.f32.partialorder %v113, 0.0
  %vm121 = vcmp.ge.f32.partialorder %v115, 0.0
  %v122 = vstv %s119
  %v123 = vmul.f32 %v122, %v113
  %v124 = vmul.f32 %v122, %v115
  %v125 = vsel %vm120, %v113, %v123
  %v126 = vsel %vm121, %v115, %v124
  %127 = vst [vmem:[%s4] sm:$0xff] %v125
  %128 = vst [vmem:[%s4 + $0x8] sm:$0xff] %v126
  // Predicated region
  $region18: #{mlem_cnn_forward.19} parent=0 // pred_check
    _
  $region19: #{mlem_cnn_forward.19} parent=0 // pred_check_branch
    %130 = sbr.rel (0) target = $region21
  $region20: #{mlem_cnn_forward.19} parent=0 // pred_region
    _
  $region21: #{mlem_cnn_forward.19} parent=0 // pred_fallthru
    _
  // Predicated region
  $region22: #{mlem_cnn_forward.19} parent=0 // pred_check
    _
  $region23: #{mlem_cnn_forward.19} parent=0 // pred_check_branch
    %132 = sbr.rel (0) target = $region25
  $region24: #{mlem_cnn_forward.19} parent=0 // pred_region
    _
  $region25: #{mlem_cnn_forward.19} parent=0 // pred_fallthru
    _

// kernel: mlem_cnn_forward.20
$region0: #{mlem_cnn_forward.20}
  #allocation0 [shape = 'u32[]', space=smem, size = 0x4, offset = 0x4, fixed_abs, tag = 'smem constant byte address 0x4 - core index']
  #allocation1 [shape = 'u32[144,128]{1,0:T(1,128)}', space=vmem, size = 0x12000, scoped, tag = 'internal scratch']
  #allocation2 [shape = 'f32[1]{0:T(128)S(6)}', space=smem, size = 0x200, scoped, tag = 'scoped memory for mlem_cnn_forward.20']
  %s0 = inlined_call_operand.vmem [shape: bf16[8,400], index: 0, kind: input, shape index: {}]
  %s1 = inlined_call_operand.vmem [shape: bf16[400,256], index: 1, kind: input, shape index: {}]
  %s2 = inlined_call_operand.vmem [shape: f32[8,1], index: 2, kind: input, shape index: {}]
  %s3 = inlined_call_operand.<no memory space> [shape: f32[1], index: 3, kind: input, shape index: {}]
  %s4 = inlined_call_operand.vmem [shape: f32[8,256], index: 4, kind: output, shape index: {}]
  %s5 = sld [smem:[#allocation0]]
  $region26: #{mlem_cnn_forward.20} parent=0
    _
  %s7 = ssub.s32 1, %s5
  %s8 = scalar_select 0, %s7, %s5
  %9 = sst [smem:[#allocation2]] %s3
  // Predicated region
  $region2: #{mlem_cnn_forward.20} parent=0 // pred_check
    _
  $region3: #{mlem_cnn_forward.20} parent=0 // pred_check_branch
    %11 = sbr.rel (0) target = $region5
  $region4: #{mlem_cnn_forward.20} parent=0 // pred_region
    _
  $region5: #{mlem_cnn_forward.20} parent=0 // pred_fallthru
    _
  // Predicated region
  $region6: #{mlem_cnn_forward.20} parent=0 // pred_check
    _
  $region7: #{mlem_cnn_forward.20} parent=0 // pred_check_branch
    %13 = sbr.rel (0) target = $region9
  $region8: #{mlem_cnn_forward.20} parent=0 // pred_region
    _
  $region9: #{mlem_cnn_forward.20} parent=0 // pred_fallthru
    _
  // Predicated region
  $region10: #{mlem_cnn_forward.20} parent=0 // pred_check
    _
  $region11: #{mlem_cnn_forward.20} parent=0 // pred_check_branch
    %15 = sbr.rel (0) target = $region13
  $region12: #{mlem_cnn_forward.20} parent=0 // pred_region
    _
  $region13: #{mlem_cnn_forward.20} parent=0 // pred_fallthru
    _
  // Predicated region
  $region14: #{mlem_cnn_forward.20} parent=0 // pred_check
    _
  $region15: #{mlem_cnn_forward.20} parent=0 // pred_check_branch
    %17 = sbr.rel (0) target = $region17
  $region16: #{mlem_cnn_forward.20} parent=0 // pred_region
    _
  $region17: #{mlem_cnn_forward.20} parent=0 // pred_fallthru
    _
  %v19 = vld [vmem:[%s0] sm:$0xff]
  %v20 = vld [vmem:[%s0 + $0x8] sm:$0xff]
  %v21 = vld [vmem:[%s1] sm:$0xff]
  %v22 = vld [vmem:[%s1 + $0x8] sm:$0xff]
  %v23 = vld [vmem:[%s1 + $0x10] sm:$0xff]
  %v24 = vld [vmem:[%s1 + $0x18] sm:$0xff]
  %v25 = vld [vmem:[%s1 + $0x20] sm:$0xff]
  %v26 = vld [vmem:[%s1 + $0x28] sm:$0xff]
  %v27 = vld [vmem:[%s1 + $0x30] sm:$0xff]
  %v28 = vld [vmem:[%s1 + $0x38] sm:$0xff]
  %v29 = vld [vmem:[%s1 + $0x40] sm:$0xff]
  %v30 = vld [vmem:[%s1 + $0x48] sm:$0xff]
  %v31 = vld [vmem:[%s1 + $0x50] sm:$0xff]
  %v32 = vld [vmem:[%s1 + $0x58] sm:$0xff]
  %v33 = vld [vmem:[%s1 + $0x60] sm:$0xff]
  %v34 = vld [vmem:[%s1 + $0x68] sm:$0xff]
  %v35 = vld [vmem:[%s1 + $0x70] sm:$0xff]
  %v36 = vld [vmem:[%s1 + $0x78] sm:$0xff]
  %v37 = vld [vmem:[%s1 + $0x80] sm:$0xff]
  %v38 = vld [vmem:[%s1 + $0x88] sm:$0xff]
  %v39 = vld [vmem:[%s1 + $0x90] sm:$0xff]
  %v40 = vld [vmem:[%s1 + $0x98] sm:$0xff]
  %v41 = vld [vmem:[%s1 + $0xa0] sm:$0xff]
  %v42 = vld [vmem:[%s1 + $0xa8] sm:$0xff]
  %v43 = vld [vmem:[%s1 + $0xb0] sm:$0xff]
  %v44 = vld [vmem:[%s1 + $0xb8] sm:$0xff]
  %v45 = vld [vmem:[%s1 + $0xc0] sm:$0xff]
  %v46 = vld [vmem:[%s1 + $0xc8] sm:$0xff]
  %v47 = vld [vmem:[%s1 + $0xd0] sm:$0xff]
  %v48 = vld [vmem:[%s1 + $0xd8] sm:$0xff]
  %v49 = vld [vmem:[%s1 + $0xe0] sm:$0xff]
  %v50 = vld [vmem:[%s1 + $0xe8] sm:$0xff]
  %v51 = vld [vmem:[%s1 + $0xf0] sm:$0xff]
  %v52 = vld [vmem:[%s1 + $0xf8] sm:$0xff]
  %v53 = vld [vmem:[%s1 + $0x100] sm:$0xff]
  %v54 = vld [vmem:[%s1 + $0x108] sm:$0xff]
  %v55 = vld [vmem:[%s1 + $0x110] sm:$0xff]
  %v56 = vld [vmem:[%s1 + $0x118] sm:$0xff]
  %v57 = vld [vmem:[%s1 + $0x120] sm:$0xff]
  %v58 = vld [vmem:[%s1 + $0x128] sm:$0xff]
  %v59 = vld [vmem:[%s1 + $0x130] sm:$0xff]
  %v60 = vld [vmem:[%s1 + $0x138] sm:$0xff]
  %v61 = vld [vmem:[%s1 + $0x140] sm:$0xff]
  %v62 = vld [vmem:[%s1 + $0x148] sm:$0xff]
  %v63 = vld [vmem:[%s1 + $0x150] sm:$0xff]
  %v64 = vld [vmem:[%s1 + $0x158] sm:$0xff]
  %v65 = vld [vmem:[%s1 + $0x160] sm:$0xff]
  %v66 = vld [vmem:[%s1 + $0x168] sm:$0xff]
  %v67 = vld [vmem:[%s1 + $0x170] sm:$0xff]
  %v68 = vld [vmem:[%s1 + $0x178] sm:$0xff]
  %v69 = vld [vmem:[%s1 + $0x180] sm:$0xff]
  %v70 = vld [vmem:[%s1 + $0x188] sm:$0xff]
  %v71 = vld [vmem:[%s2] sm:$0xff]
  %73 = vset.pattern.permute.xlu0 0
  %74 = vperm.xlu0 %73, %v71
  %v75 = vpop.permute.xlu0 %74
  %v79 = vunpack.c.l.b16 %v19
  %v80 = vunpack.c.h.b16 %v19
  %v81 = vunpack.c.l.b16 %v20
  %v82 = vunpack.c.h.b16 %v20
  %v83 = vpack.c.b16 %v79, %v79
  %v84 = vpack.c.b16 %v80, %v80
  %v85 = vpack.c.b16 %v81, %v81
  %v86 = vpack.c.b16 %v82, %v82
  %v140 = vunpack.c.l.b16 %v21
  %v141 = vunpack.c.h.b16 %v21
  %v142 = vunpack.c.l.b16 %v22
  %v143 = vunpack.c.h.b16 %v22
  %v144 = vunpack.c.l.b16 %v23
  %v145 = vunpack.c.h.b16 %v23
  %v146 = vunpack.c.l.b16 %v24
  %v147 = vunpack.c.h.b16 %v24
  %v148 = vunpack.c.l.b16 %v25
  %v149 = vunpack.c.h.b16 %v25
  %v150 = vunpack.c.l.b16 %v26
  %v151 = vunpack.c.h.b16 %v26
  %v152 = vunpack.c.l.b16 %v27
  %v153 = vunpack.c.h.b16 %v27
  %v154 = vunpack.c.l.b16 %v28
  %v155 = vunpack.c.h.b16 %v28
  %v156 = vunpack.c.l.b16 %v29
  %v157 = vunpack.c.h.b16 %v29
  %v158 = vunpack.c.l.b16 %v30
  %v159 = vunpack.c.h.b16 %v30
  %v160 = vunpack.c.l.b16 %v31
  %v161 = vunpack.c.h.b16 %v31
  %v162 = vunpack.c.l.b16 %v32
  %v163 = vunpack.c.h.b16 %v32
  %v164 = vunpack.c.l.b16 %v33
  %v165 = vunpack.c.h.b16 %v33
  %v166 = vunpack.c.l.b16 %v34
  %v167 = vunpack.c.h.b16 %v34
  %v168 = vunpack.c.l.b16 %v35
  %v169 = vunpack.c.h.b16 %v35
  %v170 = vunpack.c.l.b16 %v36
  %v171 = vunpack.c.h.b16 %v36
  %v172 = vunpack.c.l.b16 %v37
  %v173 = vunpack.c.h.b16 %v37
  %v174 = vunpack.c.l.b16 %v38
  %v175 = vunpack.c.h.b16 %v38
  %v176 = vunpack.c.l.b16 %v39
  %v177 = vunpack.c.h.b16 %v39
  %v178 = vunpack.c.l.b16 %v40
  %v179 = vunpack.c.h.b16 %v40
  %v180 = vunpack.c.l.b16 %v41
  %v181 = vunpack.c.h.b16 %v41
  %v182 = vunpack.c.l.b16 %v42
  %v183 = vunpack.c.h.b16 %v42
  %v184 = vunpack.c.l.b16 %v43
  %v185 = vunpack.c.h.b16 %v43
  %v186 = vunpack.c.l.b16 %v44
  %v187 = vunpack.c.h.b16 %v44
  %v188 = vunpack.c.l.b16 %v45
  %v189 = vunpack.c.h.b16 %v45
  %v190 = vunpack.c.l.b16 %v46
  %v191 = vunpack.c.h.b16 %v46
  %v192 = vunpack.c.l.b16 %v47
  %v193 = vunpack.c.h.b16 %v47
  %v194 = vunpack.c.l.b16 %v48
  %v195 = vunpack.c.h.b16 %v48
  %v196 = vunpack.c.l.b16 %v49
  %v197 = vunpack.c.h.b16 %v49
  %v198 = vunpack.c.l.b16 %v50
  %v199 = vunpack.c.h.b16 %v50
  %v200 = vunpack.c.l.b16 %v51
  %v201 = vunpack.c.h.b16 %v51
  %v202 = vunpack.c.l.b16 %v52
  %v203 = vunpack.c.h.b16 %v52
  %v204 = vunpack.c.l.b16 %v53
  %v205 = vunpack.c.h.b16 %v53
  %v206 = vunpack.c.l.b16 %v54
  %v207 = vunpack.c.h.b16 %v54
  %v208 = vunpack.c.l.b16 %v55
  %v209 = vunpack.c.h.b16 %v55
  %v210 = vunpack.c.l.b16 %v56
  %v211 = vunpack.c.h.b16 %v56
  %v212 = vunpack.c.l.b16 %v57
  %v213 = vunpack.c.h.b16 %v57
  %v214 = vunpack.c.l.b16 %v58
  %v215 = vunpack.c.h.b16 %v58
  %v216 = vunpack.c.l.b16 %v59
  %v217 = vunpack.c.h.b16 %v59
  %v218 = vunpack.c.l.b16 %v60
  %v219 = vunpack.c.h.b16 %v60
  %v220 = vunpack.c.l.b16 %v61
  %v221 = vunpack.c.h.b16 %v61
  %v222 = vunpack.c.l.b16 %v62
  %v223 = vunpack.c.h.b16 %v62
  %v224 = vunpack.c.l.b16 %v63
  %v225 = vunpack.c.h.b16 %v63
  %v226 = vunpack.c.l.b16 %v64
  %v227 = vunpack.c.h.b16 %v64
  %v228 = vunpack.c.l.b16 %v65
  %v229 = vunpack.c.h.b16 %v65
  %v230 = vunpack.c.l.b16 %v66
  %v231 = vunpack.c.h.b16 %v66
  %v232 = vunpack.c.l.b16 %v67
  %v233 = vunpack.c.h.b16 %v67
  %v234 = vunpack.c.l.b16 %v68
  %v235 = vunpack.c.h.b16 %v68
  %v236 = vunpack.c.l.b16 %v69
  %v237 = vunpack.c.h.b16 %v69
  %v238 = vunpack.c.l.b16 %v70
  %v239 = vunpack.c.h.b16 %v70
  %v240 = vpack.c.b16 %v142, %v140
  %v241 = vpack.c.b16 %v143, %v141
  %v242 = vpack.c.b16 %v146, %v144
  %v243 = vpack.c.b16 %v147, %v145
  %v244 = vpack.c.b16 %v150, %v148
  %v245 = vpack.c.b16 %v151, %v149
  %v246 = vpack.c.b16 %v154, %v152
  %v247 = vpack.c.b16 %v155, %v153
  %v248 = vpack.c.b16 %v158, %v156
  %v249 = vpack.c.b16 %v159, %v157
  %v250 = vpack.c.b16 %v162, %v160
  %v251 = vpack.c.b16 %v163, %v161
  %v252 = vpack.c.b16 %v166, %v164
  %v253 = vpack.c.b16 %v167, %v165
  %v254 = vpack.c.b16 %v170, %v168
  %v255 = vpack.c.b16 %v171, %v169
  %v256 = vpack.c.b16 %v174, %v172
  %v257 = vpack.c.b16 %v175, %v173
  %v258 = vpack.c.b16 %v178, %v176
  %v259 = vpack.c.b16 %v179, %v177
  %v260 = vpack.c.b16 %v182, %v180
  %v261 = vpack.c.b16 %v183, %v181
  %v262 = vpack.c.b16 %v186, %v184
  %v263 = vpack.c.b16 %v187, %v185
  %v264 = vpack.c.b16 %v190, %v188
  %v265 = vpack.c.b16 %v191, %v189
  %v266 = vpack.c.b16 %v194, %v192
  %v267 = vpack.c.b16 %v195, %v193
  %v268 = vpack.c.b16 %v198, %v196
  %v269 = vpack.c.b16 %v199, %v197
  %v270 = vpack.c.b16 %v202, %v200
  %v271 = vpack.c.b16 %v203, %v201
  %v272 = vpack.c.b16 %v206, %v204
  %v273 = vpack.c.b16 %v207, %v205
  %v274 = vpack.c.b16 %v210, %v208
  %v275 = vpack.c.b16 %v211, %v209
  %v276 = vpack.c.b16 %v214, %v212
  %v277 = vpack.c.b16 %v215, %v213
  %v278 = vpack.c.b16 %v218, %v216
  %v279 = vpack.c.b16 %v219, %v217
  %v280 = vpack.c.b16 %v222, %v220
  %v281 = vpack.c.b16 %v223, %v221
  %v282 = vpack.c.b16 %v226, %v224
  %v283 = vpack.c.b16 %v227, %v225
  %v284 = vpack.c.b16 %v230, %v228
  %v285 = vpack.c.b16 %v231, %v229
  %v286 = vpack.c.b16 %v234, %v232
  %v287 = vpack.c.b16 %v235, %v233
  %v288 = vpack.c.b16 %v238, %v236
  %v289 = vpack.c.b16 %v239, %v237
  %vm340 = vcmask 130048
  %v342 = vsel %vm340, %v86, 0
  %344 = vmatprep.subr.bf16.mxu0 %v255
  %345 = vmatpush1.bf16.msra.mxu0 %v254
  %346 = vmatprep.subr.bf16.mxu0 %v253
  %347 = vmatpush1.bf16.msra.mxu0 %v252
  %348 = vmatprep.subr.bf16.mxu0 %v251
  %349 = vmatpush1.bf16.msra.mxu0 %v250
  %350 = vmatprep.subr.bf16.mxu0 %v249
  %351 = vmatpush1.bf16.msra.mxu0 %v248
  %352 = vmatprep.subr.bf16.mxu0 %v247
  %353 = vmatpush1.bf16.msra.mxu0 %v246
  %354 = vmatprep.subr.bf16.mxu0 %v245
  %355 = vmatpush1.bf16.msra.mxu0 %v244
  %356 = vmatprep.subr.bf16.mxu0 %v243
  %357 = vmatpush1.bf16.msra.mxu0 %v242
  %358 = vmatprep.subr.bf16.mxu0 %v241
  %359 = vmatpush1.bf16.msra.mxu0 %v240
  %360 = vmatprep.subr.bf16.mxu0 %v271
  %361 = vmatpush2.bf16.msra.mxu0 %v270
  %362 = vmatprep.subr.bf16.mxu0 %v269
  %363 = vmatpush2.bf16.msra.mxu0 %v268
  %364 = vmatprep.subr.bf16.mxu0 %v267
  %365 = vmatpush2.bf16.msra.mxu0 %v266
  %366 = vmatprep.subr.bf16.mxu0 %v265
  %367 = vmatpush2.bf16.msra.mxu0 %v264
  %368 = vmatprep.subr.bf16.mxu0 %v263
  %369 = vmatpush2.bf16.msra.mxu0 %v262
  %370 = vmatprep.subr.bf16.mxu0 %v261
  %371 = vmatpush2.bf16.msra.mxu0 %v260
  %372 = vmatprep.subr.bf16.mxu0 %v259
  %373 = vmatpush2.bf16.msra.mxu0 %v258
  %374 = vmatprep.subr.bf16.mxu0 %v257
  %375 = vmatpush2.bf16.msra.mxu0 %v256
  %376 = vmatprep.mubr.bf16.mxu0 %v84
  %377 = vmatmul.mubr.bf16.gmra.mxu0 %v83
  %v378 = vpop.f32.mrf.mxu0
  %v379 = vadd.f32 %v75, %v378
  %v380 = vpop.f32.mrf.mxu0
  %v381 = vadd.f32 %v75, %v380
  %v382 = vpop.f32.mrf.mxu0
  %v383 = vpop.f32.mrf.mxu0
  %384 = vdwg.mxu0
  %385 = vmatprep.subr.bf16.mxu0 %v287
  %386 = vmatpush1.bf16.msra.mxu0 %v286
  %387 = vmatprep.subr.bf16.mxu0 %v285
  %388 = vmatpush1.bf16.msra.mxu0 %v284
  %389 = vmatprep.subr.bf16.mxu0 %v283
  %390 = vmatpush1.bf16.msra.mxu0 %v282
  %391 = vmatprep.subr.bf16.mxu0 %v281
  %392 = vmatpush1.bf16.msra.mxu0 %v280
  %393 = vmatprep.subr.bf16.mxu0 %v279
  %394 = vmatpush1.bf16.msra.mxu0 %v278
  %395 = vmatprep.subr.bf16.mxu0 %v277
  %396 = vmatpush1.bf16.msra.mxu0 %v276
  %397 = vmatprep.subr.bf16.mxu0 %v275
  %398 = vmatpush1.bf16.msra.mxu0 %v274
  %399 = vmatprep.subr.bf16.mxu0 %v273
  %400 = vmatpush1.bf16.msra.mxu0 %v272
  %401 = vmatprep.subr.bf16.mxu0 0
  %402 = vmatpush2.bf16.msra.mxu0 0
  %403 = vmatprep.subr.bf16.mxu0 0
  %404 = vmatpush2.bf16.msra.mxu0 0
  %405 = vmatprep.subr.bf16.mxu0 0
  %406 = vmatpush2.bf16.msra.mxu0 0
  %407 = vmatprep.subr.bf16.mxu0 0
  %408 = vmatpush2.bf16.msra.mxu0 0
  %409 = vmatprep.subr.bf16.mxu0 0
  %410 = vmatpush2.bf16.msra.mxu0 0
  %411 = vmatprep.subr.bf16.mxu0 0
  %412 = vmatpush2.bf16.msra.mxu0 0
  %413 = vmatprep.subr.bf16.mxu0 0
  %414 = vmatpush2.bf16.msra.mxu0 0
  %415 = vmatprep.subr.bf16.mxu0 %v289
  %416 = vmatpush2.bf16.msra.mxu0 %v288
  %417 = vmatprep.mubr.bf16.mxu0 %v342
  %418 = vmatmul.mubr.bf16.gmra.mxu0 %v85
  %v419 = vpop.f32.mrf.mxu0
  %v420 = vadd.f32 %v379, %v419
  %v421 = vpop.f32.mrf.mxu0
  %v422 = vadd.f32 %v381, %v421
  %v423 = vpop.f32.mrf.mxu0
  %v424 = vpop.f32.mrf.mxu0
  %425 = vdwg.mxu0
  %s426 = sld [smem:[#allocation2]]
  %vm427 = vcmp.ge.f32.partialorder %v420, 0.0
  %vm428 = vcmp.ge.f32.partialorder %v422, 0.0
  %v429 = vstv %s426
  %v430 = vmul.f32 %v429, %v420
  %v431 = vmul.f32 %v429, %v422
  %v432 = vsel %vm427, %v420, %v430
  %v433 = vsel %vm428, %v422, %v431
  %434 = vst [vmem:[%s4] sm:$0xff] %v432
  %435 = vst [vmem:[%s4 + $0x8] sm:$0xff] %v433
  // Predicated region
  $region18: #{mlem_cnn_forward.20} parent=0 // pred_check
    _
  $region19: #{mlem_cnn_forward.20} parent=0 // pred_check_branch
    %437 = sbr.rel (0) target = $region21
  $region20: #{mlem_cnn_forward.20} parent=0 // pred_region
    _
  $region21: #{mlem_cnn_forward.20} parent=0 // pred_fallthru
    _
  // Predicated region
  $region22: #{mlem_cnn_forward.20} parent=0 // pred_check
    _
  $region23: #{mlem_cnn_forward.20} parent=0 // pred_check_branch
    %439 = sbr.rel (0) target = $region25
  $region24: #{mlem_cnn_forward.20} parent=0 // pred_region
    _
  $region25: #{mlem_cnn_forward.20} parent=0 // pred_fallthru
    _

// kernel: mlem_cnn_forward.23
$region0: #{mlem_cnn_forward.23}
  #allocation0 [shape = 'u32[]', space=smem, size = 0x4, offset = 0x4, fixed_abs, tag = 'smem constant byte address 0x4 - core index']
  #allocation1 [shape = 'u32[144,128]{1,0:T(1,128)}', space=vmem, size = 0x12000, scoped, tag = 'internal scratch']
  #allocation2 [shape = 'f32[1,1]{1,0:T(1,128)S(1)}', space=vmem, size = 0x200, scoped, tag = 'scoped memory for mlem_cnn_forward.23']
  #allocation3 [shape = 'f32[1]{0:T(128)S(6)}', space=smem, size = 0x200, scoped, tag = 'scoped memory for mlem_cnn_forward.23']
  %s0 = inlined_call_operand.vmem [shape: bf16[1,400], index: 0, kind: input, shape index: {}]
  %s1 = inlined_call_operand.vmem [shape: bf16[400,256], index: 1, kind: input, shape index: {}]
  %s2 = inlined_call_operand.<no memory space> [shape: f32[1,1], index: 2, kind: input, shape index: {}]
  %s3 = inlined_call_operand.<no memory space> [shape: f32[1], index: 3, kind: input, shape index: {}]
  %s4 = inlined_call_operand.vmem [shape: f32[1,256], index: 4, kind: input, shape index: {}]
  %s5 = inlined_call_operand.vmem [shape: f32[1,256], index: 5, kind: output, shape index: {}]
  %s6 = sld [smem:[#allocation0]]
  $region30: #{mlem_cnn_forward.23} parent=0
    _
  %s8 = ssub.s32 1, %s6
  %s9 = scalar_select 0, %s8, %s6
  %v10 = vstv %s2
  %11 = vst [vmem:[#allocation2] sm:$0x1] %v10
  %12 = sst [smem:[#allocation3]] %s3
  // Predicated region
  $region2: #{mlem_cnn_forward.23} parent=0 // pred_check
    _
  $region3: #{mlem_cnn_forward.23} parent=0 // pred_check_branch
    %14 = sbr.rel (0) target = $region5
  $region4: #{mlem_cnn_forward.23} parent=0 // pred_region
    _
  $region5: #{mlem_cnn_forward.23} parent=0 // pred_fallthru
    _
  // Predicated region
  $region6: #{mlem_cnn_forward.23} parent=0 // pred_check
    _
  $region7: #{mlem_cnn_forward.23} parent=0 // pred_check_branch
    %16 = sbr.rel (0) target = $region9
  $region8: #{mlem_cnn_forward.23} parent=0 // pred_region
    _
  $region9: #{mlem_cnn_forward.23} parent=0 // pred_fallthru
    _
  // Predicated region
  $region10: #{mlem_cnn_forward.23} parent=0 // pred_check
    _
  $region11: #{mlem_cnn_forward.23} parent=0 // pred_check_branch
    %18 = sbr.rel (0) target = $region13
  $region12: #{mlem_cnn_forward.23} parent=0 // pred_region
    _
  $region13: #{mlem_cnn_forward.23} parent=0 // pred_fallthru
    _
  // Predicated region
  $region14: #{mlem_cnn_forward.23} parent=0 // pred_check
    _
  $region15: #{mlem_cnn_forward.23} parent=0 // pred_check_branch
    %20 = sbr.rel (0) target = $region17
  $region16: #{mlem_cnn_forward.23} parent=0 // pred_region
    _
  $region17: #{mlem_cnn_forward.23} parent=0 // pred_fallthru
    _
  // Predicated region
  $region18: #{mlem_cnn_forward.23} parent=0 // pred_check
    _
  $region19: #{mlem_cnn_forward.23} parent=0 // pred_check_branch
    %22 = sbr.rel (0) target = $region21
  $region20: #{mlem_cnn_forward.23} parent=0 // pred_region
    _
  $region21: #{mlem_cnn_forward.23} parent=0 // pred_fallthru
    _
  %v24 = vld [vmem:[%s0] sm:$0xf]
  %v25 = vld [vmem:[%s1] sm:$0xff]
  %v26 = vld [vmem:[%s1 + $0x8] sm:$0xff]
  %v27 = vld [vmem:[%s1 + $0x10] sm:$0xff]
  %v28 = vld [vmem:[%s1 + $0x18] sm:$0xff]
  %v29 = vld [vmem:[%s1 + $0x20] sm:$0xff]
  %v30 = vld [vmem:[%s1 + $0x28] sm:$0xff]
  %v31 = vld [vmem:[%s1 + $0x30] sm:$0xff]
  %v32 = vld [vmem:[%s1 + $0x38] sm:$0xff]
  %v33 = vld [vmem:[%s1 + $0x40] sm:$0xff]
  %v34 = vld [vmem:[%s1 + $0x48] sm:$0xff]
  %v35 = vld [vmem:[%s1 + $0x50] sm:$0xff]
  %v36 = vld [vmem:[%s1 + $0x58] sm:$0xff]
  %v37 = vld [vmem:[%s1 + $0x60] sm:$0xff]
  %v38 = vld [vmem:[%s1 + $0x68] sm:$0xff]
  %v39 = vld [vmem:[%s1 + $0x70] sm:$0xff]
  %v40 = vld [vmem:[%s1 + $0x78] sm:$0xff]
  %v41 = vld [vmem:[%s1 + $0x80] sm:$0xff]
  %v42 = vld [vmem:[%s1 + $0x88] sm:$0xff]
  %v43 = vld [vmem:[%s1 + $0x90] sm:$0xff]
  %v44 = vld [vmem:[%s1 + $0x98] sm:$0xff]
  %v45 = vld [vmem:[%s1 + $0xa0] sm:$0xff]
  %v46 = vld [vmem:[%s1 + $0xa8] sm:$0xff]
  %v47 = vld [vmem:[%s1 + $0xb0] sm:$0xff]
  %v48 = vld [vmem:[%s1 + $0xb8] sm:$0xff]
  %v49 = vld [vmem:[%s1 + $0xc0] sm:$0xff]
  %v50 = vld [vmem:[%s1 + $0xc8] sm:$0xff]
  %v51 = vld [vmem:[%s1 + $0xd0] sm:$0xff]
  %v52 = vld [vmem:[%s1 + $0xd8] sm:$0xff]
  %v53 = vld [vmem:[%s1 + $0xe0] sm:$0xff]
  %v54 = vld [vmem:[%s1 + $0xe8] sm:$0xff]
  %v55 = vld [vmem:[%s1 + $0xf0] sm:$0xff]
  %v56 = vld [vmem:[%s1 + $0xf8] sm:$0xff]
  %v57 = vld [vmem:[%s1 + $0x100] sm:$0xff]
  %v58 = vld [vmem:[%s1 + $0x108] sm:$0xff]
  %v59 = vld [vmem:[%s1 + $0x110] sm:$0xff]
  %v60 = vld [vmem:[%s1 + $0x118] sm:$0xff]
  %v61 = vld [vmem:[%s1 + $0x120] sm:$0xff]
  %v62 = vld [vmem:[%s1 + $0x128] sm:$0xff]
  %v63 = vld [vmem:[%s1 + $0x130] sm:$0xff]
  %v64 = vld [vmem:[%s1 + $0x138] sm:$0xff]
  %v65 = vld [vmem:[%s1 + $0x140] sm:$0xff]
  %v66 = vld [vmem:[%s1 + $0x148] sm:$0xff]
  %v67 = vld [vmem:[%s1 + $0x150] sm:$0xff]
  %v68 = vld [vmem:[%s1 + $0x158] sm:$0xff]
  %v69 = vld [vmem:[%s1 + $0x160] sm:$0xff]
  %v70 = vld [vmem:[%s1 + $0x168] sm:$0xff]
  %v71 = vld [vmem:[%s1 + $0x170] sm:$0xff]
  %v72 = vld [vmem:[%s1 + $0x178] sm:$0xff]
  %v73 = vld [vmem:[%s1 + $0x180] sm:$0xff]
  %v74 = vld [vmem:[%s1 + $0x188] sm:$0xff]
  %v75 = vld [vmem:[#allocation2] sm:$0x1]
  %77 = vset.pattern.permute.xlu0 0
  %78 = vperm.xlu0 %77, %v75
  %v79 = vpop.permute.xlu0 %78
  %v81 = vlaneseq
  %v82 = vshrl.u32 %v81, 7
  %v83 = vsub.s32 0, %v82
  %v84 = vrot.slane %v79, %v83
  %v87 = vunpack.c.l.s4 1966171168
  %v88 = vunpack.c.0.s8 %v87
  %v89 = vlaneseq
  %v90 = vshrl.u32 %v89, 7
  %v91 = vsub.s32 %v88, %v90
  %v92 = vrot.slane %v24, %v91
  %v93 = vcombine.high %v92, %v92
  %v95 = vunpack.c.l.s4 1966171168
  %v96 = vunpack.c.0.s8 %v95
  %v97 = vlaneseq
  %v98 = vshrl.u32 %v97, 7
  %v99 = vsub.s32 %v96, %v98
  %v100 = vrot.slane %v92, %v99
  %v102 = vunpack.c.l.s4 1966171168
  %v103 = vunpack.c.0.s8 %v102
  %v104 = vlaneseq
  %v105 = vshrl.u32 %v104, 7
  %v106 = vsub.s32 %v103, %v105
  %v107 = vrot.slane %v93, %v106
  %v108 = vcombine.high %v100, %v100
  %v109 = vcombine.high %v107, %v107
  %v163 = vunpack.c.l.b16 %v25
  %v164 = vunpack.c.h.b16 %v25
  %v165 = vunpack.c.l.b16 %v26
  %v166 = vunpack.c.h.b16 %v26
  %v167 = vunpack.c.l.b16 %v27
  %v168 = vunpack.c.h.b16 %v27
  %v169 = vunpack.c.l.b16 %v28
  %v170 = vunpack.c.h.b16 %v28
  %v171 = vunpack.c.l.b16 %v29
  %v172 = vunpack.c.h.b16 %v29
  %v173 = vunpack.c.l.b16 %v30
  %v174 = vunpack.c.h.b16 %v30
  %v175 = vunpack.c.l.b16 %v31
  %v176 = vunpack.c.h.b16 %v31
  %v177 = vunpack.c.l.b16 %v32
  %v178 = vunpack.c.h.b16 %v32
  %v179 = vunpack.c.l.b16 %v33
  %v180 = vunpack.c.h.b16 %v33
  %v181 = vunpack.c.l.b16 %v34
  %v182 = vunpack.c.h.b16 %v34
  %v183 = vunpack.c.l.b16 %v35
  %v184 = vunpack.c.h.b16 %v35
  %v185 = vunpack.c.l.b16 %v36
  %v186 = vunpack.c.h.b16 %v36
  %v187 = vunpack.c.l.b16 %v37
  %v188 = vunpack.c.h.b16 %v37
  %v189 = vunpack.c.l.b16 %v38
  %v190 = vunpack.c.h.b16 %v38
  %v191 = vunpack.c.l.b16 %v39
  %v192 = vunpack.c.h.b16 %v39
  %v193 = vunpack.c.l.b16 %v40
  %v194 = vunpack.c.h.b16 %v40
  %v195 = vunpack.c.l.b16 %v41
  %v196 = vunpack.c.h.b16 %v41
  %v197 = vunpack.c.l.b16 %v42
  %v198 = vunpack.c.h.b16 %v42
  %v199 = vunpack.c.l.b16 %v43
  %v200 = vunpack.c.h.b16 %v43
  %v201 = vunpack.c.l.b16 %v44
  %v202 = vunpack.c.h.b16 %v44
  %v203 = vunpack.c.l.b16 %v45
  %v204 = vunpack.c.h.b16 %v45
  %v205 = vunpack.c.l.b16 %v46
  %v206 = vunpack.c.h.b16 %v46
  %v207 = vunpack.c.l.b16 %v47
  %v208 = vunpack.c.h.b16 %v47
  %v209 = vunpack.c.l.b16 %v48
  %v210 = vunpack.c.h.b16 %v48
  %v211 = vunpack.c.l.b16 %v49
  %v212 = vunpack.c.h.b16 %v49
  %v213 = vunpack.c.l.b16 %v50
  %v214 = vunpack.c.h.b16 %v50
  %v215 = vunpack.c.l.b16 %v51
  %v216 = vunpack.c.h.b16 %v51
  %v217 = vunpack.c.l.b16 %v52
  %v218 = vunpack.c.h.b16 %v52
  %v219 = vunpack.c.l.b16 %v53
  %v220 = vunpack.c.h.b16 %v53
  %v221 = vunpack.c.l.b16 %v54
  %v222 = vunpack.c.h.b16 %v54
  %v223 = vunpack.c.l.b16 %v55
  %v224 = vunpack.c.h.b16 %v55
  %v225 = vunpack.c.l.b16 %v56
  %v226 = vunpack.c.h.b16 %v56
  %v227 = vunpack.c.l.b16 %v57
  %v228 = vunpack.c.h.b16 %v57
  %v229 = vunpack.c.l.b16 %v58
  %v230 = vunpack.c.h.b16 %v58
  %v231 = vunpack.c.l.b16 %v59
  %v232 = vunpack.c.h.b16 %v59
  %v233 = vunpack.c.l.b16 %v60
  %v234 = vunpack.c.h.b16 %v60
  %v235 = vunpack.c.l.b16 %v61
  %v236 = vunpack.c.h.b16 %v61
  %v237 = vunpack.c.l.b16 %v62
  %v238 = vunpack.c.h.b16 %v62
  %v239 = vunpack.c.l.b16 %v63
  %v240 = vunpack.c.h.b16 %v63
  %v241 = vunpack.c.l.b16 %v64
  %v242 = vunpack.c.h.b16 %v64
  %v243 = vunpack.c.l.b16 %v65
  %v244 = vunpack.c.h.b16 %v65
  %v245 = vunpack.c.l.b16 %v66
  %v246 = vunpack.c.h.b16 %v66
  %v247 = vunpack.c.l.b16 %v67
  %v248 = vunpack.c.h.b16 %v67
  %v249 = vunpack.c.l.b16 %v68
  %v250 = vunpack.c.h.b16 %v68
  %v251 = vunpack.c.l.b16 %v69
  %v252 = vunpack.c.h.b16 %v69
  %v253 = vunpack.c.l.b16 %v70
  %v254 = vunpack.c.h.b16 %v70
  %v255 = vunpack.c.l.b16 %v71
  %v256 = vunpack.c.h.b16 %v71
  %v257 = vunpack.c.l.b16 %v72
  %v258 = vunpack.c.h.b16 %v72
  %v259 = vunpack.c.l.b16 %v73
  %v260 = vunpack.c.h.b16 %v73
  %v261 = vunpack.c.l.b16 %v74
  %v262 = vunpack.c.h.b16 %v74
  %v263 = vpack.c.b16 %v165, %v163
  %v264 = vpack.c.b16 %v166, %v164
  %v265 = vpack.c.b16 %v169, %v167
  %v266 = vpack.c.b16 %v170, %v168
  %v267 = vpack.c.b16 %v173, %v171
  %v268 = vpack.c.b16 %v174, %v172
  %v269 = vpack.c.b16 %v177, %v175
  %v270 = vpack.c.b16 %v178, %v176
  %v271 = vpack.c.b16 %v181, %v179
  %v272 = vpack.c.b16 %v182, %v180
  %v273 = vpack.c.b16 %v185, %v183
  %v274 = vpack.c.b16 %v186, %v184
  %v275 = vpack.c.b16 %v189, %v187
  %v276 = vpack.c.b16 %v190, %v188
  %v277 = vpack.c.b16 %v193, %v191
  %v278 = vpack.c.b16 %v194, %v192
  %v279 = vpack.c.b16 %v197, %v195
  %v280 = vpack.c.b16 %v198, %v196
  %v281 = vpack.c.b16 %v201, %v199
  %v282 = vpack.c.b16 %v202, %v200
  %v283 = vpack.c.b16 %v205, %v203
  %v284 = vpack.c.b16 %v206, %v204
  %v285 = vpack.c.b16 %v209, %v207
  %v286 = vpack.c.b16 %v210, %v208
  %v287 = vpack.c.b16 %v213, %v211
  %v288 = vpack.c.b16 %v214, %v212
  %v289 = vpack.c.b16 %v217, %v215
  %v290 = vpack.c.b16 %v218, %v216
  %v291 = vpack.c.b16 %v221, %v219
  %v292 = vpack.c.b16 %v222, %v220
  %v293 = vpack.c.b16 %v225, %v223
  %v294 = vpack.c.b16 %v226, %v224
  %v295 = vpack.c.b16 %v229, %v227
  %v296 = vpack.c.b16 %v230, %v228
  %v297 = vpack.c.b16 %v233, %v231
  %v298 = vpack.c.b16 %v234, %v232
  %v299 = vpack.c.b16 %v237, %v235
  %v300 = vpack.c.b16 %v238, %v236
  %v301 = vpack.c.b16 %v241, %v239
  %v302 = vpack.c.b16 %v242, %v240
  %v303 = vpack.c.b16 %v245, %v243
  %v304 = vpack.c.b16 %v246, %v244
  %v305 = vpack.c.b16 %v249, %v247
  %v306 = vpack.c.b16 %v250, %v248
  %v307 = vpack.c.b16 %v253, %v251
  %v308 = vpack.c.b16 %v254, %v252
  %v309 = vpack.c.b16 %v257, %v255
  %v310 = vpack.c.b16 %v258, %v256
  %v311 = vpack.c.b16 %v261, %v259
  %v312 = vpack.c.b16 %v262, %v260
  %vm363 = vcmask 130048
  %v365 = vsel %vm363, %v109, 0
  %367 = vmatprep.subr.bf16.mxu0 %v278
  %368 = vmatpush1.bf16.msra.mxu0 %v277
  %369 = vmatprep.subr.bf16.mxu0 %v276
  %370 = vmatpush1.bf16.msra.mxu0 %v275
  %371 = vmatprep.subr.bf16.mxu0 %v274
  %372 = vmatpush1.bf16.msra.mxu0 %v273
  %373 = vmatprep.subr.bf16.mxu0 %v272
  %374 = vmatpush1.bf16.msra.mxu0 %v271
  %375 = vmatprep.subr.bf16.mxu0 %v270
  %376 = vmatpush1.bf16.msra.mxu0 %v269
  %377 = vmatprep.subr.bf16.mxu0 %v268
  %378 = vmatpush1.bf16.msra.mxu0 %v267
  %379 = vmatprep.subr.bf16.mxu0 %v266
  %380 = vmatpush1.bf16.msra.mxu0 %v265
  %381 = vmatprep.subr.bf16.mxu0 %v264
  %382 = vmatpush1.bf16.msra.mxu0 %v263
  %383 = vmatprep.subr.bf16.mxu0 %v294
  %384 = vmatpush2.bf16.msra.mxu0 %v293
  %385 = vmatprep.subr.bf16.mxu0 %v292
  %386 = vmatpush2.bf16.msra.mxu0 %v291
  %387 = vmatprep.subr.bf16.mxu0 %v290
  %388 = vmatpush2.bf16.msra.mxu0 %v289
  %389 = vmatprep.subr.bf16.mxu0 %v288
  %390 = vmatpush2.bf16.msra.mxu0 %v287
  %391 = vmatprep.subr.bf16.mxu0 %v286
  %392 = vmatpush2.bf16.msra.mxu0 %v285
  %393 = vmatprep.subr.bf16.mxu0 %v284
  %394 = vmatpush2.bf16.msra.mxu0 %v283
  %395 = vmatprep.subr.bf16.mxu0 %v282
  %396 = vmatpush2.bf16.msra.mxu0 %v281
  %397 = vmatprep.subr.bf16.mxu0 %v280
  %398 = vmatpush2.bf16.msra.mxu0 %v279
  %399 = vmatprep.mubr.bf16.mxu0 %v107
  %400 = vmatmul.mubr.bf16.gmra.mxu0 %v100
  %v401 = vpop.f32.mrf.mxu0
  %v402 = vadd.f32 %v84, %v401
  %v403 = vpop.f32.mrf.mxu0
  %v404 = vadd.f32 %v84, %v403
  %v405 = vpop.f32.mrf.mxu0
  %v406 = vpop.f32.mrf.mxu0
  %407 = vdwg.mxu0
  %408 = vmatprep.subr.bf16.mxu0 %v310
  %409 = vmatpush1.bf16.msra.mxu0 %v309
  %410 = vmatprep.subr.bf16.mxu0 %v308
  %411 = vmatpush1.bf16.msra.mxu0 %v307
  %412 = vmatprep.subr.bf16.mxu0 %v306
  %413 = vmatpush1.bf16.msra.mxu0 %v305
  %414 = vmatprep.subr.bf16.mxu0 %v304
  %415 = vmatpush1.bf16.msra.mxu0 %v303
  %416 = vmatprep.subr.bf16.mxu0 %v302
  %417 = vmatpush1.bf16.msra.mxu0 %v301
  %418 = vmatprep.subr.bf16.mxu0 %v300
  %419 = vmatpush1.bf16.msra.mxu0 %v299
  %420 = vmatprep.subr.bf16.mxu0 %v298
  %421 = vmatpush1.bf16.msra.mxu0 %v297
  %422 = vmatprep.subr.bf16.mxu0 %v296
  %423 = vmatpush1.bf16.msra.mxu0 %v295
  %424 = vmatprep.subr.bf16.mxu0 0
  %425 = vmatpush2.bf16.msra.mxu0 0
  %426 = vmatprep.subr.bf16.mxu0 0
  %427 = vmatpush2.bf16.msra.mxu0 0
  %428 = vmatprep.subr.bf16.mxu0 0
  %429 = vmatpush2.bf16.msra.mxu0 0
  %430 = vmatprep.subr.bf16.mxu0 0
  %431 = vmatpush2.bf16.msra.mxu0 0
  %432 = vmatprep.subr.bf16.mxu0 0
  %433 = vmatpush2.bf16.msra.mxu0 0
  %434 = vmatprep.subr.bf16.mxu0 0
  %435 = vmatpush2.bf16.msra.mxu0 0
  %436 = vmatprep.subr.bf16.mxu0 0
  %437 = vmatpush2.bf16.msra.mxu0 0
  %438 = vmatprep.subr.bf16.mxu0 %v312
  %439 = vmatpush2.bf16.msra.mxu0 %v311
  %440 = vmatprep.mubr.bf16.mxu0 %v365
  %441 = vmatmul.mubr.bf16.gmra.mxu0 %v108
  %v442 = vpop.f32.mrf.mxu0
  %v443 = vadd.f32 %v402, %v442
  %v444 = vpop.f32.mrf.mxu0
  %v445 = vadd.f32 %v404, %v444
  %v446 = vpop.f32.mrf.mxu0
  %v447 = vpop.f32.mrf.mxu0
  %448 = vdwg.mxu0
  %s449 = sld [smem:[#allocation3]]
  %vm450 = vcmp.ge.f32.partialorder %v443, 0.0
  %vm451 = vcmp.ge.f32.partialorder %v445, 0.0
  %v452 = vstv %s449
  %v453 = vmul.f32 %v452, %v443
  %v454 = vmul.f32 %v452, %v445
  %v455 = vsel %vm450, %v443, %v453
  %v456 = vsel %vm451, %v445, %v454
  %v457 = vld [vmem:[%s4] sm:$0x3]
  %v460 = vcombine.low %v455, %v456
  %v462 = vunpack.c.l.s4 1966171168
  %v463 = vunpack.c.0.s8 %v462
  %v464 = vlaneseq
  %v465 = vshrl.u32 %v464, 7
  %v466 = vsub.s32 %v463, %v465
  %v467 = vrot.slane %v460, %v466
  %v469 = vunpack.c.l.s4 1966171168
  %v470 = vunpack.c.0.s8 %v469
  %v471 = vlaneseq
  %v472 = vshrl.u32 %v471, 7
  %v473 = vsub.s32 %v470, %v472
  %v474 = vrot.slane %v467, %v473
  %v476 = vadd.f32 %v457, %v474
  %v477 = vand.u32 2147483647, %v476
  %v478 = vlaneseq
  %vm479 = vcmp.ge.s32.totalorder %v478, 0
  %vm480 = vcmp.lt.s32.totalorder %v478, 256
  %vm481 = vmand %vm479, %vm480
  %482 = vst.msk [vmem:[%s5] sm:$0x3] %vm481, %v477
  // Predicated region
  $region22: #{mlem_cnn_forward.23} parent=0 // pred_check
    _
  $region23: #{mlem_cnn_forward.23} parent=0 // pred_check_branch
    %484 = sbr.rel (0) target = $region25
  $region24: #{mlem_cnn_forward.23} parent=0 // pred_region
    _
  $region25: #{mlem_cnn_forward.23} parent=0 // pred_fallthru
    _
  // Predicated region
  $region26: #{mlem_cnn_forward.23} parent=0 // pred_check
    _
  $region27: #{mlem_cnn_forward.23} parent=0 // pred_check_branch
    %486 = sbr.rel (0) target = $region29
  $region28: #{mlem_cnn_forward.23} parent=0 // pred_region
    _
  $region29: #{mlem_cnn_forward.23} parent=0 // pred_fallthru
    _

// kernel: mlem_cnn_forward.24
$region0: #{mlem_cnn_forward.24}
  #allocation0 [shape = 'u32[]', space=smem, size = 0x4, offset = 0x4, fixed_abs, tag = 'smem constant byte address 0x4 - core index']
  #allocation1 [shape = 'u32[144,128]{1,0:T(1,128)}', space=vmem, size = 0x12000, scoped, tag = 'internal scratch']
  %s0 = inlined_call_operand.vmem [shape: f32[1,256], index: 0, kind: input, shape index: {}]
  %s1 = inlined_call_operand.vmem [shape: s8[256,384], index: 1, kind: input, shape index: {}]
  %s2 = inlined_call_operand.vmem [shape: s8[384,256], index: 2, kind: input, shape index: {}]
  %s3 = inlined_call_operand.vmem [shape: f32[1,384], index: 3, kind: input, shape index: {}]
  %s4 = inlined_call_operand.vmem [shape: f32[1,256], index: 4, kind: input, shape index: {}]
  %s5 = inlined_call_operand.vmem [shape: f32[1,256], index: 5, kind: output, shape index: {}]
  %s6 = sld [smem:[#allocation0]]
  $region30: #{mlem_cnn_forward.24} parent=0
    _
  %s8 = ssub.s32 1, %s6
  %s9 = scalar_select 0, %s8, %s6
  // Predicated region
  $region2: #{mlem_cnn_forward.24} parent=0 // pred_check
    _
  $region3: #{mlem_cnn_forward.24} parent=0 // pred_check_branch
    %11 = sbr.rel (0) target = $region5
  $region4: #{mlem_cnn_forward.24} parent=0 // pred_region
    _
  $region5: #{mlem_cnn_forward.24} parent=0 // pred_fallthru
    _
  // Predicated region
  $region6: #{mlem_cnn_forward.24} parent=0 // pred_check
    _
  $region7: #{mlem_cnn_forward.24} parent=0 // pred_check_branch
    %13 = sbr.rel (0) target = $region9
  $region8: #{mlem_cnn_forward.24} parent=0 // pred_region
    _
  $region9: #{mlem_cnn_forward.24} parent=0 // pred_fallthru
    _
  // Predicated region
  $region10: #{mlem_cnn_forward.24} parent=0 // pred_check
    _
  $region11: #{mlem_cnn_forward.24} parent=0 // pred_check_branch
    %15 = sbr.rel (0) target = $region13
  $region12: #{mlem_cnn_forward.24} parent=0 // pred_region
    _
  $region13: #{mlem_cnn_forward.24} parent=0 // pred_fallthru
    _
  // Predicated region
  $region14: #{mlem_cnn_forward.24} parent=0 // pred_check
    _
  $region15: #{mlem_cnn_forward.24} parent=0 // pred_check_branch
    %17 = sbr.rel (0) target = $region17
  $region16: #{mlem_cnn_forward.24} parent=0 // pred_region
    _
  $region17: #{mlem_cnn_forward.24} parent=0 // pred_fallthru
    _
  // Predicated region
  $region18: #{mlem_cnn_forward.24} parent=0 // pred_check
    _
  $region19: #{mlem_cnn_forward.24} parent=0 // pred_check_branch
    %19 = sbr.rel (0) target = $region21
  $region20: #{mlem_cnn_forward.24} parent=0 // pred_region
    _
  $region21: #{mlem_cnn_forward.24} parent=0 // pred_fallthru
    _
  %v21 = vld [vmem:[%s0] sm:$0x3]
  %v23 = vlaneseq
  %v24 = vshrl.u32 %v23, 7
  %v25 = vsub.s32 0, %v24
  %v26 = vrot.slane %v21, %v25
  %v27 = vlaneseq
  %v28 = vshrl.u32 %v27, 7
  %v29 = vsub.s32 1, %v28
  %v30 = vrot.slane %v21, %v29
  %v33 = vpack.c.bf16 %v26, %v26
  %v34 = vpack.c.bf16 %v30, %v30
  %v35 = vld [vmem:[%s1] sm:$0xff]
  %v36 = vld [vmem:[%s1 + $0x8] sm:$0xff]
  %v37 = vld [vmem:[%s1 + $0x10] sm:$0xff]
  %v38 = vld [vmem:[%s1 + $0x18] sm:$0xff]
  %v39 = vld [vmem:[%s1 + $0x20] sm:$0xff]
  %v40 = vld [vmem:[%s1 + $0x28] sm:$0xff]
  %v41 = vld [vmem:[%s1 + $0x30] sm:$0xff]
  %v42 = vld [vmem:[%s1 + $0x38] sm:$0xff]
  %v43 = vld [vmem:[%s1 + $0x40] sm:$0xff]
  %v44 = vld [vmem:[%s1 + $0x48] sm:$0xff]
  %v45 = vld [vmem:[%s1 + $0x50] sm:$0xff]
  %v46 = vld [vmem:[%s1 + $0x58] sm:$0xff]
  %v47 = vld [vmem:[%s1 + $0x60] sm:$0xff]
  %v48 = vld [vmem:[%s1 + $0x68] sm:$0xff]
  %v49 = vld [vmem:[%s1 + $0x70] sm:$0xff]
  %v50 = vld [vmem:[%s1 + $0x78] sm:$0xff]
  %v51 = vld [vmem:[%s1 + $0x80] sm:$0xff]
  %v52 = vld [vmem:[%s1 + $0x88] sm:$0xff]
  %v53 = vld [vmem:[%s1 + $0x90] sm:$0xff]
  %v54 = vld [vmem:[%s1 + $0x98] sm:$0xff]
  %v55 = vld [vmem:[%s1 + $0xa0] sm:$0xff]
  %v56 = vld [vmem:[%s1 + $0xa8] sm:$0xff]
  %v57 = vld [vmem:[%s1 + $0xb0] sm:$0xff]
  %v58 = vld [vmem:[%s1 + $0xb8] sm:$0xff]
  %v59 = vunpack.c.l.s8.bf16 %v35
  %v60 = vunpack.c.l.s8.bf16 %v36
  %v61 = vunpack.c.l.s8.bf16 %v37
  %v62 = vunpack.c.h.s8.bf16 %v35
  %v63 = vunpack.c.h.s8.bf16 %v36
  %v64 = vunpack.c.h.s8.bf16 %v37
  %v65 = vunpack.c.l.s8.bf16 %v38
  %v66 = vunpack.c.l.s8.bf16 %v39
  %v67 = vunpack.c.l.s8.bf16 %v40
  %v68 = vunpack.c.h.s8.bf16 %v38
  %v69 = vunpack.c.h.s8.bf16 %v39
  %v70 = vunpack.c.h.s8.bf16 %v40
  %v71 = vunpack.c.l.s8.bf16 %v41
  %v72 = vunpack.c.l.s8.bf16 %v42
  %v73 = vunpack.c.l.s8.bf16 %v43
  %v74 = vunpack.c.h.s8.bf16 %v41
  %v75 = vunpack.c.h.s8.bf16 %v42
  %v76 = vunpack.c.h.s8.bf16 %v43
  %v77 = vunpack.c.l.s8.bf16 %v44
  %v78 = vunpack.c.l.s8.bf16 %v45
  %v79 = vunpack.c.l.s8.bf16 %v46
  %v80 = vunpack.c.h.s8.bf16 %v44
  %v81 = vunpack.c.h.s8.bf16 %v45
  %v82 = vunpack.c.h.s8.bf16 %v46
  %v83 = vunpack.c.l.s8.bf16 %v47
  %v84 = vunpack.c.l.s8.bf16 %v48
  %v85 = vunpack.c.l.s8.bf16 %v49
  %v86 = vunpack.c.h.s8.bf16 %v47
  %v87 = vunpack.c.h.s8.bf16 %v48
  %v88 = vunpack.c.h.s8.bf16 %v49
  %v89 = vunpack.c.l.s8.bf16 %v50
  %v90 = vunpack.c.l.s8.bf16 %v51
  %v91 = vunpack.c.l.s8.bf16 %v52
  %v92 = vunpack.c.h.s8.bf16 %v50
  %v93 = vunpack.c.h.s8.bf16 %v51
  %v94 = vunpack.c.h.s8.bf16 %v52
  %v95 = vunpack.c.l.s8.bf16 %v53
  %v96 = vunpack.c.l.s8.bf16 %v54
  %v97 = vunpack.c.l.s8.bf16 %v55
  %v98 = vunpack.c.h.s8.bf16 %v53
  %v99 = vunpack.c.h.s8.bf16 %v54
  %v100 = vunpack.c.h.s8.bf16 %v55
  %v101 = vunpack.c.l.s8.bf16 %v56
  %v102 = vunpack.c.l.s8.bf16 %v57
  %v103 = vunpack.c.l.s8.bf16 %v58
  %v104 = vunpack.c.h.s8.bf16 %v56
  %v105 = vunpack.c.h.s8.bf16 %v57
  %v106 = vunpack.c.h.s8.bf16 %v58
  %v107 = vld [vmem:[%s3] sm:$0x7]
  %108 = vmatprep.subr.bf16.mxu0 %v81
  %109 = vmatpush1.bf16.msra.mxu0 %v80
  %110 = vmatprep.subr.bf16.mxu0 %v78
  %111 = vmatpush1.bf16.msra.mxu0 %v77
  %112 = vmatprep.subr.bf16.mxu0 %v75
  %113 = vmatpush1.bf16.msra.mxu0 %v74
  %114 = vmatprep.subr.bf16.mxu0 %v72
  %115 = vmatpush1.bf16.msra.mxu0 %v71
  %116 = vmatprep.subr.bf16.mxu0 %v69
  %117 = vmatpush1.bf16.msra.mxu0 %v68
  %118 = vmatprep.subr.bf16.mxu0 %v66
  %119 = vmatpush1.bf16.msra.mxu0 %v65
  %120 = vmatprep.subr.bf16.mxu0 %v63
  %121 = vmatpush1.bf16.msra.mxu0 %v62
  %122 = vmatprep.subr.bf16.mxu0 %v60
  %123 = vmatpush1.bf16.msra.mxu0 %v59
  %124 = vmatprep.subr.bf16.mxu0 %v105
  %125 = vmatpush2.bf16.msra.mxu0 %v104
  %126 = vmatprep.subr.bf16.mxu0 %v102
  %127 = vmatpush2.bf16.msra.mxu0 %v101
  %128 = vmatprep.subr.bf16.mxu0 %v99
  %129 = vmatpush2.bf16.msra.mxu0 %v98
  %130 = vmatprep.subr.bf16.mxu0 %v96
  %131 = vmatpush2.bf16.msra.mxu0 %v95
  %132 = vmatprep.subr.bf16.mxu0 %v93
  %133 = vmatpush2.bf16.msra.mxu0 %v92
  %134 = vmatprep.subr.bf16.mxu0 %v90
  %135 = vmatpush2.bf16.msra.mxu0 %v89
  %136 = vmatprep.subr.bf16.mxu0 %v87
  %137 = vmatpush2.bf16.msra.mxu0 %v86
  %138 = vmatprep.subr.bf16.mxu0 %v84
  %139 = vmatpush2.bf16.msra.mxu0 %v83
  %140 = vmatprep.mubr.bf16.mxu0 %v34
  %141 = vmatmul.mubr.bf16.gmra.mxu0 %v33
  %v142 = vpop.f32.mrf.mxu0
  %v143 = vadd.f32 1e-09, %v142
  %v144 = vpop.f32.mrf.mxu0
  %v145 = vadd.f32 1e-09, %v144
  %v146 = vpop.f32.mrf.mxu0
  %v147 = vpop.f32.mrf.mxu0
  %148 = vdwg.mxu0
  %149 = vmatprep.subr.bf16.mxu0 0
  %150 = vmatpush1.bf16.msra.mxu0 %v82
  %151 = vmatprep.subr.bf16.mxu0 0
  %152 = vmatpush1.bf16.msra.mxu0 %v79
  %153 = vmatprep.subr.bf16.mxu0 0
  %154 = vmatpush1.bf16.msra.mxu0 %v76
  %155 = vmatprep.subr.bf16.mxu0 0
  %156 = vmatpush1.bf16.msra.mxu0 %v73
  %157 = vmatprep.subr.bf16.mxu0 0
  %158 = vmatpush1.bf16.msra.mxu0 %v70
  %159 = vmatprep.subr.bf16.mxu0 0
  %160 = vmatpush1.bf16.msra.mxu0 %v67
  %161 = vmatprep.subr.bf16.mxu0 0
  %162 = vmatpush1.bf16.msra.mxu0 %v64
  %163 = vmatprep.subr.bf16.mxu0 0
  %164 = vmatpush1.bf16.msra.mxu0 %v61
  %165 = vmatprep.subr.bf16.mxu0 0
  %166 = vmatpush2.bf16.msra.mxu0 %v106
  %167 = vmatprep.subr.bf16.mxu0 0
  %168 = vmatpush2.bf16.msra.mxu0 %v103
  %169 = vmatprep.subr.bf16.mxu0 0
  %170 = vmatpush2.bf16.msra.mxu0 %v100
  %171 = vmatprep.subr.bf16.mxu0 0
  %172 = vmatpush2.bf16.msra.mxu0 %v97
  %173 = vmatprep.subr.bf16.mxu0 0
  %174 = vmatpush2.bf16.msra.mxu0 %v94
  %175 = vmatprep.subr.bf16.mxu0 0
  %176 = vmatpush2.bf16.msra.mxu0 %v91
  %177 = vmatprep.subr.bf16.mxu0 0
  %178 = vmatpush2.bf16.msra.mxu0 %v88
  %179 = vmatprep.subr.bf16.mxu0 0
  %180 = vmatpush2.bf16.msra.mxu0 %v85
  %181 = vmatprep.mubr.bf16.mxu0 %v34
  %182 = vmatmul.mubr.bf16.gmra.mxu0 %v33
  %v183 = vpop.f32.mrf.mxu0
  %v184 = vadd.f32 1e-09, %v183
  %v185 = vpop.f32.mrf.mxu0
  %v186 = vpop.f32.mrf.mxu0
  %v187 = vpop.f32.mrf.mxu0
  %188 = vdwg.mxu0
  %v192 = vcombine.low %v143, %v145
  %v194 = vunpack.c.l.s4 1966171168
  %v195 = vunpack.c.0.s8 %v194
  %v196 = vlaneseq
  %v197 = vshrl.u32 %v196, 7
  %v198 = vsub.s32 %v195, %v197
  %v199 = vrot.slane %v192, %v198
  %v201 = vunpack.c.l.s4 1966171168
  %v202 = vunpack.c.0.s8 %v201
  %v203 = vlaneseq
  %v204 = vshrl.u32 %v203, 7
  %v205 = vsub.s32 %v202, %v204
  %v206 = vrot.slane %v184, %v205
  %v207 = vcombine.low %v199, %v206
  %v209 = vunpack.c.l.s4 1966171168
  %v210 = vunpack.c.0.s8 %v209
  %v211 = vlaneseq
  %v212 = vshrl.u32 %v211, 7
  %v213 = vsub.s32 %v210, %v212
  %v214 = vrot.slane %v207, %v213
  %v216 = vrcp.pop %v214
  %v217 = vmul.f32 %v107, %v216
  %v219 = vlaneseq
  %v220 = vshrl.u32 %v219, 7
  %v221 = vsub.s32 0, %v220
  %v222 = vrot.slane %v217, %v221
  %v223 = vlaneseq
  %v224 = vshrl.u32 %v223, 7
  %v225 = vsub.s32 1, %v224
  %v226 = vrot.slane %v217, %v225
  %v227 = vlaneseq
  %v228 = vshrl.u32 %v227, 7
  %v229 = vsub.s32 2, %v228
  %v230 = vrot.slane %v217, %v229
  %v234 = vpack.c.bf16 %v222, %v222
  %v235 = vpack.c.bf16 %v226, %v226
  %v236 = vpack.c.bf16 %v230, %v230
  %v237 = vld [vmem:[%s2] sm:$0xff]
  %v238 = vld [vmem:[%s2 + $0x8] sm:$0xff]
  %v239 = vld [vmem:[%s2 + $0x10] sm:$0xff]
  %v240 = vld [vmem:[%s2 + $0x18] sm:$0xff]
  %v241 = vld [vmem:[%s2 + $0x20] sm:$0xff]
  %v242 = vld [vmem:[%s2 + $0x28] sm:$0xff]
  %v243 = vld [vmem:[%s2 + $0x30] sm:$0xff]
  %v244 = vld [vmem:[%s2 + $0x38] sm:$0xff]
  %v245 = vld [vmem:[%s2 + $0x40] sm:$0xff]
  %v246 = vld [vmem:[%s2 + $0x48] sm:$0xff]
  %v247 = vld [vmem:[%s2 + $0x50] sm:$0xff]
  %v248 = vld [vmem:[%s2 + $0x58] sm:$0xff]
  %v249 = vld [vmem:[%s2 + $0x60] sm:$0xff]
  %v250 = vld [vmem:[%s2 + $0x68] sm:$0xff]
  %v251 = vld [vmem:[%s2 + $0x70] sm:$0xff]
  %v252 = vld [vmem:[%s2 + $0x78] sm:$0xff]
  %v253 = vld [vmem:[%s2 + $0x80] sm:$0xff]
  %v254 = vld [vmem:[%s2 + $0x88] sm:$0xff]
  %v255 = vld [vmem:[%s2 + $0x90] sm:$0xff]
  %v256 = vld [vmem:[%s2 + $0x98] sm:$0xff]
  %v257 = vld [vmem:[%s2 + $0xa0] sm:$0xff]
  %v258 = vld [vmem:[%s2 + $0xa8] sm:$0xff]
  %v259 = vld [vmem:[%s2 + $0xb0] sm:$0xff]
  %v260 = vld [vmem:[%s2 + $0xb8] sm:$0xff]
  %v261 = vunpack.c.l.s8.bf16 %v237
  %v262 = vunpack.c.l.s8.bf16 %v238
  %v263 = vunpack.c.h.s8.bf16 %v237
  %v264 = vunpack.c.h.s8.bf16 %v238
  %v265 = vunpack.c.l.s8.bf16 %v239
  %v266 = vunpack.c.l.s8.bf16 %v240
  %v267 = vunpack.c.h.s8.bf16 %v239
  %v268 = vunpack.c.h.s8.bf16 %v240
  %v269 = vunpack.c.l.s8.bf16 %v241
  %v270 = vunpack.c.l.s8.bf16 %v242
  %v271 = vunpack.c.h.s8.bf16 %v241
  %v272 = vunpack.c.h.s8.bf16 %v242
  %v273 = vunpack.c.l.s8.bf16 %v243
  %v274 = vunpack.c.l.s8.bf16 %v244
  %v275 = vunpack.c.h.s8.bf16 %v243
  %v276 = vunpack.c.h.s8.bf16 %v244
  %v277 = vunpack.c.l.s8.bf16 %v245
  %v278 = vunpack.c.l.s8.bf16 %v246
  %v279 = vunpack.c.h.s8.bf16 %v245
  %v280 = vunpack.c.h.s8.bf16 %v246
  %v281 = vunpack.c.l.s8.bf16 %v247
  %v282 = vunpack.c.l.s8.bf16 %v248
  %v283 = vunpack.c.h.s8.bf16 %v247
  %v284 = vunpack.c.h.s8.bf16 %v248
  %v285 = vunpack.c.l.s8.bf16 %v249
  %v286 = vunpack.c.l.s8.bf16 %v250
  %v287 = vunpack.c.h.s8.bf16 %v249
  %v288 = vunpack.c.h.s8.bf16 %v250
  %v289 = vunpack.c.l.s8.bf16 %v251
  %v290 = vunpack.c.l.s8.bf16 %v252
  %v291 = vunpack.c.h.s8.bf16 %v251
  %v292 = vunpack.c.h.s8.bf16 %v252
  %v293 = vunpack.c.l.s8.bf16 %v253
  %v294 = vunpack.c.l.s8.bf16 %v254
  %v295 = vunpack.c.h.s8.bf16 %v253
  %v296 = vunpack.c.h.s8.bf16 %v254
  %v297 = vunpack.c.l.s8.bf16 %v255
  %v298 = vunpack.c.l.s8.bf16 %v256
  %v299 = vunpack.c.h.s8.bf16 %v255
  %v300 = vunpack.c.h.s8.bf16 %v256
  %v301 = vunpack.c.l.s8.bf16 %v257
  %v302 = vunpack.c.l.s8.bf16 %v258
  %v303 = vunpack.c.h.s8.bf16 %v257
  %v304 = vunpack.c.h.s8.bf16 %v258
  %v305 = vunpack.c.l.s8.bf16 %v259
  %v306 = vunpack.c.l.s8.bf16 %v260
  %v307 = vunpack.c.h.s8.bf16 %v259
  %v308 = vunpack.c.h.s8.bf16 %v260
  %309 = vmatprep.subr.bf16.mxu0 %v276
  %310 = vmatpush1.bf16.msra.mxu0 %v275
  %311 = vmatprep.subr.bf16.mxu0 %v274
  %312 = vmatpush1.bf16.msra.mxu0 %v273
  %313 = vmatprep.subr.bf16.mxu0 %v272
  %314 = vmatpush1.bf16.msra.mxu0 %v271
  %315 = vmatprep.subr.bf16.mxu0 %v270
  %316 = vmatpush1.bf16.msra.mxu0 %v269
  %317 = vmatprep.subr.bf16.mxu0 %v268
  %318 = vmatpush1.bf16.msra.mxu0 %v267
  %319 = vmatprep.subr.bf16.mxu0 %v266
  %320 = vmatpush1.bf16.msra.mxu0 %v265
  %321 = vmatprep.subr.bf16.mxu0 %v264
  %322 = vmatpush1.bf16.msra.mxu0 %v263
  %323 = vmatprep.subr.bf16.mxu0 %v262
  %324 = vmatpush1.bf16.msra.mxu0 %v261
  %325 = vmatprep.subr.bf16.mxu0 %v292
  %326 = vmatpush2.bf16.msra.mxu0 %v291
  %327 = vmatprep.subr.bf16.mxu0 %v290
  %328 = vmatpush2.bf16.msra.mxu0 %v289
  %329 = vmatprep.subr.bf16.mxu0 %v288
  %330 = vmatpush2.bf16.msra.mxu0 %v287
  %331 = vmatprep.subr.bf16.mxu0 %v286
  %332 = vmatpush2.bf16.msra.mxu0 %v285
  %333 = vmatprep.subr.bf16.mxu0 %v284
  %334 = vmatpush2.bf16.msra.mxu0 %v283
  %335 = vmatprep.subr.bf16.mxu0 %v282
  %336 = vmatpush2.bf16.msra.mxu0 %v281
  %337 = vmatprep.subr.bf16.mxu0 %v280
  %338 = vmatpush2.bf16.msra.mxu0 %v279
  %339 = vmatprep.subr.bf16.mxu0 %v278
  %340 = vmatpush2.bf16.msra.mxu0 %v277
  %341 = vmatprep.mubr.bf16.mxu0 %v235
  %342 = vmatmul.mubr.bf16.gmra.mxu0 %v234
  %v343 = vpop.f32.mrf.mxu0
  %v344 = vadd.f32 0.0, %v343
  %v345 = vpop.f32.mrf.mxu0
  %v346 = vadd.f32 0.0, %v345
  %v347 = vpop.f32.mrf.mxu0
  %v348 = vpop.f32.mrf.mxu0
  %349 = vdwg.mxu0
  %350 = vmatprep.subr.bf16.mxu0 %v308
  %351 = vmatpush1.bf16.msra.mxu0 %v307
  %352 = vmatprep.subr.bf16.mxu0 %v306
  %353 = vmatpush1.bf16.msra.mxu0 %v305
  %354 = vmatprep.subr.bf16.mxu0 %v304
  %355 = vmatpush1.bf16.msra.mxu0 %v303
  %356 = vmatprep.subr.bf16.mxu0 %v302
  %357 = vmatpush1.bf16.msra.mxu0 %v301
  %358 = vmatprep.subr.bf16.mxu0 %v300
  %359 = vmatpush1.bf16.msra.mxu0 %v299
  %360 = vmatprep.subr.bf16.mxu0 %v298
  %361 = vmatpush1.bf16.msra.mxu0 %v297
  %362 = vmatprep.subr.bf16.mxu0 %v296
  %363 = vmatpush1.bf16.msra.mxu0 %v295
  %364 = vmatprep.subr.bf16.mxu0 %v294
  %365 = vmatpush1.bf16.msra.mxu0 %v293
  %366 = vmatprep.subr.bf16.mxu0 0
  %367 = vmatpush2.bf16.msra.mxu0 0
  %368 = vmatprep.subr.bf16.mxu0 0
  %369 = vmatpush2.bf16.msra.mxu0 0
  %370 = vmatprep.subr.bf16.mxu0 0
  %371 = vmatpush2.bf16.msra.mxu0 0
  %372 = vmatprep.subr.bf16.mxu0 0
  %373 = vmatpush2.bf16.msra.mxu0 0
  %374 = vmatprep.subr.bf16.mxu0 0
  %375 = vmatpush2.bf16.msra.mxu0 0
  %376 = vmatprep.subr.bf16.mxu0 0
  %377 = vmatpush2.bf16.msra.mxu0 0
  %378 = vmatprep.subr.bf16.mxu0 0
  %379 = vmatpush2.bf16.msra.mxu0 0
  %380 = vmatprep.subr.bf16.mxu0 0
  %381 = vmatpush2.bf16.msra.mxu0 0
  %382 = vmatprep.mubr.bf16.mxu0 0
  %383 = vmatmul.mubr.bf16.gmra.mxu0 %v236
  %v384 = vpop.f32.mrf.mxu0
  %v385 = vadd.f32 %v344, %v384
  %v386 = vpop.f32.mrf.mxu0
  %v387 = vadd.f32 %v346, %v386
  %v388 = vpop.f32.mrf.mxu0
  %v389 = vpop.f32.mrf.mxu0
  %390 = vdwg.mxu0
  %v393 = vcombine.low %v385, %v387
  %v395 = vunpack.c.l.s4 1966171168
  %v396 = vunpack.c.0.s8 %v395
  %v397 = vlaneseq
  %v398 = vshrl.u32 %v397, 7
  %v399 = vsub.s32 %v396, %v398
  %v400 = vrot.slane %v393, %v399
  %v402 = vunpack.c.l.s4 1966171168
  %v403 = vunpack.c.0.s8 %v402
  %v404 = vlaneseq
  %v405 = vshrl.u32 %v404, 7
  %v406 = vsub.s32 %v403, %v405
  %v407 = vrot.slane %v400, %v406
  %v409 = vmul.f32 %v21, %v407
  %v410 = vld [vmem:[%s4] sm:$0x3]
  %v411 = vmul.f32 %v409, %v410
  %v412 = vlaneseq
  %vm413 = vcmp.ge.s32.totalorder %v412, 0
  %vm414 = vcmp.lt.s32.totalorder %v412, 256
  %vm415 = vmand %vm413, %vm414
  %416 = vst.msk [vmem:[%s5] sm:$0x3] %vm415, %v411
  // Predicated region
  $region22: #{mlem_cnn_forward.24} parent=0 // pred_check
    _
  $region23: #{mlem_cnn_forward.24} parent=0 // pred_check_branch
    %418 = sbr.rel (0) target = $region25
  $region24: #{mlem_cnn_forward.24} parent=0 // pred_region
    _
  $region25: #{mlem_cnn_forward.24} parent=0 // pred_fallthru
    _
  // Predicated region
  $region26: #{mlem_cnn_forward.24} parent=0 // pred_check
    _
  $region27: #{mlem_cnn_forward.24} parent=0 // pred_check_branch
    %420 = sbr.rel (0) target = $region29
  $region28: #{mlem_cnn_forward.24} parent=0 // pred_region
    _
  $region29: #{mlem_cnn_forward.24} parent=0 // pred_fallthru
    _

// kernel: mlem_cnn_forward.19
$region0: #{mlem_cnn_forward.19}
  #allocation0 [shape = 'u32[]', space=smem, size = 0x4, offset = 0x4, fixed_abs, tag = 'smem constant byte address 0x4 - core index']
  #allocation1 [shape = 'u32[144,128]{1,0:T(1,128)}', space=vmem, size = 0x12000, scoped, tag = 'internal scratch']
  #allocation2 [shape = 'f32[1]{0:T(128)S(6)}', space=smem, size = 0x200, scoped, tag = 'scoped memory for mlem_cnn_forward.19']
  %s0 = inlined_call_operand.vmem [shape: bf16[8,64], index: 0, kind: input, shape index: {}]
  %s1 = inlined_call_operand.vmem [shape: bf16[64,256], index: 1, kind: input, shape index: {}]
  %s2 = inlined_call_operand.vmem [shape: f32[8,1], index: 2, kind: input, shape index: {}]
  %s3 = inlined_call_operand.<no memory space> [shape: f32[1], index: 3, kind: input, shape index: {}]
  %s4 = inlined_call_operand.vmem [shape: f32[8,256], index: 4, kind: output, shape index: {}]
  %s5 = sld [smem:[#allocation0]]
  $region26: #{mlem_cnn_forward.19} parent=0
    _
  %s7 = ssub.s32 1, %s5
  %s8 = scalar_select 0, %s7, %s5
  %9 = sst [smem:[#allocation2]] %s3
  // Predicated region
  $region2: #{mlem_cnn_forward.19} parent=0 // pred_check
    _
  $region3: #{mlem_cnn_forward.19} parent=0 // pred_check_branch
    %11 = sbr.rel (0) target = $region5
  $region4: #{mlem_cnn_forward.19} parent=0 // pred_region
    _
  $region5: #{mlem_cnn_forward.19} parent=0 // pred_fallthru
    _
  // Predicated region
  $region6: #{mlem_cnn_forward.19} parent=0 // pred_check
    _
  $region7: #{mlem_cnn_forward.19} parent=0 // pred_check_branch
    %13 = sbr.rel (0) target = $region9
  $region8: #{mlem_cnn_forward.19} parent=0 // pred_region
    _
  $region9: #{mlem_cnn_forward.19} parent=0 // pred_fallthru
    _
  // Predicated region
  $region10: #{mlem_cnn_forward.19} parent=0 // pred_check
    _
  $region11: #{mlem_cnn_forward.19} parent=0 // pred_check_branch
    %15 = sbr.rel (0) target = $region13
  $region12: #{mlem_cnn_forward.19} parent=0 // pred_region
    _
  $region13: #{mlem_cnn_forward.19} parent=0 // pred_fallthru
    _
  // Predicated region
  $region14: #{mlem_cnn_forward.19} parent=0 // pred_check
    _
  $region15: #{mlem_cnn_forward.19} parent=0 // pred_check_branch
    %17 = sbr.rel (0) target = $region17
  $region16: #{mlem_cnn_forward.19} parent=0 // pred_region
    _
  $region17: #{mlem_cnn_forward.19} parent=0 // pred_fallthru
    _
  %v19 = vld [vmem:[%s0] sm:$0xf]
  %v20 = vld [vmem:[%s1] sm:$0xff]
  %v21 = vld [vmem:[%s1 + $0x8] sm:$0xff]
  %v22 = vld [vmem:[%s1 + $0x10] sm:$0xff]
  %v23 = vld [vmem:[%s1 + $0x18] sm:$0xff]
  %v24 = vld [vmem:[%s1 + $0x20] sm:$0xff]
  %v25 = vld [vmem:[%s1 + $0x28] sm:$0xff]
  %v26 = vld [vmem:[%s1 + $0x30] sm:$0xff]
  %v27 = vld [vmem:[%s1 + $0x38] sm:$0xff]
  %v28 = vld [vmem:[%s2] sm:$0xff]
  %30 = vset.pattern.permute.xlu0 0
  %31 = vperm.xlu0 %30, %v28
  %v32 = vpop.permute.xlu0 %31
  %v42 = vunpack.c.l.b16 %v20
  %v43 = vunpack.c.h.b16 %v20
  %v44 = vunpack.c.l.b16 %v21
  %v45 = vunpack.c.h.b16 %v21
  %v46 = vunpack.c.l.b16 %v22
  %v47 = vunpack.c.h.b16 %v22
  %v48 = vunpack.c.l.b16 %v23
  %v49 = vunpack.c.h.b16 %v23
  %v50 = vunpack.c.l.b16 %v24
  %v51 = vunpack.c.h.b16 %v24
  %v52 = vunpack.c.l.b16 %v25
  %v53 = vunpack.c.h.b16 %v25
  %v54 = vunpack.c.l.b16 %v26
  %v55 = vunpack.c.h.b16 %v26
  %v56 = vunpack.c.l.b16 %v27
  %v57 = vunpack.c.h.b16 %v27
  %v58 = vpack.c.b16 %v44, %v42
  %v59 = vpack.c.b16 %v45, %v43
  %v60 = vpack.c.b16 %v48, %v46
  %v61 = vpack.c.b16 %v49, %v47
  %v62 = vpack.c.b16 %v52, %v50
  %v63 = vpack.c.b16 %v53, %v51
  %v64 = vpack.c.b16 %v56, %v54
  %v65 = vpack.c.b16 %v57, %v55
  %vm74 = vcmask 523264
  %v76 = vsel %vm74, %v19, 0
  %78 = vmatprep.subr.bf16.mxu0 0
  %79 = vmatpush1.bf16.msra.mxu0 0
  %80 = vmatprep.subr.bf16.mxu0 0
  %81 = vmatpush1.bf16.msra.mxu0 0
  %82 = vmatprep.subr.bf16.mxu0 0
  %83 = vmatpush1.bf16.msra.mxu0 0
  %84 = vmatprep.subr.bf16.mxu0 0
  %85 = vmatpush1.bf16.msra.mxu0 0
  %86 = vmatprep.subr.bf16.mxu0 %v65
  %87 = vmatpush1.bf16.msra.mxu0 %v64
  %88 = vmatprep.subr.bf16.mxu0 %v63
  %89 = vmatpush1.bf16.msra.mxu0 %v62
  %90 = vmatprep.subr.bf16.mxu0 %v61
  %91 = vmatpush1.bf16.msra.mxu0 %v60
  %92 = vmatprep.subr.bf16.mxu0 %v59
  %93 = vmatpush1.bf16.msra.mxu0 %v58
  %94 = vmatprep.subr.bf16.mxu0 0
  %95 = vmatpush2.bf16.msra.mxu0 0
  %96 = vmatprep.subr.bf16.mxu0 0
  %97 = vmatpush2.bf16.msra.mxu0 0
  %98 = vmatprep.subr.bf16.mxu0 0
  %99 = vmatpush2.bf16.msra.mxu0 0
  %100 = vmatprep.subr.bf16.mxu0 0
  %101 = vmatpush2.bf16.msra.mxu0 0
  %102 = vmatprep.subr.bf16.mxu0 0
  %103 = vmatpush2.bf16.msra.mxu0 0
  %104 = vmatprep.subr.bf16.mxu0 0
  %105 = vmatpush2.bf16.msra.mxu0 0
  %106 = vmatprep.subr.bf16.mxu0 0
  %107 = vmatpush2.bf16.msra.mxu0 0
  %108 = vmatprep.subr.bf16.mxu0 0
  %109 = vmatpush2.bf16.msra.mxu0 0
  %110 = vmatprep.mubr.bf16.mxu0 0
  %111 = vmatmul.mubr.bf16.gmra.mxu0 %v76
  %v112 = vpop.f32.mrf.mxu0
  %v113 = vadd.f32 %v32, %v112
  %v114 = vpop.f32.mrf.mxu0
  %v115 = vadd.f32 %v32, %v114
  %v116 = vpop.f32.mrf.mxu0
  %v117 = vpop.f32.mrf.mxu0
  %118 = vdwg.mxu0
  %s119 = sld [smem:[#allocation2]]
  %vm120 = vcmp.ge.f32.partialorder %v113, 0.0
  %vm121 = vcmp.ge.f32.partialorder %v115, 0.0
  %v122 = vstv %s119
  %v123 = vmul.f32 %v122, %v113
  %v124 = vmul.f32 %v122, %v115
  %v125 = vsel %vm120, %v113, %v123
  %v126 = vsel %vm121, %v115, %v124
  %127 = vst [vmem:[%s4] sm:$0xff] %v125
  %128 = vst [vmem:[%s4 + $0x8] sm:$0xff] %v126
  // Predicated region
  $region18: #{mlem_cnn_forward.19} parent=0 // pred_check
    _
  $region19: #{mlem_cnn_forward.19} parent=0 // pred_check_branch
    %130 = sbr.rel (0) target = $region21
  $region20: #{mlem_cnn_forward.19} parent=0 // pred_region
    _
  $region21: #{mlem_cnn_forward.19} parent=0 // pred_fallthru
    _
  // Predicated region
  $region22: #{mlem_cnn_forward.19} parent=0 // pred_check
    _
  $region23: #{mlem_cnn_forward.19} parent=0 // pred_check_branch
    %132 = sbr.rel (0) target = $region25
  $region24: #{mlem_cnn_forward.19} parent=0 // pred_region
    _
  $region25: #{mlem_cnn_forward.19} parent=0 // pred_fallthru
    _

// kernel: mlem_cnn_forward.18
$region0: #{mlem_cnn_forward.18}
  #allocation0 [shape = 'u32[]', space=smem, size = 0x4, offset = 0x4, fixed_abs, tag = 'smem constant byte address 0x4 - core index']
  #allocation1 [shape = 'u32[144,128]{1,0:T(1,128)}', space=vmem, size = 0x12000, scoped, tag = 'internal scratch']
  %s0 = inlined_call_operand.vmem [shape: f32[1,256], index: 0, kind: input, shape index: {}]
  %s1 = inlined_call_operand.hbm [shape: bf16[256,384], index: 1, kind: input, shape index: {}]
  %s2 = inlined_call_operand.hbm [shape: bf16[384,256], index: 2, kind: input, shape index: {}]
  %s3 = inlined_call_operand.vmem [shape: f32[1,384], index: 3, kind: input, shape index: {}]
  %s4 = inlined_call_operand.vmem [shape: f32[1,256], index: 4, kind: input, shape index: {}]
  %s5 = inlined_call_operand.vmem [shape: f32[1,256], index: 5, kind: output, shape index: {}]
  %s6 = sld [smem:[#allocation0]]
  $region38: #{mlem_cnn_forward.18} parent=0
    _
  %s8 = ssub.s32 1, %s6
  %s9 = scalar_select 0, %s8, %s6
  $region1: #{mlem_cnn_forward.18} parent=0
    #allocation2 [shape = 'u8[196608]{0}', space=vmem, size = 0x30000, scoped, tag = 'input window, operand 1, single buffered']
    #allocation3 [shape = 's32[1]{0}', space=sflag, size = 0x4, scoped, tag = 'scoped memory for mlem_cnn_forward.18']
    #allocation4 [shape = 'u8[196608]{0}', space=vmem, size = 0x30000, scoped, tag = 'input window, operand 2, single buffered']
    #allocation5 [shape = 's32[1]{0}', space=sflag, size = 0x4, scoped, tag = 'scoped memory for mlem_cnn_forward.18']
    %10 = vsyncpa [#allocation3], 0
    %11 = vsyncpa [#allocation5], 0
    // Predicated region
    $region2: #{mlem_cnn_forward.18} parent=1 // pred_check
      _
    $region3: #{mlem_cnn_forward.18} parent=1 // pred_check_branch
      %13 = sbr.rel (0) target = $region5
    $region4: #{mlem_cnn_forward.18} parent=1 // pred_region
      _
    $region5: #{mlem_cnn_forward.18} parent=1 // pred_fallthru
      _
    // Predicated region
    $region6: #{mlem_cnn_forward.18} parent=1 // pred_check
      _
    $region7: #{mlem_cnn_forward.18} parent=1 // pred_check_branch
      %15 = sbr.rel (0) target = $region9
    $region8: #{mlem_cnn_forward.18} parent=1 // pred_region
      %s17 = ssub.s32 6144, 6144
      %18 = vsyncadd [#allocation3], %s17
      %s19 = sshll.u32 [#allocation2], 4
      %s20 = int_to_ptr.vmem [resolvable:$true] %s19
      %25 = dma.hbm_to_vmem [thread:$0]  %s1, 6144, %s20, [#allocation3], 192, 192, 12
    $region9: #{mlem_cnn_forward.18} parent=1 // pred_fallthru
      _
    // Predicated region
    $region10: #{mlem_cnn_forward.18} parent=1 // pred_check
      _
    $region11: #{mlem_cnn_forward.18} parent=1 // pred_check_branch
      %27 = sbr.rel (0) target = $region13
    $region12: #{mlem_cnn_forward.18} parent=1 // pred_region
      %s29 = ssub.s32 6144, 6144
      %30 = vsyncadd [#allocation5], %s29
      %s31 = sshll.u32 [#allocation4], 4
      %s32 = int_to_ptr.vmem [resolvable:$true] %s31
      %37 = dma.hbm_to_vmem [thread:$0]  %s2, 6144, %s32, [#allocation5], 128, 128, 8
    $region13: #{mlem_cnn_forward.18} parent=1 // pred_fallthru
      _
    // Predicated region
    $region14: #{mlem_cnn_forward.18} parent=1 // pred_check
      _
    $region15: #{mlem_cnn_forward.18} parent=1 // pred_check_branch
      %39 = sbr.rel (0) target = $region17
    $region16: #{mlem_cnn_forward.18} parent=1 // pred_region
      _
    $region17: #{mlem_cnn_forward.18} parent=1 // pred_fallthru
      _
    // Predicated region
    $region18: #{mlem_cnn_forward.18} parent=1 // pred_check
      _
    $region19: #{mlem_cnn_forward.18} parent=1 // pred_check_branch
      %41 = sbr.rel (0) target = $region21
    $region20: #{mlem_cnn_forward.18} parent=1 // pred_region
      _
    $region21: #{mlem_cnn_forward.18} parent=1 // pred_fallthru
      _
    // Predicated region
    $region22: #{mlem_cnn_forward.18} parent=1 // pred_check
      _
    $region23: #{mlem_cnn_forward.18} parent=1 // pred_check_branch
      %43 = sbr.rel (0) target = $region25
    $region24: #{mlem_cnn_forward.18} parent=1 // pred_region
      %44 = dma.done [#allocation3], 6144
    $region25: #{mlem_cnn_forward.18} parent=1 // pred_fallthru
      _
    // Predicated region
    $region26: #{mlem_cnn_forward.18} parent=1 // pred_check
      _
    $region27: #{mlem_cnn_forward.18} parent=1 // pred_check_branch
      %46 = sbr.rel (0) target = $region29
    $region28: #{mlem_cnn_forward.18} parent=1 // pred_region
      %47 = dma.done [#allocation5], 6144
    $region29: #{mlem_cnn_forward.18} parent=1 // pred_fallthru
      _
    %v49 = vld [vmem:[%s0] sm:$0x3]
    %v51 = vlaneseq
    %v52 = vshrl.u32 %v51, 7
    %v53 = vsub.s32 0, %v52
    %v54 = vrot.slane %v49, %v53
    %v55 = vlaneseq
    %v56 = vshrl.u32 %v55, 7
    %v57 = vsub.s32 1, %v56
    %v58 = vrot.slane %v49, %v57
    %v61 = vpack.c.bf16 %v54, %v54
    %v62 = vpack.c.bf16 %v58, %v58
    %v63 = vld [vmem:[#allocation2] sm:$0xff]
    %v64 = vld [vmem:[#allocation2 + $0x8] sm:$0xf]
    %v65 = vld [vmem:[#allocation2 + $0xc] sm:$0xff]
    %v66 = vld [vmem:[#allocation2 + $0x14] sm:$0xf]
    %v67 = vld [vmem:[#allocation2 + $0x18] sm:$0xff]
    %v68 = vld [vmem:[#allocation2 + $0x20] sm:$0xf]
    %v69 = vld [vmem:[#allocation2 + $0x24] sm:$0xff]
    %v70 = vld [vmem:[#allocation2 + $0x2c] sm:$0xf]
    %v71 = vld [vmem:[#allocation2 + $0x30] sm:$0xff]
    %v72 = vld [vmem:[#allocation2 + $0x38] sm:$0xf]
    %v73 = vld [vmem:[#allocation2 + $0x3c] sm:$0xff]
    %v74 = vld [vmem:[#allocation2 + $0x44] sm:$0xf]
    %v75 = vld [vmem:[#allocation2 + $0x48] sm:$0xff]
    %v76 = vld [vmem:[#allocation2 + $0x50] sm:$0xf]
    %v77 = vld [vmem:[#allocation2 + $0x54] sm:$0xff]
    %v78 = vld [vmem:[#allocation2 + $0x5c] sm:$0xf]
    %v79 = vld [vmem:[#allocation2 + $0x60] sm:$0xff]
    %v80 = vld [vmem:[#allocation2 + $0x68] sm:$0xf]
    %v81 = vld [vmem:[#allocation2 + $0x6c] sm:$0xff]
    %v82 = vld [vmem:[#allocation2 + $0x74] sm:$0xf]
    %v83 = vld [vmem:[#allocation2 + $0x78] sm:$0xff]
    %v84 = vld [vmem:[#allocation2 + $0x80] sm:$0xf]
    %v85 = vld [vmem:[#allocation2 + $0x84] sm:$0xff]
    %v86 = vld [vmem:[#allocation2 + $0x8c] sm:$0xf]
    %v87 = vld [vmem:[#allocation2 + $0x90] sm:$0xff]
    %v88 = vld [vmem:[#allocation2 + $0x98] sm:$0xf]
    %v89 = vld [vmem:[#allocation2 + $0x9c] sm:$0xff]
    %v90 = vld [vmem:[#allocation2 + $0xa4] sm:$0xf]
    %v91 = vld [vmem:[#allocation2 + $0xa8] sm:$0xff]
    %v92 = vld [vmem:[#allocation2 + $0xb0] sm:$0xf]
    %v93 = vld [vmem:[#allocation2 + $0xb4] sm:$0xff]
    %v94 = vld [vmem:[#allocation2 + $0xbc] sm:$0xf]
    %v95 = vld [vmem:[#allocation2 + $0xc0] sm:$0xff]
    %v96 = vld [vmem:[#allocation2 + $0xc8] sm:$0xf]
    %v97 = vld [vmem:[#allocation2 + $0xcc] sm:$0xff]
    %v98 = vld [vmem:[#allocation2 + $0xd4] sm:$0xf]
    %v99 = vld [vmem:[#allocation2 + $0xd8] sm:$0xff]
    %v100 = vld [vmem:[#allocation2 + $0xe0] sm:$0xf]
    %v101 = vld [vmem:[#allocation2 + $0xe4] sm:$0xff]
    %v102 = vld [vmem:[#allocation2 + $0xec] sm:$0xf]
    %v103 = vld [vmem:[#allocation2 + $0xf0] sm:$0xff]
    %v104 = vld [vmem:[#allocation2 + $0xf8] sm:$0xf]
    %v105 = vld [vmem:[#allocation2 + $0xfc] sm:$0xff]
    %v106 = vld [vmem:[#allocation2 + $0x104] sm:$0xf]
    %v107 = vld [vmem:[#allocation2 + $0x108] sm:$0xff]
    %v108 = vld [vmem:[#allocation2 + $0x110] sm:$0xf]
    %v109 = vld [vmem:[#allocation2 + $0x114] sm:$0xff]
    %v110 = vld [vmem:[#allocation2 + $0x11c] sm:$0xf]
    %v111 = vld [vmem:[#allocation2 + $0x120] sm:$0xff]
    %v112 = vld [vmem:[#allocation2 + $0x128] sm:$0xf]
    %v113 = vld [vmem:[#allocation2 + $0x12c] sm:$0xff]
    %v114 = vld [vmem:[#allocation2 + $0x134] sm:$0xf]
    %v115 = vld [vmem:[#allocation2 + $0x138] sm:$0xff]
    %v116 = vld [vmem:[#allocation2 + $0x140] sm:$0xf]
    %v117 = vld [vmem:[#allocation2 + $0x144] sm:$0xff]
    %v118 = vld [vmem:[#allocation2 + $0x14c] sm:$0xf]
    %v119 = vld [vmem:[#allocation2 + $0x150] sm:$0xff]
    %v120 = vld [vmem:[#allocation2 + $0x158] sm:$0xf]
    %v121 = vld [vmem:[#allocation2 + $0x15c] sm:$0xff]
    %v122 = vld [vmem:[#allocation2 + $0x164] sm:$0xf]
    %v123 = vld [vmem:[#allocation2 + $0x168] sm:$0xff]
    %v124 = vld [vmem:[#allocation2 + $0x170] sm:$0xf]
    %v125 = vld [vmem:[#allocation2 + $0x174] sm:$0xff]
    %v126 = vld [vmem:[#allocation2 + $0x17c] sm:$0xf]
    %v127 = vld [vmem:[%s3] sm:$0x7]
    %v192 = vunpack.c.l.b16 %v63
    %v193 = vunpack.c.h.b16 %v63
    %v194 = vunpack.c.l.b16 %v64
    %v195 = vunpack.c.l.b16 %v65
    %v196 = vunpack.c.h.b16 %v65
    %v197 = vunpack.c.l.b16 %v66
    %v198 = vunpack.c.l.b16 %v67
    %v199 = vunpack.c.h.b16 %v67
    %v200 = vunpack.c.l.b16 %v68
    %v201 = vunpack.c.l.b16 %v69
    %v202 = vunpack.c.h.b16 %v69
    %v203 = vunpack.c.l.b16 %v70
    %v204 = vunpack.c.l.b16 %v71
    %v205 = vunpack.c.h.b16 %v71
    %v206 = vunpack.c.l.b16 %v72
    %v207 = vunpack.c.l.b16 %v73
    %v208 = vunpack.c.h.b16 %v73
    %v209 = vunpack.c.l.b16 %v74
    %v210 = vunpack.c.l.b16 %v75
    %v211 = vunpack.c.h.b16 %v75
    %v212 = vunpack.c.l.b16 %v76
    %v213 = vunpack.c.l.b16 %v77
    %v214 = vunpack.c.h.b16 %v77
    %v215 = vunpack.c.l.b16 %v78
    %v216 = vunpack.c.l.b16 %v79
    %v217 = vunpack.c.h.b16 %v79
    %v218 = vunpack.c.l.b16 %v80
    %v219 = vunpack.c.l.b16 %v81
    %v220 = vunpack.c.h.b16 %v81
    %v221 = vunpack.c.l.b16 %v82
    %v222 = vunpack.c.l.b16 %v83
    %v223 = vunpack.c.h.b16 %v83
    %v224 = vunpack.c.l.b16 %v84
    %v225 = vunpack.c.l.b16 %v85
    %v226 = vunpack.c.h.b16 %v85
    %v227 = vunpack.c.l.b16 %v86
    %v228 = vunpack.c.l.b16 %v87
    %v229 = vunpack.c.h.b16 %v87
    %v230 = vunpack.c.l.b16 %v88
    %v231 = vunpack.c.l.b16 %v89
    %v232 = vunpack.c.h.b16 %v89
    %v233 = vunpack.c.l.b16 %v90
    %v234 = vunpack.c.l.b16 %v91
    %v235 = vunpack.c.h.b16 %v91
    %v236 = vunpack.c.l.b16 %v92
    %v237 = vunpack.c.l.b16 %v93
    %v238 = vunpack.c.h.b16 %v93
    %v239 = vunpack.c.l.b16 %v94
    %v240 = vunpack.c.l.b16 %v95
    %v241 = vunpack.c.h.b16 %v95
    %v242 = vunpack.c.l.b16 %v96
    %v243 = vunpack.c.l.b16 %v97
    %v244 = vunpack.c.h.b16 %v97
    %v245 = vunpack.c.l.b16 %v98
    %v246 = vunpack.c.l.b16 %v99
    %v247 = vunpack.c.h.b16 %v99
    %v248 = vunpack.c.l.b16 %v100
    %v249 = vunpack.c.l.b16 %v101
    %v250 = vunpack.c.h.b16 %v101
    %v251 = vunpack.c.l.b16 %v102
    %v252 = vunpack.c.l.b16 %v103
    %v253 = vunpack.c.h.b16 %v103
    %v254 = vunpack.c.l.b16 %v104
    %v255 = vunpack.c.l.b16 %v105
    %v256 = vunpack.c.h.b16 %v105
    %v257 = vunpack.c.l.b16 %v106
    %v258 = vunpack.c.l.b16 %v107
    %v259 = vunpack.c.h.b16 %v107
    %v260 = vunpack.c.l.b16 %v108
    %v261 = vunpack.c.l.b16 %v109
    %v262 = vunpack.c.h.b16 %v109
    %v263 = vunpack.c.l.b16 %v110
    %v264 = vunpack.c.l.b16 %v111
    %v265 = vunpack.c.h.b16 %v111
    %v266 = vunpack.c.l.b16 %v112
    %v267 = vunpack.c.l.b16 %v113
    %v268 = vunpack.c.h.b16 %v113
    %v269 = vunpack.c.l.b16 %v114
    %v270 = vunpack.c.l.b16 %v115
    %v271 = vunpack.c.h.b16 %v115
    %v272 = vunpack.c.l.b16 %v116
    %v273 = vunpack.c.l.b16 %v117
    %v274 = vunpack.c.h.b16 %v117
    %v275 = vunpack.c.l.b16 %v118
    %v276 = vunpack.c.l.b16 %v119
    %v277 = vunpack.c.h.b16 %v119
    %v278 = vunpack.c.l.b16 %v120
    %v279 = vunpack.c.l.b16 %v121
    %v280 = vunpack.c.h.b16 %v121
    %v281 = vunpack.c.l.b16 %v122
    %v282 = vunpack.c.l.b16 %v123
    %v283 = vunpack.c.h.b16 %v123
    %v284 = vunpack.c.l.b16 %v124
    %v285 = vunpack.c.l.b16 %v125
    %v286 = vunpack.c.h.b16 %v125
    %v287 = vunpack.c.l.b16 %v126
    %v288 = vpack.c.b16 %v195, %v192
    %v289 = vpack.c.b16 %v196, %v193
    %v290 = vpack.c.b16 %v197, %v194
    %v291 = vpack.c.b16 %v201, %v198
    %v292 = vpack.c.b16 %v202, %v199
    %v293 = vpack.c.b16 %v203, %v200
    %v294 = vpack.c.b16 %v207, %v204
    %v295 = vpack.c.b16 %v208, %v205
    %v296 = vpack.c.b16 %v209, %v206
    %v297 = vpack.c.b16 %v213, %v210
    %v298 = vpack.c.b16 %v214, %v211
    %v299 = vpack.c.b16 %v215, %v212
    %v300 = vpack.c.b16 %v219, %v216
    %v301 = vpack.c.b16 %v220, %v217
    %v302 = vpack.c.b16 %v221, %v218
    %v303 = vpack.c.b16 %v225, %v222
    %v304 = vpack.c.b16 %v226, %v223
    %v305 = vpack.c.b16 %v227, %v224
    %v306 = vpack.c.b16 %v231, %v228
    %v307 = vpack.c.b16 %v232, %v229
    %v308 = vpack.c.b16 %v233, %v230
    %v309 = vpack.c.b16 %v237, %v234
    %v310 = vpack.c.b16 %v238, %v235
    %v311 = vpack.c.b16 %v239, %v236
    %v312 = vpack.c.b16 %v243, %v240
    %v313 = vpack.c.b16 %v244, %v241
    %v314 = vpack.c.b16 %v245, %v242
    %v315 = vpack.c.b16 %v249, %v246
    %v316 = vpack.c.b16 %v250, %v247
    %v317 = vpack.c.b16 %v251, %v248
    %v318 = vpack.c.b16 %v255, %v252
    %v319 = vpack.c.b16 %v256, %v253
    %v320 = vpack.c.b16 %v257, %v254
    %v321 = vpack.c.b16 %v261, %v258
    %v322 = vpack.c.b16 %v262, %v259
    %v323 = vpack.c.b16 %v263, %v260
    %v324 = vpack.c.b16 %v267, %v264
    %v325 = vpack.c.b16 %v268, %v265
    %v326 = vpack.c.b16 %v269, %v266
    %v327 = vpack.c.b16 %v273, %v270
    %v328 = vpack.c.b16 %v274, %v271
    %v329 = vpack.c.b16 %v275, %v272
    %v330 = vpack.c.b16 %v279, %v276
    %v331 = vpack.c.b16 %v280, %v277
    %v332 = vpack.c.b16 %v281, %v278
    %v333 = vpack.c.b16 %v285, %v282
    %v334 = vpack.c.b16 %v286, %v283
    %v335 = vpack.c.b16 %v287, %v284
    %384 = vmatprep.subr.bf16.mxu0 %v310
    %385 = vmatpush1.bf16.msra.mxu0 %v309
    %386 = vmatprep.subr.bf16.mxu0 %v307
    %387 = vmatpush1.bf16.msra.mxu0 %v306
    %388 = vmatprep.subr.bf16.mxu0 %v304
    %389 = vmatpush1.bf16.msra.mxu0 %v303
    %390 = vmatprep.subr.bf16.mxu0 %v301
    %391 = vmatpush1.bf16.msra.mxu0 %v300
    %392 = vmatprep.subr.bf16.mxu0 %v298
    %393 = vmatpush1.bf16.msra.mxu0 %v297
    %394 = vmatprep.subr.bf16.mxu0 %v295
    %395 = vmatpush1.bf16.msra.mxu0 %v294
    %396 = vmatprep.subr.bf16.mxu0 %v292
    %397 = vmatpush1.bf16.msra.mxu0 %v291
    %398 = vmatprep.subr.bf16.mxu0 %v289
    %399 = vmatpush1.bf16.msra.mxu0 %v288
    %400 = vmatprep.subr.bf16.mxu0 %v334
    %401 = vmatpush2.bf16.msra.mxu0 %v333
    %402 = vmatprep.subr.bf16.mxu0 %v331
    %403 = vmatpush2.bf16.msra.mxu0 %v330
    %404 = vmatprep.subr.bf16.mxu0 %v328
    %405 = vmatpush2.bf16.msra.mxu0 %v327
    %406 = vmatprep.subr.bf16.mxu0 %v325
    %407 = vmatpush2.bf16.msra.mxu0 %v324
    %408 = vmatprep.subr.bf16.mxu0 %v322
    %409 = vmatpush2.bf16.msra.mxu0 %v321
    %410 = vmatprep.subr.bf16.mxu0 %v319
    %411 = vmatpush2.bf16.msra.mxu0 %v318
    %412 = vmatprep.subr.bf16.mxu0 %v316
    %413 = vmatpush2.bf16.msra.mxu0 %v315
    %414 = vmatprep.subr.bf16.mxu0 %v313
    %415 = vmatpush2.bf16.msra.mxu0 %v312
    %416 = vmatprep.mubr.bf16.mxu0 %v62
    %417 = vmatmul.mubr.bf16.gmra.mxu0 %v61
    %v418 = vpop.f32.mrf.mxu0
    %v419 = vadd.f32 1e-09, %v418
    %v420 = vpop.f32.mrf.mxu0
    %v421 = vadd.f32 1e-09, %v420
    %v422 = vpop.f32.mrf.mxu0
    %v423 = vpop.f32.mrf.mxu0
    %424 = vdwg.mxu0
    %425 = vmatprep.subr.bf16.mxu0 0
    %426 = vmatpush1.bf16.msra.mxu0 %v311
    %427 = vmatprep.subr.bf16.mxu0 0
    %428 = vmatpush1.bf16.msra.mxu0 %v308
    %429 = vmatprep.subr.bf16.mxu0 0
    %430 = vmatpush1.bf16.msra.mxu0 %v305
    %431 = vmatprep.subr.bf16.mxu0 0
    %432 = vmatpush1.bf16.msra.mxu0 %v302
    %433 = vmatprep.subr.bf16.mxu0 0
    %434 = vmatpush1.bf16.msra.mxu0 %v299
    %435 = vmatprep.subr.bf16.mxu0 0
    %436 = vmatpush1.bf16.msra.mxu0 %v296
    %437 = vmatprep.subr.bf16.mxu0 0
    %438 = vmatpush1.bf16.msra.mxu0 %v293
    %439 = vmatprep.subr.bf16.mxu0 0
    %440 = vmatpush1.bf16.msra.mxu0 %v290
    %441 = vmatprep.subr.bf16.mxu0 0
    %442 = vmatpush2.bf16.msra.mxu0 %v335
    %443 = vmatprep.subr.bf16.mxu0 0
    %444 = vmatpush2.bf16.msra.mxu0 %v332
    %445 = vmatprep.subr.bf16.mxu0 0
    %446 = vmatpush2.bf16.msra.mxu0 %v329
    %447 = vmatprep.subr.bf16.mxu0 0
    %448 = vmatpush2.bf16.msra.mxu0 %v326
    %449 = vmatprep.subr.bf16.mxu0 0
    %450 = vmatpush2.bf16.msra.mxu0 %v323
    %451 = vmatprep.subr.bf16.mxu0 0
    %452 = vmatpush2.bf16.msra.mxu0 %v320
    %453 = vmatprep.subr.bf16.mxu0 0
    %454 = vmatpush2.bf16.msra.mxu0 %v317
    %455 = vmatprep.subr.bf16.mxu0 0
    %456 = vmatpush2.bf16.msra.mxu0 %v314
    %457 = vmatprep.mubr.bf16.mxu0 %v62
    %458 = vmatmul.mubr.bf16.gmra.mxu0 %v61
    %v459 = vpop.f32.mrf.mxu0
    %v460 = vadd.f32 1e-09, %v459
    %v461 = vpop.f32.mrf.mxu0
    %v462 = vpop.f32.mrf.mxu0
    %v463 = vpop.f32.mrf.mxu0
    %464 = vdwg.mxu0
    %v468 = vcombine.low %v419, %v421
    %v470 = vunpack.c.l.s4 1966171168
    %v471 = vunpack.c.0.s8 %v470
    %v472 = vlaneseq
    %v473 = vshrl.u32 %v472, 7
    %v474 = vsub.s32 %v471, %v473
    %v475 = vrot.slane %v468, %v474
    %v477 = vunpack.c.l.s4 1966171168
    %v478 = vunpack.c.0.s8 %v477
    %v479 = vlaneseq
    %v480 = vshrl.u32 %v479, 7
    %v481 = vsub.s32 %v478, %v480
    %v482 = vrot.slane %v460, %v481
    %v483 = vcombine.low %v475, %v482
    %v485 = vunpack.c.l.s4 1966171168
    %v486 = vunpack.c.0.s8 %v485
    %v487 = vlaneseq
    %v488 = vshrl.u32 %v487, 7
    %v489 = vsub.s32 %v486, %v488
    %v490 = vrot.slane %v483, %v489
    %v492 = vrcp.pop %v490
    %v493 = vmul.f32 %v127, %v492
    %v495 = vlaneseq
    %v496 = vshrl.u32 %v495, 7
    %v497 = vsub.s32 0, %v496
    %v498 = vrot.slane %v493, %v497
    %v499 = vlaneseq
    %v500 = vshrl.u32 %v499, 7
    %v501 = vsub.s32 1, %v500
    %v502 = vrot.slane %v493, %v501
    %v503 = vlaneseq
    %v504 = vshrl.u32 %v503, 7
    %v505 = vsub.s32 2, %v504
    %v506 = vrot.slane %v493, %v505
    %v510 = vpack.c.bf16 %v498, %v498
    %v511 = vpack.c.bf16 %v502, %v502
    %v512 = vpack.c.bf16 %v506, %v506
    %v513 = vld [vmem:[#allocation4] sm:$0xff]
    %v514 = vld [vmem:[#allocation4 + $0x8] sm:$0xff]
    %v515 = vld [vmem:[#allocation4 + $0x10] sm:$0xff]
    %v516 = vld [vmem:[#allocation4 + $0x18] sm:$0xff]
    %v517 = vld [vmem:[#allocation4 + $0x20] sm:$0xff]
    %v518 = vld [vmem:[#allocation4 + $0x28] sm:$0xff]
    %v519 = vld [vmem:[#allocation4 + $0x30] sm:$0xff]
    %v520 = vld [vmem:[#allocation4 + $0x38] sm:$0xff]
    %v521 = vld [vmem:[#allocation4 + $0x40] sm:$0xff]
    %v522 = vld [vmem:[#allocation4 + $0x48] sm:$0xff]
    %v523 = vld [vmem:[#allocation4 + $0x50] sm:$0xff]
    %v524 = vld [vmem:[#allocation4 + $0x58] sm:$0xff]
    %v525 = vld [vmem:[#allocation4 + $0x60] sm:$0xff]
    %v526 = vld [vmem:[#allocation4 + $0x68] sm:$0xff]
    %v527 = vld [vmem:[#allocation4 + $0x70] sm:$0xff]
    %v528 = vld [vmem:[#allocation4 + $0x78] sm:$0xff]
    %v529 = vld [vmem:[#allocation4 + $0x80] sm:$0xff]
    %v530 = vld [vmem:[#allocation4 + $0x88] sm:$0xff]
    %v531 = vld [vmem:[#allocation4 + $0x90] sm:$0xff]
    %v532 = vld [vmem:[#allocation4 + $0x98] sm:$0xff]
    %v533 = vld [vmem:[#allocation4 + $0xa0] sm:$0xff]
    %v534 = vld [vmem:[#allocation4 + $0xa8] sm:$0xff]
    %v535 = vld [vmem:[#allocation4 + $0xb0] sm:$0xff]
    %v536 = vld [vmem:[#allocation4 + $0xb8] sm:$0xff]
    %v537 = vld [vmem:[#allocation4 + $0xc0] sm:$0xff]
    %v538 = vld [vmem:[#allocation4 + $0xc8] sm:$0xff]
    %v539 = vld [vmem:[#allocation4 + $0xd0] sm:$0xff]
    %v540 = vld [vmem:[#allocation4 + $0xd8] sm:$0xff]
    %v541 = vld [vmem:[#allocation4 + $0xe0] sm:$0xff]
    %v542 = vld [vmem:[#allocation4 + $0xe8] sm:$0xff]
    %v543 = vld [vmem:[#allocation4 + $0xf0] sm:$0xff]
    %v544 = vld [vmem:[#allocation4 + $0xf8] sm:$0xff]
    %v545 = vld [vmem:[#allocation4 + $0x100] sm:$0xff]
    %v546 = vld [vmem:[#allocation4 + $0x108] sm:$0xff]
    %v547 = vld [vmem:[#allocation4 + $0x110] sm:$0xff]
    %v548 = vld [vmem:[#allocation4 + $0x118] sm:$0xff]
    %v549 = vld [vmem:[#allocation4 + $0x120] sm:$0xff]
    %v550 = vld [vmem:[#allocation4 + $0x128] sm:$0xff]
    %v551 = vld [vmem:[#allocation4 + $0x130] sm:$0xff]
    %v552 = vld [vmem:[#allocation4 + $0x138] sm:$0xff]
    %v553 = vld [vmem:[#allocation4 + $0x140] sm:$0xff]
    %v554 = vld [vmem:[#allocation4 + $0x148] sm:$0xff]
    %v555 = vld [vmem:[#allocation4 + $0x150] sm:$0xff]
    %v556 = vld [vmem:[#allocation4 + $0x158] sm:$0xff]
    %v557 = vld [vmem:[#allocation4 + $0x160] sm:$0xff]
    %v558 = vld [vmem:[#allocation4 + $0x168] sm:$0xff]
    %v559 = vld [vmem:[#allocation4 + $0x170] sm:$0xff]
    %v560 = vld [vmem:[#allocation4 + $0x178] sm:$0xff]
    %v609 = vunpack.c.l.b16 %v513
    %v610 = vunpack.c.h.b16 %v513
    %v611 = vunpack.c.l.b16 %v514
    %v612 = vunpack.c.h.b16 %v514
    %v613 = vunpack.c.l.b16 %v515
    %v614 = vunpack.c.h.b16 %v515
    %v615 = vunpack.c.l.b16 %v516
    %v616 = vunpack.c.h.b16 %v516
    %v617 = vunpack.c.l.b16 %v517
    %v618 = vunpack.c.h.b16 %v517
    %v619 = vunpack.c.l.b16 %v518
    %v620 = vunpack.c.h.b16 %v518
    %v621 = vunpack.c.l.b16 %v519
    %v622 = vunpack.c.h.b16 %v519
    %v623 = vunpack.c.l.b16 %v520
    %v624 = vunpack.c.h.b16 %v520
    %v625 = vunpack.c.l.b16 %v521
    %v626 = vunpack.c.h.b16 %v521
    %v627 = vunpack.c.l.b16 %v522
    %v628 = vunpack.c.h.b16 %v522
    %v629 = vunpack.c.l.b16 %v523
    %v630 = vunpack.c.h.b16 %v523
    %v631 = vunpack.c.l.b16 %v524
    %v632 = vunpack.c.h.b16 %v524
    %v633 = vunpack.c.l.b16 %v525
    %v634 = vunpack.c.h.b16 %v525
    %v635 = vunpack.c.l.b16 %v526
    %v636 = vunpack.c.h.b16 %v526
    %v637 = vunpack.c.l.b16 %v527
    %v638 = vunpack.c.h.b16 %v527
    %v639 = vunpack.c.l.b16 %v528
    %v640 = vunpack.c.h.b16 %v528
    %v641 = vunpack.c.l.b16 %v529
    %v642 = vunpack.c.h.b16 %v529
    %v643 = vunpack.c.l.b16 %v530
    %v644 = vunpack.c.h.b16 %v530
    %v645 = vunpack.c.l.b16 %v531
    %v646 = vunpack.c.h.b16 %v531
    %v647 = vunpack.c.l.b16 %v532
    %v648 = vunpack.c.h.b16 %v532
    %v649 = vunpack.c.l.b16 %v533
    %v650 = vunpack.c.h.b16 %v533
    %v651 = vunpack.c.l.b16 %v534
    %v652 = vunpack.c.h.b16 %v534
    %v653 = vunpack.c.l.b16 %v535
    %v654 = vunpack.c.h.b16 %v535
    %v655 = vunpack.c.l.b16 %v536
    %v656 = vunpack.c.h.b16 %v536
    %v657 = vunpack.c.l.b16 %v537
    %v658 = vunpack.c.h.b16 %v537
    %v659 = vunpack.c.l.b16 %v538
    %v660 = vunpack.c.h.b16 %v538
    %v661 = vunpack.c.l.b16 %v539
    %v662 = vunpack.c.h.b16 %v539
    %v663 = vunpack.c.l.b16 %v540
    %v664 = vunpack.c.h.b16 %v540
    %v665 = vunpack.c.l.b16 %v541
    %v666 = vunpack.c.h.b16 %v541
    %v667 = vunpack.c.l.b16 %v542
    %v668 = vunpack.c.h.b16 %v542
    %v669 = vunpack.c.l.b16 %v543
    %v670 = vunpack.c.h.b16 %v543
    %v671 = vunpack.c.l.b16 %v544
    %v672 = vunpack.c.h.b16 %v544
    %v673 = vunpack.c.l.b16 %v545
    %v674 = vunpack.c.h.b16 %v545
    %v675 = vunpack.c.l.b16 %v546
    %v676 = vunpack.c.h.b16 %v546
    %v677 = vunpack.c.l.b16 %v547
    %v678 = vunpack.c.h.b16 %v547
    %v679 = vunpack.c.l.b16 %v548
    %v680 = vunpack.c.h.b16 %v548
    %v681 = vunpack.c.l.b16 %v549
    %v682 = vunpack.c.h.b16 %v549
    %v683 = vunpack.c.l.b16 %v550
    %v684 = vunpack.c.h.b16 %v550
    %v685 = vunpack.c.l.b16 %v551
    %v686 = vunpack.c.h.b16 %v551
    %v687 = vunpack.c.l.b16 %v552
    %v688 = vunpack.c.h.b16 %v552
    %v689 = vunpack.c.l.b16 %v553
    %v690 = vunpack.c.h.b16 %v553
    %v691 = vunpack.c.l.b16 %v554
    %v692 = vunpack.c.h.b16 %v554
    %v693 = vunpack.c.l.b16 %v555
    %v694 = vunpack.c.h.b16 %v555
    %v695 = vunpack.c.l.b16 %v556
    %v696 = vunpack.c.h.b16 %v556
    %v697 = vunpack.c.l.b16 %v557
    %v698 = vunpack.c.h.b16 %v557
    %v699 = vunpack.c.l.b16 %v558
    %v700 = vunpack.c.h.b16 %v558
    %v701 = vunpack.c.l.b16 %v559
    %v702 = vunpack.c.h.b16 %v559
    %v703 = vunpack.c.l.b16 %v560
    %v704 = vunpack.c.h.b16 %v560
    %v705 = vpack.c.b16 %v611, %v609
    %v706 = vpack.c.b16 %v612, %v610
    %v707 = vpack.c.b16 %v615, %v613
    %v708 = vpack.c.b16 %v616, %v614
    %v709 = vpack.c.b16 %v619, %v617
    %v710 = vpack.c.b16 %v620, %v618
    %v711 = vpack.c.b16 %v623, %v621
    %v712 = vpack.c.b16 %v624, %v622
    %v713 = vpack.c.b16 %v627, %v625
    %v714 = vpack.c.b16 %v628, %v626
    %v715 = vpack.c.b16 %v631, %v629
    %v716 = vpack.c.b16 %v632, %v630
    %v717 = vpack.c.b16 %v635, %v633
    %v718 = vpack.c.b16 %v636, %v634
    %v719 = vpack.c.b16 %v639, %v637
    %v720 = vpack.c.b16 %v640, %v638
    %v721 = vpack.c.b16 %v643, %v641
    %v722 = vpack.c.b16 %v644, %v642
    %v723 = vpack.c.b16 %v647, %v645
    %v724 = vpack.c.b16 %v648, %v646
    %v725 = vpack.c.b16 %v651, %v649
    %v726 = vpack.c.b16 %v652, %v650
    %v727 = vpack.c.b16 %v655, %v653
    %v728 = vpack.c.b16 %v656, %v654
    %v729 = vpack.c.b16 %v659, %v657
    %v730 = vpack.c.b16 %v660, %v658
    %v731 = vpack.c.b16 %v663, %v661
    %v732 = vpack.c.b16 %v664, %v662
    %v733 = vpack.c.b16 %v667, %v665
    %v734 = vpack.c.b16 %v668, %v666
    %v735 = vpack.c.b16 %v671, %v669
    %v736 = vpack.c.b16 %v672, %v670
    %v737 = vpack.c.b16 %v675, %v673
    %v738 = vpack.c.b16 %v676, %v674
    %v739 = vpack.c.b16 %v679, %v677
    %v740 = vpack.c.b16 %v680, %v678
    %v741 = vpack.c.b16 %v683, %v681
    %v742 = vpack.c.b16 %v684, %v682
    %v743 = vpack.c.b16 %v687, %v685
    %v744 = vpack.c.b16 %v688, %v686
    %v745 = vpack.c.b16 %v691, %v689
    %v746 = vpack.c.b16 %v692, %v690
    %v747 = vpack.c.b16 %v695, %v693
    %v748 = vpack.c.b16 %v696, %v694
    %v749 = vpack.c.b16 %v699, %v697
    %v750 = vpack.c.b16 %v700, %v698
    %v751 = vpack.c.b16 %v703, %v701
    %v752 = vpack.c.b16 %v704, %v702
    %801 = vmatprep.subr.bf16.mxu0 %v720
    %802 = vmatpush1.bf16.msra.mxu0 %v719
    %803 = vmatprep.subr.bf16.mxu0 %v718
    %804 = vmatpush1.bf16.msra.mxu0 %v717
    %805 = vmatprep.subr.bf16.mxu0 %v716
    %806 = vmatpush1.bf16.msra.mxu0 %v715
    %807 = vmatprep.subr.bf16.mxu0 %v714
    %808 = vmatpush1.bf16.msra.mxu0 %v713
    %809 = vmatprep.subr.bf16.mxu0 %v712
    %810 = vmatpush1.bf16.msra.mxu0 %v711
    %811 = vmatprep.subr.bf16.mxu0 %v710
    %812 = vmatpush1.bf16.msra.mxu0 %v709
    %813 = vmatprep.subr.bf16.mxu0 %v708
    %814 = vmatpush1.bf16.msra.mxu0 %v707
    %815 = vmatprep.subr.bf16.mxu0 %v706
    %816 = vmatpush1.bf16.msra.mxu0 %v705
    %817 = vmatprep.subr.bf16.mxu0 %v736
    %818 = vmatpush2.bf16.msra.mxu0 %v735
    %819 = vmatprep.subr.bf16.mxu0 %v734
    %820 = vmatpush2.bf16.msra.mxu0 %v733
    %821 = vmatprep.subr.bf16.mxu0 %v732
    %822 = vmatpush2.bf16.msra.mxu0 %v731
    %823 = vmatprep.subr.bf16.mxu0 %v730
    %824 = vmatpush2.bf16.msra.mxu0 %v729
    %825 = vmatprep.subr.bf16.mxu0 %v728
    %826 = vmatpush2.bf16.msra.mxu0 %v727
    %827 = vmatprep.subr.bf16.mxu0 %v726
    %828 = vmatpush2.bf16.msra.mxu0 %v725
    %829 = vmatprep.subr.bf16.mxu0 %v724
    %830 = vmatpush2.bf16.msra.mxu0 %v723
    %831 = vmatprep.subr.bf16.mxu0 %v722
    %832 = vmatpush2.bf16.msra.mxu0 %v721
    %833 = vmatprep.mubr.bf16.mxu0 %v511
    %834 = vmatmul.mubr.bf16.gmra.mxu0 %v510
    %v835 = vpop.f32.mrf.mxu0
    %v836 = vadd.f32 0.0, %v835
    %v837 = vpop.f32.mrf.mxu0
    %v838 = vadd.f32 0.0, %v837
    %v839 = vpop.f32.mrf.mxu0
    %v840 = vpop.f32.mrf.mxu0
    %841 = vdwg.mxu0
    %842 = vmatprep.subr.bf16.mxu0 %v752
    %843 = vmatpush1.bf16.msra.mxu0 %v751
    %844 = vmatprep.subr.bf16.mxu0 %v750
    %845 = vmatpush1.bf16.msra.mxu0 %v749
    %846 = vmatprep.subr.bf16.mxu0 %v748
    %847 = vmatpush1.bf16.msra.mxu0 %v747
    %848 = vmatprep.subr.bf16.mxu0 %v746
    %849 = vmatpush1.bf16.msra.mxu0 %v745
    %850 = vmatprep.subr.bf16.mxu0 %v744
    %851 = vmatpush1.bf16.msra.mxu0 %v743
    %852 = vmatprep.subr.bf16.mxu0 %v742
    %853 = vmatpush1.bf16.msra.mxu0 %v741
    %854 = vmatprep.subr.bf16.mxu0 %v740
    %855 = vmatpush1.bf16.msra.mxu0 %v739
    %856 = vmatprep.subr.bf16.mxu0 %v738
    %857 = vmatpush1.bf16.msra.mxu0 %v737
    %858 = vmatprep.subr.bf16.mxu0 0
    %859 = vmatpush2.bf16.msra.mxu0 0
    %860 = vmatprep.subr.bf16.mxu0 0
    %861 = vmatpush2.bf16.msra.mxu0 0
    %862 = vmatprep.subr.bf16.mxu0 0
    %863 = vmatpush2.bf16.msra.mxu0 0
    %864 = vmatprep.subr.bf16.mxu0 0
    %865 = vmatpush2.bf16.msra.mxu0 0
    %866 = vmatprep.subr.bf16.mxu0 0
    %867 = vmatpush2.bf16.msra.mxu0 0
    %868 = vmatprep.subr.bf16.mxu0 0
    %869 = vmatpush2.bf16.msra.mxu0 0
    %870 = vmatprep.subr.bf16.mxu0 0
    %871 = vmatpush2.bf16.msra.mxu0 0
    %872 = vmatprep.subr.bf16.mxu0 0
    %873 = vmatpush2.bf16.msra.mxu0 0
    %874 = vmatprep.mubr.bf16.mxu0 0
    %875 = vmatmul.mubr.bf16.gmra.mxu0 %v512
    %v876 = vpop.f32.mrf.mxu0
    %v877 = vadd.f32 %v836, %v876
    %v878 = vpop.f32.mrf.mxu0
    %v879 = vadd.f32 %v838, %v878
    %v880 = vpop.f32.mrf.mxu0
    %v881 = vpop.f32.mrf.mxu0
    %882 = vdwg.mxu0
    %v885 = vcombine.low %v877, %v879
    %v887 = vunpack.c.l.s4 1966171168
    %v888 = vunpack.c.0.s8 %v887
    %v889 = vlaneseq
    %v890 = vshrl.u32 %v889, 7
    %v891 = vsub.s32 %v888, %v890
    %v892 = vrot.slane %v885, %v891
    %v894 = vunpack.c.l.s4 1966171168
    %v895 = vunpack.c.0.s8 %v894
    %v896 = vlaneseq
    %v897 = vshrl.u32 %v896, 7
    %v898 = vsub.s32 %v895, %v897
    %v899 = vrot.slane %v892, %v898
    %v901 = vmul.f32 %v49, %v899
    %v902 = vld [vmem:[%s4] sm:$0x3]
    %v903 = vmul.f32 %v901, %v902
    %v904 = vlaneseq
    %vm905 = vcmp.ge.s32.totalorder %v904, 0
    %vm906 = vcmp.lt.s32.totalorder %v904, 256
    %vm907 = vmand %vm905, %vm906
    %908 = vst.msk [vmem:[%s5] sm:$0x3] %vm907, %v903
    // Predicated region
    $region30: #{mlem_cnn_forward.18} parent=1 // pred_check
      _
    $region31: #{mlem_cnn_forward.18} parent=1 // pred_check_branch
      %910 = sbr.rel (0) target = $region33
    $region32: #{mlem_cnn_forward.18} parent=1 // pred_region
      _
    $region33: #{mlem_cnn_forward.18} parent=1 // pred_fallthru
      _
    // Predicated region
    $region34: #{mlem_cnn_forward.18} parent=1 // pred_check
      _
    $region35: #{mlem_cnn_forward.18} parent=1 // pred_check_branch
      %912 = sbr.rel (0) target = $region37
    $region36: #{mlem_cnn_forward.18} parent=1 // pred_region
      _
    $region37: #{mlem_cnn_forward.18} parent=1 // pred_fallthru
      _
    %913 = vsyncpa [#allocation3], 1
    %914 = vsyncpa [#allocation5], 1

// kernel: mlem_cnn_forward.20
$region0: #{mlem_cnn_forward.20}
  #allocation0 [shape = 'u32[]', space=smem, size = 0x4, offset = 0x4, fixed_abs, tag = 'smem constant byte address 0x4 - core index']
  #allocation1 [shape = 'u32[144,128]{1,0:T(1,128)}', space=vmem, size = 0x12000, scoped, tag = 'internal scratch']
  #allocation2 [shape = 'f32[1]{0:T(128)S(6)}', space=smem, size = 0x200, scoped, tag = 'scoped memory for mlem_cnn_forward.20']
  %s0 = inlined_call_operand.vmem [shape: bf16[8,400], index: 0, kind: input, shape index: {}]
  %s1 = inlined_call_operand.vmem [shape: bf16[400,256], index: 1, kind: input, shape index: {}]
  %s2 = inlined_call_operand.vmem [shape: f32[8,1], index: 2, kind: input, shape index: {}]
  %s3 = inlined_call_operand.<no memory space> [shape: f32[1], index: 3, kind: input, shape index: {}]
  %s4 = inlined_call_operand.vmem [shape: f32[8,256], index: 4, kind: output, shape index: {}]
  %s5 = sld [smem:[#allocation0]]
  $region26: #{mlem_cnn_forward.20} parent=0
    _
  %s7 = ssub.s32 1, %s5
  %s8 = scalar_select 0, %s7, %s5
  %9 = sst [smem:[#allocation2]] %s3
  // Predicated region
  $region2: #{mlem_cnn_forward.20} parent=0 // pred_check
    _
  $region3: #{mlem_cnn_forward.20} parent=0 // pred_check_branch
    %11 = sbr.rel (0) target = $region5
  $region4: #{mlem_cnn_forward.20} parent=0 // pred_region
    _
  $region5: #{mlem_cnn_forward.20} parent=0 // pred_fallthru
    _
  // Predicated region
  $region6: #{mlem_cnn_forward.20} parent=0 // pred_check
    _
  $region7: #{mlem_cnn_forward.20} parent=0 // pred_check_branch
    %13 = sbr.rel (0) target = $region9
  $region8: #{mlem_cnn_forward.20} parent=0 // pred_region
    _
  $region9: #{mlem_cnn_forward.20} parent=0 // pred_fallthru
    _
  // Predicated region
  $region10: #{mlem_cnn_forward.20} parent=0 // pred_check
    _
  $region11: #{mlem_cnn_forward.20} parent=0 // pred_check_branch
    %15 = sbr.rel (0) target = $region13
  $region12: #{mlem_cnn_forward.20} parent=0 // pred_region
    _
  $region13: #{mlem_cnn_forward.20} parent=0 // pred_fallthru
    _
  // Predicated region
  $region14: #{mlem_cnn_forward.20} parent=0 // pred_check
    _
  $region15: #{mlem_cnn_forward.20} parent=0 // pred_check_branch
    %17 = sbr.rel (0) target = $region17
  $region16: #{mlem_cnn_forward.20} parent=0 // pred_region
    _
  $region17: #{mlem_cnn_forward.20} parent=0 // pred_fallthru
    _
  %v19 = vld [vmem:[%s0] sm:$0xff]
  %v20 = vld [vmem:[%s0 + $0x8] sm:$0xff]
  %v21 = vld [vmem:[%s1] sm:$0xff]
  %v22 = vld [vmem:[%s1 + $0x8] sm:$0xff]
  %v23 = vld [vmem:[%s1 + $0x10] sm:$0xff]
  %v24 = vld [vmem:[%s1 + $0x18] sm:$0xff]
  %v25 = vld [vmem:[%s1 + $0x20] sm:$0xff]
  %v26 = vld [vmem:[%s1 + $0x28] sm:$0xff]
  %v27 = vld [vmem:[%s1 + $0x30] sm:$0xff]
  %v28 = vld [vmem:[%s1 + $0x38] sm:$0xff]
  %v29 = vld [vmem:[%s1 + $0x40] sm:$0xff]
  %v30 = vld [vmem:[%s1 + $0x48] sm:$0xff]
  %v31 = vld [vmem:[%s1 + $0x50] sm:$0xff]
  %v32 = vld [vmem:[%s1 + $0x58] sm:$0xff]
  %v33 = vld [vmem:[%s1 + $0x60] sm:$0xff]
  %v34 = vld [vmem:[%s1 + $0x68] sm:$0xff]
  %v35 = vld [vmem:[%s1 + $0x70] sm:$0xff]
  %v36 = vld [vmem:[%s1 + $0x78] sm:$0xff]
  %v37 = vld [vmem:[%s1 + $0x80] sm:$0xff]
  %v38 = vld [vmem:[%s1 + $0x88] sm:$0xff]
  %v39 = vld [vmem:[%s1 + $0x90] sm:$0xff]
  %v40 = vld [vmem:[%s1 + $0x98] sm:$0xff]
  %v41 = vld [vmem:[%s1 + $0xa0] sm:$0xff]
  %v42 = vld [vmem:[%s1 + $0xa8] sm:$0xff]
  %v43 = vld [vmem:[%s1 + $0xb0] sm:$0xff]
  %v44 = vld [vmem:[%s1 + $0xb8] sm:$0xff]
  %v45 = vld [vmem:[%s1 + $0xc0] sm:$0xff]
  %v46 = vld [vmem:[%s1 + $0xc8] sm:$0xff]
  %v47 = vld [vmem:[%s1 + $0xd0] sm:$0xff]
  %v48 = vld [vmem:[%s1 + $0xd8] sm:$0xff]
  %v49 = vld [vmem:[%s1 + $0xe0] sm:$0xff]
  %v50 = vld [vmem:[%s1 + $0xe8] sm:$0xff]
  %v51 = vld [vmem:[%s1 + $0xf0] sm:$0xff]
  %v52 = vld [vmem:[%s1 + $0xf8] sm:$0xff]
  %v53 = vld [vmem:[%s1 + $0x100] sm:$0xff]
  %v54 = vld [vmem:[%s1 + $0x108] sm:$0xff]
  %v55 = vld [vmem:[%s1 + $0x110] sm:$0xff]
  %v56 = vld [vmem:[%s1 + $0x118] sm:$0xff]
  %v57 = vld [vmem:[%s1 + $0x120] sm:$0xff]
  %v58 = vld [vmem:[%s1 + $0x128] sm:$0xff]
  %v59 = vld [vmem:[%s1 + $0x130] sm:$0xff]
  %v60 = vld [vmem:[%s1 + $0x138] sm:$0xff]
  %v61 = vld [vmem:[%s1 + $0x140] sm:$0xff]
  %v62 = vld [vmem:[%s1 + $0x148] sm:$0xff]
  %v63 = vld [vmem:[%s1 + $0x150] sm:$0xff]
  %v64 = vld [vmem:[%s1 + $0x158] sm:$0xff]
  %v65 = vld [vmem:[%s1 + $0x160] sm:$0xff]
  %v66 = vld [vmem:[%s1 + $0x168] sm:$0xff]
  %v67 = vld [vmem:[%s1 + $0x170] sm:$0xff]
  %v68 = vld [vmem:[%s1 + $0x178] sm:$0xff]
  %v69 = vld [vmem:[%s1 + $0x180] sm:$0xff]
  %v70 = vld [vmem:[%s1 + $0x188] sm:$0xff]
  %v71 = vld [vmem:[%s2] sm:$0xff]
  %73 = vset.pattern.permute.xlu0 0
  %74 = vperm.xlu0 %73, %v71
  %v75 = vpop.permute.xlu0 %74
  %v79 = vunpack.c.l.b16 %v19
  %v80 = vunpack.c.h.b16 %v19
  %v81 = vunpack.c.l.b16 %v20
  %v82 = vunpack.c.h.b16 %v20
  %v83 = vpack.c.b16 %v79, %v79
  %v84 = vpack.c.b16 %v80, %v80
  %v85 = vpack.c.b16 %v81, %v81
  %v86 = vpack.c.b16 %v82, %v82
  %v140 = vunpack.c.l.b16 %v21
  %v141 = vunpack.c.h.b16 %v21
  %v142 = vunpack.c.l.b16 %v22
  %v143 = vunpack.c.h.b16 %v22
  %v144 = vunpack.c.l.b16 %v23
  %v145 = vunpack.c.h.b16 %v23
  %v146 = vunpack.c.l.b16 %v24
  %v147 = vunpack.c.h.b16 %v24
  %v148 = vunpack.c.l.b16 %v25
  %v149 = vunpack.c.h.b16 %v25
  %v150 = vunpack.c.l.b16 %v26
  %v151 = vunpack.c.h.b16 %v26
  %v152 = vunpack.c.l.b16 %v27
  %v153 = vunpack.c.h.b16 %v27
  %v154 = vunpack.c.l.b16 %v28
  %v155 = vunpack.c.h.b16 %v28
  %v156 = vunpack.c.l.b16 %v29
  %v157 = vunpack.c.h.b16 %v29
  %v158 = vunpack.c.l.b16 %v30
  %v159 = vunpack.c.h.b16 %v30
  %v160 = vunpack.c.l.b16 %v31
  %v161 = vunpack.c.h.b16 %v31
  %v162 = vunpack.c.l.b16 %v32
  %v163 = vunpack.c.h.b16 %v32
  %v164 = vunpack.c.l.b16 %v33
  %v165 = vunpack.c.h.b16 %v33
  %v166 = vunpack.c.l.b16 %v34
  %v167 = vunpack.c.h.b16 %v34
  %v168 = vunpack.c.l.b16 %v35
  %v169 = vunpack.c.h.b16 %v35
  %v170 = vunpack.c.l.b16 %v36
  %v171 = vunpack.c.h.b16 %v36
  %v172 = vunpack.c.l.b16 %v37
  %v173 = vunpack.c.h.b16 %v37
  %v174 = vunpack.c.l.b16 %v38
  %v175 = vunpack.c.h.b16 %v38
  %v176 = vunpack.c.l.b16 %v39
  %v177 = vunpack.c.h.b16 %v39
  %v178 = vunpack.c.l.b16 %v40
  %v179 = vunpack.c.h.b16 %v40
  %v180 = vunpack.c.l.b16 %v41
  %v181 = vunpack.c.h.b16 %v41
  %v182 = vunpack.c.l.b16 %v42
  %v183 = vunpack.c.h.b16 %v42
  %v184 = vunpack.c.l.b16 %v43
  %v185 = vunpack.c.h.b16 %v43
  %v186 = vunpack.c.l.b16 %v44
  %v187 = vunpack.c.h.b16 %v44
  %v188 = vunpack.c.l.b16 %v45
  %v189 = vunpack.c.h.b16 %v45
  %v190 = vunpack.c.l.b16 %v46
  %v191 = vunpack.c.h.b16 %v46
  %v192 = vunpack.c.l.b16 %v47
  %v193 = vunpack.c.h.b16 %v47
  %v194 = vunpack.c.l.b16 %v48
  %v195 = vunpack.c.h.b16 %v48
  %v196 = vunpack.c.l.b16 %v49
  %v197 = vunpack.c.h.b16 %v49
  %v198 = vunpack.c.l.b16 %v50
  %v199 = vunpack.c.h.b16 %v50
  %v200 = vunpack.c.l.b16 %v51
  %v201 = vunpack.c.h.b16 %v51
  %v202 = vunpack.c.l.b16 %v52
  %v203 = vunpack.c.h.b16 %v52
  %v204 = vunpack.c.l.b16 %v53
  %v205 = vunpack.c.h.b16 %v53
  %v206 = vunpack.c.l.b16 %v54
  %v207 = vunpack.c.h.b16 %v54
  %v208 = vunpack.c.l.b16 %v55
  %v209 = vunpack.c.h.b16 %v55
  %v210 = vunpack.c.l.b16 %v56
  %v211 = vunpack.c.h.b16 %v56
  %v212 = vunpack.c.l.b16 %v57
  %v213 = vunpack.c.h.b16 %v57
  %v214 = vunpack.c.l.b16 %v58
  %v215 = vunpack.c.h.b16 %v58
  %v216 = vunpack.c.l.b16 %v59
  %v217 = vunpack.c.h.b16 %v59
  %v218 = vunpack.c.l.b16 %v60
  %v219 = vunpack.c.h.b16 %v60
  %v220 = vunpack.c.l.b16 %v61
  %v221 = vunpack.c.h.b16 %v61
  %v222 = vunpack.c.l.b16 %v62
  %v223 = vunpack.c.h.b16 %v62
  %v224 = vunpack.c.l.b16 %v63
  %v225 = vunpack.c.h.b16 %v63
  %v226 = vunpack.c.l.b16 %v64
  %v227 = vunpack.c.h.b16 %v64
  %v228 = vunpack.c.l.b16 %v65
  %v229 = vunpack.c.h.b16 %v65
  %v230 = vunpack.c.l.b16 %v66
  %v231 = vunpack.c.h.b16 %v66
  %v232 = vunpack.c.l.b16 %v67
  %v233 = vunpack.c.h.b16 %v67
  %v234 = vunpack.c.l.b16 %v68
  %v235 = vunpack.c.h.b16 %v68
  %v236 = vunpack.c.l.b16 %v69
  %v237 = vunpack.c.h.b16 %v69
  %v238 = vunpack.c.l.b16 %v70
  %v239 = vunpack.c.h.b16 %v70
  %v240 = vpack.c.b16 %v142, %v140
  %v241 = vpack.c.b16 %v143, %v141
  %v242 = vpack.c.b16 %v146, %v144
  %v243 = vpack.c.b16 %v147, %v145
  %v244 = vpack.c.b16 %v150, %v148
  %v245 = vpack.c.b16 %v151, %v149
  %v246 = vpack.c.b16 %v154, %v152
  %v247 = vpack.c.b16 %v155, %v153
  %v248 = vpack.c.b16 %v158, %v156
  %v249 = vpack.c.b16 %v159, %v157
  %v250 = vpack.c.b16 %v162, %v160
  %v251 = vpack.c.b16 %v163, %v161
  %v252 = vpack.c.b16 %v166, %v164
  %v253 = vpack.c.b16 %v167, %v165
  %v254 = vpack.c.b16 %v170, %v168
  %v255 = vpack.c.b16 %v171, %v169
  %v256 = vpack.c.b16 %v174, %v172
  %v257 = vpack.c.b16 %v175, %v173
  %v258 = vpack.c.b16 %v178, %v176
  %v259 = vpack.c.b16 %v179, %v177
  %v260 = vpack.c.b16 %v182, %v180
  %v261 = vpack.c.b16 %v183, %v181
  %v262 = vpack.c.b16 %v186, %v184
  %v263 = vpack.c.b16 %v187, %v185
  %v264 = vpack.c.b16 %v190, %v188
  %v265 = vpack.c.b16 %v191, %v189
  %v266 = vpack.c.b16 %v194, %v192
  %v267 = vpack.c.b16 %v195, %v193
  %v268 = vpack.c.b16 %v198, %v196
  %v269 = vpack.c.b16 %v199, %v197
  %v270 = vpack.c.b16 %v202, %v200
  %v271 = vpack.c.b16 %v203, %v201
  %v272 = vpack.c.b16 %v206, %v204
  %v273 = vpack.c.b16 %v207, %v205
  %v274 = vpack.c.b16 %v210, %v208
  %v275 = vpack.c.b16 %v211, %v209
  %v276 = vpack.c.b16 %v214, %v212
  %v277 = vpack.c.b16 %v215, %v213
  %v278 = vpack.c.b16 %v218, %v216
  %v279 = vpack.c.b16 %v219, %v217
  %v280 = vpack.c.b16 %v222, %v220
  %v281 = vpack.c.b16 %v223, %v221
  %v282 = vpack.c.b16 %v226, %v224
  %v283 = vpack.c.b16 %v227, %v225
  %v284 = vpack.c.b16 %v230, %v228
  %v285 = vpack.c.b16 %v231, %v229
  %v286 = vpack.c.b16 %v234, %v232
  %v287 = vpack.c.b16 %v235, %v233
  %v288 = vpack.c.b16 %v238, %v236
  %v289 = vpack.c.b16 %v239, %v237
  %vm340 = vcmask 130048
  %v342 = vsel %vm340, %v86, 0
  %344 = vmatprep.subr.bf16.mxu0 %v255
  %345 = vmatpush1.bf16.msra.mxu0 %v254
  %346 = vmatprep.subr.bf16.mxu0 %v253
  %347 = vmatpush1.bf16.msra.mxu0 %v252
  %348 = vmatprep.subr.bf16.mxu0 %v251
  %349 = vmatpush1.bf16.msra.mxu0 %v250
  %350 = vmatprep.subr.bf16.mxu0 %v249
  %351 = vmatpush1.bf16.msra.mxu0 %v248
  %352 = vmatprep.subr.bf16.mxu0 %v247
  %353 = vmatpush1.bf16.msra.mxu0 %v246
  %354 = vmatprep.subr.bf16.mxu0 %v245
  %355 = vmatpush1.bf16.msra.mxu0 %v244
  %356 = vmatprep.subr.bf16.mxu0 %v243
  %357 = vmatpush1.bf16.msra.mxu0 %v242
  %358 = vmatprep.subr.bf16.mxu0 %v241
  %359 = vmatpush1.bf16.msra.mxu0 %v240
  %360 = vmatprep.subr.bf16.mxu0 %v271
  %361 = vmatpush2.bf16.msra.mxu0 %v270
  %362 = vmatprep.subr.bf16.mxu0 %v269
  %363 = vmatpush2.bf16.msra.mxu0 %v268
  %364 = vmatprep.subr.bf16.mxu0 %v267
  %365 = vmatpush2.bf16.msra.mxu0 %v266
  %366 = vmatprep.subr.bf16.mxu0 %v265
  %367 = vmatpush2.bf16.msra.mxu0 %v264
  %368 = vmatprep.subr.bf16.mxu0 %v263
  %369 = vmatpush2.bf16.msra.mxu0 %v262
  %370 = vmatprep.subr.bf16.mxu0 %v261
  %371 = vmatpush2.bf16.msra.mxu0 %v260
  %372 = vmatprep.subr.bf16.mxu0 %v259
  %373 = vmatpush2.bf16.msra.mxu0 %v258
  %374 = vmatprep.subr.bf16.mxu0 %v257
  %375 = vmatpush2.bf16.msra.mxu0 %v256
  %376 = vmatprep.mubr.bf16.mxu0 %v84
  %377 = vmatmul.mubr.bf16.gmra.mxu0 %v83
  %v378 = vpop.f32.mrf.mxu0
  %v379 = vadd.f32 %v75, %v378
  %v380 = vpop.f32.mrf.mxu0
  %v381 = vadd.f32 %v75, %v380
  %v382 = vpop.f32.mrf.mxu0
  %v383 = vpop.f32.mrf.mxu0
  %384 = vdwg.mxu0
  %385 = vmatprep.subr.bf16.mxu0 %v287
  %386 = vmatpush1.bf16.msra.mxu0 %v286
  %387 = vmatprep.subr.bf16.mxu0 %v285
  %388 = vmatpush1.bf16.msra.mxu0 %v284
  %389 = vmatprep.subr.bf16.mxu0 %v283
  %390 = vmatpush1.bf16.msra.mxu0 %v282
  %391 = vmatprep.subr.bf16.mxu0 %v281
  %392 = vmatpush1.bf16.msra.mxu0 %v280
  %393 = vmatprep.subr.bf16.mxu0 %v279
  %394 = vmatpush1.bf16.msra.mxu0 %v278
  %395 = vmatprep.subr.bf16.mxu0 %v277
  %396 = vmatpush1.bf16.msra.mxu0 %v276
  %397 = vmatprep.subr.bf16.mxu0 %v275
  %398 = vmatpush1.bf16.msra.mxu0 %v274
  %399 = vmatprep.subr.bf16.mxu0 %v273
  %400 = vmatpush1.bf16.msra.mxu0 %v272
  %401 = vmatprep.subr.bf16.mxu0 0
  %402 = vmatpush2.bf16.msra.mxu0 0
  %403 = vmatprep.subr.bf16.mxu0 0
  %404 = vmatpush2.bf16.msra.mxu0 0
  %405 = vmatprep.subr.bf16.mxu0 0
  %406 = vmatpush2.bf16.msra.mxu0 0
  %407 = vmatprep.subr.bf16.mxu0 0
  %408 = vmatpush2.bf16.msra.mxu0 0
  %409 = vmatprep.subr.bf16.mxu0 0
  %410 = vmatpush2.bf16.msra.mxu0 0
  %411 = vmatprep.subr.bf16.mxu0 0
  %412 = vmatpush2.bf16.msra.mxu0 0
  %413 = vmatprep.subr.bf16.mxu0 0
  %414 = vmatpush2.bf16.msra.mxu0 0
  %415 = vmatprep.subr.bf16.mxu0 %v289
  %416 = vmatpush2.bf16.msra.mxu0 %v288
  %417 = vmatprep.mubr.bf16.mxu0 %v342
  %418 = vmatmul.mubr.bf16.gmra.mxu0 %v85
  %v419 = vpop.f32.mrf.mxu0
  %v420 = vadd.f32 %v379, %v419
  %v421 = vpop.f32.mrf.mxu0
  %v422 = vadd.f32 %v381, %v421
  %v423 = vpop.f32.mrf.mxu0
  %v424 = vpop.f32.mrf.mxu0
  %425 = vdwg.mxu0
  %s426 = sld [smem:[#allocation2]]
  %vm427 = vcmp.ge.f32.partialorder %v420, 0.0
  %vm428 = vcmp.ge.f32.partialorder %v422, 0.0
  %v429 = vstv %s426
  %v430 = vmul.f32 %v429, %v420
  %v431 = vmul.f32 %v429, %v422
  %v432 = vsel %vm427, %v420, %v430
  %v433 = vsel %vm428, %v422, %v431
  %434 = vst [vmem:[%s4] sm:$0xff] %v432
  %435 = vst [vmem:[%s4 + $0x8] sm:$0xff] %v433
  // Predicated region
  $region18: #{mlem_cnn_forward.20} parent=0 // pred_check
    _
  $region19: #{mlem_cnn_forward.20} parent=0 // pred_check_branch
    %437 = sbr.rel (0) target = $region21
  $region20: #{mlem_cnn_forward.20} parent=0 // pred_region
    _
  $region21: #{mlem_cnn_forward.20} parent=0 // pred_fallthru
    _
  // Predicated region
  $region22: #{mlem_cnn_forward.20} parent=0 // pred_check
    _
  $region23: #{mlem_cnn_forward.20} parent=0 // pred_check_branch
    %439 = sbr.rel (0) target = $region25
  $region24: #{mlem_cnn_forward.20} parent=0 // pred_region
    _
  $region25: #{mlem_cnn_forward.20} parent=0 // pred_fallthru
    _

// kernel: mlem_cnn_forward.24
$region0: #{mlem_cnn_forward.24}
  #allocation0 [shape = 'u32[]', space=smem, size = 0x4, offset = 0x4, fixed_abs, tag = 'smem constant byte address 0x4 - core index']
  #allocation1 [shape = 'u32[144,128]{1,0:T(1,128)}', space=vmem, size = 0x12000, scoped, tag = 'internal scratch']
  %s0 = inlined_call_operand.vmem [shape: f32[1,256], index: 0, kind: input, shape index: {}]
  %s1 = inlined_call_operand.vmem [shape: bf16[256,384], index: 1, kind: input, shape index: {}]
  %s2 = inlined_call_operand.vmem [shape: bf16[384,256], index: 2, kind: input, shape index: {}]
  %s3 = inlined_call_operand.vmem [shape: f32[1,384], index: 3, kind: input, shape index: {}]
  %s4 = inlined_call_operand.vmem [shape: f32[1,256], index: 4, kind: input, shape index: {}]
  %s5 = inlined_call_operand.vmem [shape: f32[1,256], index: 5, kind: output, shape index: {}]
  %s6 = sld [smem:[#allocation0]]
  $region30: #{mlem_cnn_forward.24} parent=0
    _
  %s8 = ssub.s32 1, %s6
  %s9 = scalar_select 0, %s8, %s6
  // Predicated region
  $region2: #{mlem_cnn_forward.24} parent=0 // pred_check
    _
  $region3: #{mlem_cnn_forward.24} parent=0 // pred_check_branch
    %11 = sbr.rel (0) target = $region5
  $region4: #{mlem_cnn_forward.24} parent=0 // pred_region
    _
  $region5: #{mlem_cnn_forward.24} parent=0 // pred_fallthru
    _
  // Predicated region
  $region6: #{mlem_cnn_forward.24} parent=0 // pred_check
    _
  $region7: #{mlem_cnn_forward.24} parent=0 // pred_check_branch
    %13 = sbr.rel (0) target = $region9
  $region8: #{mlem_cnn_forward.24} parent=0 // pred_region
    _
  $region9: #{mlem_cnn_forward.24} parent=0 // pred_fallthru
    _
  // Predicated region
  $region10: #{mlem_cnn_forward.24} parent=0 // pred_check
    _
  $region11: #{mlem_cnn_forward.24} parent=0 // pred_check_branch
    %15 = sbr.rel (0) target = $region13
  $region12: #{mlem_cnn_forward.24} parent=0 // pred_region
    _
  $region13: #{mlem_cnn_forward.24} parent=0 // pred_fallthru
    _
  // Predicated region
  $region14: #{mlem_cnn_forward.24} parent=0 // pred_check
    _
  $region15: #{mlem_cnn_forward.24} parent=0 // pred_check_branch
    %17 = sbr.rel (0) target = $region17
  $region16: #{mlem_cnn_forward.24} parent=0 // pred_region
    _
  $region17: #{mlem_cnn_forward.24} parent=0 // pred_fallthru
    _
  // Predicated region
  $region18: #{mlem_cnn_forward.24} parent=0 // pred_check
    _
  $region19: #{mlem_cnn_forward.24} parent=0 // pred_check_branch
    %19 = sbr.rel (0) target = $region21
  $region20: #{mlem_cnn_forward.24} parent=0 // pred_region
    _
  $region21: #{mlem_cnn_forward.24} parent=0 // pred_fallthru
    _
  %v21 = vld [vmem:[%s0] sm:$0x3]
  %v23 = vlaneseq
  %v24 = vshrl.u32 %v23, 7
  %v25 = vsub.s32 0, %v24
  %v26 = vrot.slane %v21, %v25
  %v27 = vlaneseq
  %v28 = vshrl.u32 %v27, 7
  %v29 = vsub.s32 1, %v28
  %v30 = vrot.slane %v21, %v29
  %v33 = vpack.c.bf16 %v26, %v26
  %v34 = vpack.c.bf16 %v30, %v30
  %v35 = vld [vmem:[%s1] sm:$0xff]
  %v36 = vld [vmem:[%s1 + $0x8] sm:$0xf]
  %v37 = vld [vmem:[%s1 + $0xc] sm:$0xff]
  %v38 = vld [vmem:[%s1 + $0x14] sm:$0xf]
  %v39 = vld [vmem:[%s1 + $0x18] sm:$0xff]
  %v40 = vld [vmem:[%s1 + $0x20] sm:$0xf]
  %v41 = vld [vmem:[%s1 + $0x24] sm:$0xff]
  %v42 = vld [vmem:[%s1 + $0x2c] sm:$0xf]
  %v43 = vld [vmem:[%s1 + $0x30] sm:$0xff]
  %v44 = vld [vmem:[%s1 + $0x38] sm:$0xf]
  %v45 = vld [vmem:[%s1 + $0x3c] sm:$0xff]
  %v46 = vld [vmem:[%s1 + $0x44] sm:$0xf]
  %v47 = vld [vmem:[%s1 + $0x48] sm:$0xff]
  %v48 = vld [vmem:[%s1 + $0x50] sm:$0xf]
  %v49 = vld [vmem:[%s1 + $0x54] sm:$0xff]
  %v50 = vld [vmem:[%s1 + $0x5c] sm:$0xf]
  %v51 = vld [vmem:[%s1 + $0x60] sm:$0xff]
  %v52 = vld [vmem:[%s1 + $0x68] sm:$0xf]
  %v53 = vld [vmem:[%s1 + $0x6c] sm:$0xff]
  %v54 = vld [vmem:[%s1 + $0x74] sm:$0xf]
  %v55 = vld [vmem:[%s1 + $0x78] sm:$0xff]
  %v56 = vld [vmem:[%s1 + $0x80] sm:$0xf]
  %v57 = vld [vmem:[%s1 + $0x84] sm:$0xff]
  %v58 = vld [vmem:[%s1 + $0x8c] sm:$0xf]
  %v59 = vld [vmem:[%s1 + $0x90] sm:$0xff]
  %v60 = vld [vmem:[%s1 + $0x98] sm:$0xf]
  %v61 = vld [vmem:[%s1 + $0x9c] sm:$0xff]
  %v62 = vld [vmem:[%s1 + $0xa4] sm:$0xf]
  %v63 = vld [vmem:[%s1 + $0xa8] sm:$0xff]
  %v64 = vld [vmem:[%s1 + $0xb0] sm:$0xf]
  %v65 = vld [vmem:[%s1 + $0xb4] sm:$0xff]
  %v66 = vld [vmem:[%s1 + $0xbc] sm:$0xf]
  %v67 = vld [vmem:[%s1 + $0xc0] sm:$0xff]
  %v68 = vld [vmem:[%s1 + $0xc8] sm:$0xf]
  %v69 = vld [vmem:[%s1 + $0xcc] sm:$0xff]
  %v70 = vld [vmem:[%s1 + $0xd4] sm:$0xf]
  %v71 = vld [vmem:[%s1 + $0xd8] sm:$0xff]
  %v72 = vld [vmem:[%s1 + $0xe0] sm:$0xf]
  %v73 = vld [vmem:[%s1 + $0xe4] sm:$0xff]
  %v74 = vld [vmem:[%s1 + $0xec] sm:$0xf]
  %v75 = vld [vmem:[%s1 + $0xf0] sm:$0xff]
  %v76 = vld [vmem:[%s1 + $0xf8] sm:$0xf]
  %v77 = vld [vmem:[%s1 + $0xfc] sm:$0xff]
  %v78 = vld [vmem:[%s1 + $0x104] sm:$0xf]
  %v79 = vld [vmem:[%s1 + $0x108] sm:$0xff]
  %v80 = vld [vmem:[%s1 + $0x110] sm:$0xf]
  %v81 = vld [vmem:[%s1 + $0x114] sm:$0xff]
  %v82 = vld [vmem:[%s1 + $0x11c] sm:$0xf]
  %v83 = vld [vmem:[%s1 + $0x120] sm:$0xff]
  %v84 = vld [vmem:[%s1 + $0x128] sm:$0xf]
  %v85 = vld [vmem:[%s1 + $0x12c] sm:$0xff]
  %v86 = vld [vmem:[%s1 + $0x134] sm:$0xf]
  %v87 = vld [vmem:[%s1 + $0x138] sm:$0xff]
  %v88 = vld [vmem:[%s1 + $0x140] sm:$0xf]
  %v89 = vld [vmem:[%s1 + $0x144] sm:$0xff]
  %v90 = vld [vmem:[%s1 + $0x14c] sm:$0xf]
  %v91 = vld [vmem:[%s1 + $0x150] sm:$0xff]
  %v92 = vld [vmem:[%s1 + $0x158] sm:$0xf]
  %v93 = vld [vmem:[%s1 + $0x15c] sm:$0xff]
  %v94 = vld [vmem:[%s1 + $0x164] sm:$0xf]
  %v95 = vld [vmem:[%s1 + $0x168] sm:$0xff]
  %v96 = vld [vmem:[%s1 + $0x170] sm:$0xf]
  %v97 = vld [vmem:[%s1 + $0x174] sm:$0xff]
  %v98 = vld [vmem:[%s1 + $0x17c] sm:$0xf]
  %v99 = vld [vmem:[%s3] sm:$0x7]
  %v164 = vunpack.c.l.b16 %v35
  %v165 = vunpack.c.h.b16 %v35
  %v166 = vunpack.c.l.b16 %v36
  %v167 = vunpack.c.l.b16 %v37
  %v168 = vunpack.c.h.b16 %v37
  %v169 = vunpack.c.l.b16 %v38
  %v170 = vunpack.c.l.b16 %v39
  %v171 = vunpack.c.h.b16 %v39
  %v172 = vunpack.c.l.b16 %v40
  %v173 = vunpack.c.l.b16 %v41
  %v174 = vunpack.c.h.b16 %v41
  %v175 = vunpack.c.l.b16 %v42
  %v176 = vunpack.c.l.b16 %v43
  %v177 = vunpack.c.h.b16 %v43
  %v178 = vunpack.c.l.b16 %v44
  %v179 = vunpack.c.l.b16 %v45
  %v180 = vunpack.c.h.b16 %v45
  %v181 = vunpack.c.l.b16 %v46
  %v182 = vunpack.c.l.b16 %v47
  %v183 = vunpack.c.h.b16 %v47
  %v184 = vunpack.c.l.b16 %v48
  %v185 = vunpack.c.l.b16 %v49
  %v186 = vunpack.c.h.b16 %v49
  %v187 = vunpack.c.l.b16 %v50
  %v188 = vunpack.c.l.b16 %v51
  %v189 = vunpack.c.h.b16 %v51
  %v190 = vunpack.c.l.b16 %v52
  %v191 = vunpack.c.l.b16 %v53
  %v192 = vunpack.c.h.b16 %v53
  %v193 = vunpack.c.l.b16 %v54
  %v194 = vunpack.c.l.b16 %v55
  %v195 = vunpack.c.h.b16 %v55
  %v196 = vunpack.c.l.b16 %v56
  %v197 = vunpack.c.l.b16 %v57
  %v198 = vunpack.c.h.b16 %v57
  %v199 = vunpack.c.l.b16 %v58
  %v200 = vunpack.c.l.b16 %v59
  %v201 = vunpack.c.h.b16 %v59
  %v202 = vunpack.c.l.b16 %v60
  %v203 = vunpack.c.l.b16 %v61
  %v204 = vunpack.c.h.b16 %v61
  %v205 = vunpack.c.l.b16 %v62
  %v206 = vunpack.c.l.b16 %v63
  %v207 = vunpack.c.h.b16 %v63
  %v208 = vunpack.c.l.b16 %v64
  %v209 = vunpack.c.l.b16 %v65
  %v210 = vunpack.c.h.b16 %v65
  %v211 = vunpack.c.l.b16 %v66
  %v212 = vunpack.c.l.b16 %v67
  %v213 = vunpack.c.h.b16 %v67
  %v214 = vunpack.c.l.b16 %v68
  %v215 = vunpack.c.l.b16 %v69
  %v216 = vunpack.c.h.b16 %v69
  %v217 = vunpack.c.l.b16 %v70
  %v218 = vunpack.c.l.b16 %v71
  %v219 = vunpack.c.h.b16 %v71
  %v220 = vunpack.c.l.b16 %v72
  %v221 = vunpack.c.l.b16 %v73
  %v222 = vunpack.c.h.b16 %v73
  %v223 = vunpack.c.l.b16 %v74
  %v224 = vunpack.c.l.b16 %v75
  %v225 = vunpack.c.h.b16 %v75
  %v226 = vunpack.c.l.b16 %v76
  %v227 = vunpack.c.l.b16 %v77
  %v228 = vunpack.c.h.b16 %v77
  %v229 = vunpack.c.l.b16 %v78
  %v230 = vunpack.c.l.b16 %v79
  %v231 = vunpack.c.h.b16 %v79
  %v232 = vunpack.c.l.b16 %v80
  %v233 = vunpack.c.l.b16 %v81
  %v234 = vunpack.c.h.b16 %v81
  %v235 = vunpack.c.l.b16 %v82
  %v236 = vunpack.c.l.b16 %v83
  %v237 = vunpack.c.h.b16 %v83
  %v238 = vunpack.c.l.b16 %v84
  %v239 = vunpack.c.l.b16 %v85
  %v240 = vunpack.c.h.b16 %v85
  %v241 = vunpack.c.l.b16 %v86
  %v242 = vunpack.c.l.b16 %v87
  %v243 = vunpack.c.h.b16 %v87
  %v244 = vunpack.c.l.b16 %v88
  %v245 = vunpack.c.l.b16 %v89
  %v246 = vunpack.c.h.b16 %v89
  %v247 = vunpack.c.l.b16 %v90
  %v248 = vunpack.c.l.b16 %v91
  %v249 = vunpack.c.h.b16 %v91
  %v250 = vunpack.c.l.b16 %v92
  %v251 = vunpack.c.l.b16 %v93
  %v252 = vunpack.c.h.b16 %v93
  %v253 = vunpack.c.l.b16 %v94
  %v254 = vunpack.c.l.b16 %v95
  %v255 = vunpack.c.h.b16 %v95
  %v256 = vunpack.c.l.b16 %v96
  %v257 = vunpack.c.l.b16 %v97
  %v258 = vunpack.c.h.b16 %v97
  %v259 = vunpack.c.l.b16 %v98
  %v260 = vpack.c.b16 %v167, %v164
  %v261 = vpack.c.b16 %v168, %v165
  %v262 = vpack.c.b16 %v169, %v166
  %v263 = vpack.c.b16 %v173, %v170
  %v264 = vpack.c.b16 %v174, %v171
  %v265 = vpack.c.b16 %v175, %v172
  %v266 = vpack.c.b16 %v179, %v176
  %v267 = vpack.c.b16 %v180, %v177
  %v268 = vpack.c.b16 %v181, %v178
  %v269 = vpack.c.b16 %v185, %v182
  %v270 = vpack.c.b16 %v186, %v183
  %v271 = vpack.c.b16 %v187, %v184
  %v272 = vpack.c.b16 %v191, %v188
  %v273 = vpack.c.b16 %v192, %v189
  %v274 = vpack.c.b16 %v193, %v190
  %v275 = vpack.c.b16 %v197, %v194
  %v276 = vpack.c.b16 %v198, %v195
  %v277 = vpack.c.b16 %v199, %v196
  %v278 = vpack.c.b16 %v203, %v200
  %v279 = vpack.c.b16 %v204, %v201
  %v280 = vpack.c.b16 %v205, %v202
  %v281 = vpack.c.b16 %v209, %v206
  %v282 = vpack.c.b16 %v210, %v207
  %v283 = vpack.c.b16 %v211, %v208
  %v284 = vpack.c.b16 %v215, %v212
  %v285 = vpack.c.b16 %v216, %v213
  %v286 = vpack.c.b16 %v217, %v214
  %v287 = vpack.c.b16 %v221, %v218
  %v288 = vpack.c.b16 %v222, %v219
  %v289 = vpack.c.b16 %v223, %v220
  %v290 = vpack.c.b16 %v227, %v224
  %v291 = vpack.c.b16 %v228, %v225
  %v292 = vpack.c.b16 %v229, %v226
  %v293 = vpack.c.b16 %v233, %v230
  %v294 = vpack.c.b16 %v234, %v231
  %v295 = vpack.c.b16 %v235, %v232
  %v296 = vpack.c.b16 %v239, %v236
  %v297 = vpack.c.b16 %v240, %v237
  %v298 = vpack.c.b16 %v241, %v238
  %v299 = vpack.c.b16 %v245, %v242
  %v300 = vpack.c.b16 %v246, %v243
  %v301 = vpack.c.b16 %v247, %v244
  %v302 = vpack.c.b16 %v251, %v248
  %v303 = vpack.c.b16 %v252, %v249
  %v304 = vpack.c.b16 %v253, %v250
  %v305 = vpack.c.b16 %v257, %v254
  %v306 = vpack.c.b16 %v258, %v255
  %v307 = vpack.c.b16 %v259, %v256
  %356 = vmatprep.subr.bf16.mxu0 %v282
  %357 = vmatpush1.bf16.msra.mxu0 %v281
  %358 = vmatprep.subr.bf16.mxu0 %v279
  %359 = vmatpush1.bf16.msra.mxu0 %v278
  %360 = vmatprep.subr.bf16.mxu0 %v276
  %361 = vmatpush1.bf16.msra.mxu0 %v275
  %362 = vmatprep.subr.bf16.mxu0 %v273
  %363 = vmatpush1.bf16.msra.mxu0 %v272
  %364 = vmatprep.subr.bf16.mxu0 %v270
  %365 = vmatpush1.bf16.msra.mxu0 %v269
  %366 = vmatprep.subr.bf16.mxu0 %v267
  %367 = vmatpush1.bf16.msra.mxu0 %v266
  %368 = vmatprep.subr.bf16.mxu0 %v264
  %369 = vmatpush1.bf16.msra.mxu0 %v263
  %370 = vmatprep.subr.bf16.mxu0 %v261
  %371 = vmatpush1.bf16.msra.mxu0 %v260
  %372 = vmatprep.subr.bf16.mxu0 %v306
  %373 = vmatpush2.bf16.msra.mxu0 %v305
  %374 = vmatprep.subr.bf16.mxu0 %v303
  %375 = vmatpush2.bf16.msra.mxu0 %v302
  %376 = vmatprep.subr.bf16.mxu0 %v300
  %377 = vmatpush2.bf16.msra.mxu0 %v299
  %378 = vmatprep.subr.bf16.mxu0 %v297
  %379 = vmatpush2.bf16.msra.mxu0 %v296
  %380 = vmatprep.subr.bf16.mxu0 %v294
  %381 = vmatpush2.bf16.msra.mxu0 %v293
  %382 = vmatprep.subr.bf16.mxu0 %v291
  %383 = vmatpush2.bf16.msra.mxu0 %v290
  %384 = vmatprep.subr.bf16.mxu0 %v288
  %385 = vmatpush2.bf16.msra.mxu0 %v287
  %386 = vmatprep.subr.bf16.mxu0 %v285
  %387 = vmatpush2.bf16.msra.mxu0 %v284
  %388 = vmatprep.mubr.bf16.mxu0 %v34
  %389 = vmatmul.mubr.bf16.gmra.mxu0 %v33
  %v390 = vpop.f32.mrf.mxu0
  %v391 = vadd.f32 1e-09, %v390
  %v392 = vpop.f32.mrf.mxu0
  %v393 = vadd.f32 1e-09, %v392
  %v394 = vpop.f32.mrf.mxu0
  %v395 = vpop.f32.mrf.mxu0
  %396 = vdwg.mxu0
  %397 = vmatprep.subr.bf16.mxu0 0
  %398 = vmatpush1.bf16.msra.mxu0 %v283
  %399 = vmatprep.subr.bf16.mxu0 0
  %400 = vmatpush1.bf16.msra.mxu0 %v280
  %401 = vmatprep.subr.bf16.mxu0 0
  %402 = vmatpush1.bf16.msra.mxu0 %v277
  %403 = vmatprep.subr.bf16.mxu0 0
  %404 = vmatpush1.bf16.msra.mxu0 %v274
  %405 = vmatprep.subr.bf16.mxu0 0
  %406 = vmatpush1.bf16.msra.mxu0 %v271
  %407 = vmatprep.subr.bf16.mxu0 0
  %408 = vmatpush1.bf16.msra.mxu0 %v268
  %409 = vmatprep.subr.bf16.mxu0 0
  %410 = vmatpush1.bf16.msra.mxu0 %v265
  %411 = vmatprep.subr.bf16.mxu0 0
  %412 = vmatpush1.bf16.msra.mxu0 %v262
  %413 = vmatprep.subr.bf16.mxu0 0
  %414 = vmatpush2.bf16.msra.mxu0 %v307
  %415 = vmatprep.subr.bf16.mxu0 0
  %416 = vmatpush2.bf16.msra.mxu0 %v304
  %417 = vmatprep.subr.bf16.mxu0 0
  %418 = vmatpush2.bf16.msra.mxu0 %v301
  %419 = vmatprep.subr.bf16.mxu0 0
  %420 = vmatpush2.bf16.msra.mxu0 %v298
  %421 = vmatprep.subr.bf16.mxu0 0
  %422 = vmatpush2.bf16.msra.mxu0 %v295
  %423 = vmatprep.subr.bf16.mxu0 0
  %424 = vmatpush2.bf16.msra.mxu0 %v292
  %425 = vmatprep.subr.bf16.mxu0 0
  %426 = vmatpush2.bf16.msra.mxu0 %v289
  %427 = vmatprep.subr.bf16.mxu0 0
  %428 = vmatpush2.bf16.msra.mxu0 %v286
  %429 = vmatprep.mubr.bf16.mxu0 %v34
  %430 = vmatmul.mubr.bf16.gmra.mxu0 %v33
  %v431 = vpop.f32.mrf.mxu0
  %v432 = vadd.f32 1e-09, %v431
  %v433 = vpop.f32.mrf.mxu0
  %v434 = vpop.f32.mrf.mxu0
  %v435 = vpop.f32.mrf.mxu0
  %436 = vdwg.mxu0
  %v440 = vcombine.low %v391, %v393
  %v442 = vunpack.c.l.s4 1966171168
  %v443 = vunpack.c.0.s8 %v442
  %v444 = vlaneseq
  %v445 = vshrl.u32 %v444, 7
  %v446 = vsub.s32 %v443, %v445
  %v447 = vrot.slane %v440, %v446
  %v449 = vunpack.c.l.s4 1966171168
  %v450 = vunpack.c.0.s8 %v449
  %v451 = vlaneseq
  %v452 = vshrl.u32 %v451, 7
  %v453 = vsub.s32 %v450, %v452
  %v454 = vrot.slane %v432, %v453
  %v455 = vcombine.low %v447, %v454
  %v457 = vunpack.c.l.s4 1966171168
  %v458 = vunpack.c.0.s8 %v457
  %v459 = vlaneseq
  %v460 = vshrl.u32 %v459, 7
  %v461 = vsub.s32 %v458, %v460
  %v462 = vrot.slane %v455, %v461
  %v464 = vrcp.pop %v462
  %v465 = vmul.f32 %v99, %v464
  %v467 = vlaneseq
  %v468 = vshrl.u32 %v467, 7
  %v469 = vsub.s32 0, %v468
  %v470 = vrot.slane %v465, %v469
  %v471 = vlaneseq
  %v472 = vshrl.u32 %v471, 7
  %v473 = vsub.s32 1, %v472
  %v474 = vrot.slane %v465, %v473
  %v475 = vlaneseq
  %v476 = vshrl.u32 %v475, 7
  %v477 = vsub.s32 2, %v476
  %v478 = vrot.slane %v465, %v477
  %v482 = vpack.c.bf16 %v470, %v470
  %v483 = vpack.c.bf16 %v474, %v474
  %v484 = vpack.c.bf16 %v478, %v478
  %v485 = vld [vmem:[%s2] sm:$0xff]
  %v486 = vld [vmem:[%s2 + $0x8] sm:$0xff]
  %v487 = vld [vmem:[%s2 + $0x10] sm:$0xff]
  %v488 = vld [vmem:[%s2 + $0x18] sm:$0xff]
  %v489 = vld [vmem:[%s2 + $0x20] sm:$0xff]
  %v490 = vld [vmem:[%s2 + $0x28] sm:$0xff]
  %v491 = vld [vmem:[%s2 + $0x30] sm:$0xff]
  %v492 = vld [vmem:[%s2 + $0x38] sm:$0xff]
  %v493 = vld [vmem:[%s2 + $0x40] sm:$0xff]
  %v494 = vld [vmem:[%s2 + $0x48] sm:$0xff]
  %v495 = vld [vmem:[%s2 + $0x50] sm:$0xff]
  %v496 = vld [vmem:[%s2 + $0x58] sm:$0xff]
  %v497 = vld [vmem:[%s2 + $0x60] sm:$0xff]
  %v498 = vld [vmem:[%s2 + $0x68] sm:$0xff]
  %v499 = vld [vmem:[%s2 + $0x70] sm:$0xff]
  %v500 = vld [vmem:[%s2 + $0x78] sm:$0xff]
  %v501 = vld [vmem:[%s2 + $0x80] sm:$0xff]
  %v502 = vld [vmem:[%s2 + $0x88] sm:$0xff]
  %v503 = vld [vmem:[%s2 + $0x90] sm:$0xff]
  %v504 = vld [vmem:[%s2 + $0x98] sm:$0xff]
  %v505 = vld [vmem:[%s2 + $0xa0] sm:$0xff]
  %v506 = vld [vmem:[%s2 + $0xa8] sm:$0xff]
  %v507 = vld [vmem:[%s2 + $0xb0] sm:$0xff]
  %v508 = vld [vmem:[%s2 + $0xb8] sm:$0xff]
  %v509 = vld [vmem:[%s2 + $0xc0] sm:$0xff]
  %v510 = vld [vmem:[%s2 + $0xc8] sm:$0xff]
  %v511 = vld [vmem:[%s2 + $0xd0] sm:$0xff]
  %v512 = vld [vmem:[%s2 + $0xd8] sm:$0xff]
  %v513 = vld [vmem:[%s2 + $0xe0] sm:$0xff]
  %v514 = vld [vmem:[%s2 + $0xe8] sm:$0xff]
  %v515 = vld [vmem:[%s2 + $0xf0] sm:$0xff]
  %v516 = vld [vmem:[%s2 + $0xf8] sm:$0xff]
  %v517 = vld [vmem:[%s2 + $0x100] sm:$0xff]
  %v518 = vld [vmem:[%s2 + $0x108] sm:$0xff]
  %v519 = vld [vmem:[%s2 + $0x110] sm:$0xff]
  %v520 = vld [vmem:[%s2 + $0x118] sm:$0xff]
  %v521 = vld [vmem:[%s2 + $0x120] sm:$0xff]
  %v522 = vld [vmem:[%s2 + $0x128] sm:$0xff]
  %v523 = vld [vmem:[%s2 + $0x130] sm:$0xff]
  %v524 = vld [vmem:[%s2 + $0x138] sm:$0xff]
  %v525 = vld [vmem:[%s2 + $0x140] sm:$0xff]
  %v526 = vld [vmem:[%s2 + $0x148] sm:$0xff]
  %v527 = vld [vmem:[%s2 + $0x150] sm:$0xff]
  %v528 = vld [vmem:[%s2 + $0x158] sm:$0xff]
  %v529 = vld [vmem:[%s2 + $0x160] sm:$0xff]
  %v530 = vld [vmem:[%s2 + $0x168] sm:$0xff]
  %v531 = vld [vmem:[%s2 + $0x170] sm:$0xff]
  %v532 = vld [vmem:[%s2 + $0x178] sm:$0xff]
  %v581 = vunpack.c.l.b16 %v485
  %v582 = vunpack.c.h.b16 %v485
  %v583 = vunpack.c.l.b16 %v486
  %v584 = vunpack.c.h.b16 %v486
  %v585 = vunpack.c.l.b16 %v487
  %v586 = vunpack.c.h.b16 %v487
  %v587 = vunpack.c.l.b16 %v488
  %v588 = vunpack.c.h.b16 %v488
  %v589 = vunpack.c.l.b16 %v489
  %v590 = vunpack.c.h.b16 %v489
  %v591 = vunpack.c.l.b16 %v490
  %v592 = vunpack.c.h.b16 %v490
  %v593 = vunpack.c.l.b16 %v491
  %v594 = vunpack.c.h.b16 %v491
  %v595 = vunpack.c.l.b16 %v492
  %v596 = vunpack.c.h.b16 %v492
  %v597 = vunpack.c.l.b16 %v493
  %v598 = vunpack.c.h.b16 %v493
  %v599 = vunpack.c.l.b16 %v494
  %v600 = vunpack.c.h.b16 %v494
  %v601 = vunpack.c.l.b16 %v495
  %v602 = vunpack.c.h.b16 %v495
  %v603 = vunpack.c.l.b16 %v496
  %v604 = vunpack.c.h.b16 %v496
  %v605 = vunpack.c.l.b16 %v497
  %v606 = vunpack.c.h.b16 %v497
  %v607 = vunpack.c.l.b16 %v498
  %v608 = vunpack.c.h.b16 %v498
  %v609 = vunpack.c.l.b16 %v499
  %v610 = vunpack.c.h.b16 %v499
  %v611 = vunpack.c.l.b16 %v500
  %v612 = vunpack.c.h.b16 %v500
  %v613 = vunpack.c.l.b16 %v501
  %v614 = vunpack.c.h.b16 %v501
  %v615 = vunpack.c.l.b16 %v502
  %v616 = vunpack.c.h.b16 %v502
  %v617 = vunpack.c.l.b16 %v503
  %v618 = vunpack.c.h.b16 %v503
  %v619 = vunpack.c.l.b16 %v504
  %v620 = vunpack.c.h.b16 %v504
  %v621 = vunpack.c.l.b16 %v505
  %v622 = vunpack.c.h.b16 %v505
  %v623 = vunpack.c.l.b16 %v506
  %v624 = vunpack.c.h.b16 %v506
  %v625 = vunpack.c.l.b16 %v507
  %v626 = vunpack.c.h.b16 %v507
  %v627 = vunpack.c.l.b16 %v508
  %v628 = vunpack.c.h.b16 %v508
  %v629 = vunpack.c.l.b16 %v509
  %v630 = vunpack.c.h.b16 %v509
  %v631 = vunpack.c.l.b16 %v510
  %v632 = vunpack.c.h.b16 %v510
  %v633 = vunpack.c.l.b16 %v511
  %v634 = vunpack.c.h.b16 %v511
  %v635 = vunpack.c.l.b16 %v512
  %v636 = vunpack.c.h.b16 %v512
  %v637 = vunpack.c.l.b16 %v513
  %v638 = vunpack.c.h.b16 %v513
  %v639 = vunpack.c.l.b16 %v514
  %v640 = vunpack.c.h.b16 %v514
  %v641 = vunpack.c.l.b16 %v515
  %v642 = vunpack.c.h.b16 %v515
  %v643 = vunpack.c.l.b16 %v516
  %v644 = vunpack.c.h.b16 %v516
  %v645 = vunpack.c.l.b16 %v517
  %v646 = vunpack.c.h.b16 %v517
  %v647 = vunpack.c.l.b16 %v518
  %v648 = vunpack.c.h.b16 %v518
  %v649 = vunpack.c.l.b16 %v519
  %v650 = vunpack.c.h.b16 %v519
  %v651 = vunpack.c.l.b16 %v520
  %v652 = vunpack.c.h.b16 %v520
  %v653 = vunpack.c.l.b16 %v521
  %v654 = vunpack.c.h.b16 %v521
  %v655 = vunpack.c.l.b16 %v522
  %v656 = vunpack.c.h.b16 %v522
  %v657 = vunpack.c.l.b16 %v523
  %v658 = vunpack.c.h.b16 %v523
  %v659 = vunpack.c.l.b16 %v524
  %v660 = vunpack.c.h.b16 %v524
  %v661 = vunpack.c.l.b16 %v525
  %v662 = vunpack.c.h.b16 %v525
  %v663 = vunpack.c.l.b16 %v526
  %v664 = vunpack.c.h.b16 %v526
  %v665 = vunpack.c.l.b16 %v527
  %v666 = vunpack.c.h.b16 %v527
  %v667 = vunpack.c.l.b16 %v528
  %v668 = vunpack.c.h.b16 %v528
  %v669 = vunpack.c.l.b16 %v529
  %v670 = vunpack.c.h.b16 %v529
  %v671 = vunpack.c.l.b16 %v530
  %v672 = vunpack.c.h.b16 %v530
  %v673 = vunpack.c.l.b16 %v531
  %v674 = vunpack.c.h.b16 %v531
  %v675 = vunpack.c.l.b16 %v532
  %v676 = vunpack.c.h.b16 %v532
  %v677 = vpack.c.b16 %v583, %v581
  %v678 = vpack.c.b16 %v584, %v582
  %v679 = vpack.c.b16 %v587, %v585
  %v680 = vpack.c.b16 %v588, %v586
  %v681 = vpack.c.b16 %v591, %v589
  %v682 = vpack.c.b16 %v592, %v590
  %v683 = vpack.c.b16 %v595, %v593
  %v684 = vpack.c.b16 %v596, %v594
  %v685 = vpack.c.b16 %v599, %v597
  %v686 = vpack.c.b16 %v600, %v598
  %v687 = vpack.c.b16 %v603, %v601
  %v688 = vpack.c.b16 %v604, %v602
  %v689 = vpack.c.b16 %v607, %v605
  %v690 = vpack.c.b16 %v608, %v606
  %v691 = vpack.c.b16 %v611, %v609
  %v692 = vpack.c.b16 %v612, %v610
  %v693 = vpack.c.b16 %v615, %v613
  %v694 = vpack.c.b16 %v616, %v614
  %v695 = vpack.c.b16 %v619, %v617
  %v696 = vpack.c.b16 %v620, %v618
  %v697 = vpack.c.b16 %v623, %v621
  %v698 = vpack.c.b16 %v624, %v622
  %v699 = vpack.c.b16 %v627, %v625
  %v700 = vpack.c.b16 %v628, %v626
  %v701 = vpack.c.b16 %v631, %v629
  %v702 = vpack.c.b16 %v632, %v630
  %v703 = vpack.c.b16 %v635, %v633
  %v704 = vpack.c.b16 %v636, %v634
  %v705 = vpack.c.b16 %v639, %v637
  %v706 = vpack.c.b16 %v640, %v638
  %v707 = vpack.c.b16 %v643, %v641
  %v708 = vpack.c.b16 %v644, %v642
  %v709 = vpack.c.b16 %v647, %v645
  %v710 = vpack.c.b16 %v648, %v646
  %v711 = vpack.c.b16 %v651, %v649
  %v712 = vpack.c.b16 %v652, %v650
  %v713 = vpack.c.b16 %v655, %v653
  %v714 = vpack.c.b16 %v656, %v654
  %v715 = vpack.c.b16 %v659, %v657
  %v716 = vpack.c.b16 %v660, %v658
  %v717 = vpack.c.b16 %v663, %v661
  %v718 = vpack.c.b16 %v664, %v662
  %v719 = vpack.c.b16 %v667, %v665
  %v720 = vpack.c.b16 %v668, %v666
  %v721 = vpack.c.b16 %v671, %v669
  %v722 = vpack.c.b16 %v672, %v670
  %v723 = vpack.c.b16 %v675, %v673
  %v724 = vpack.c.b16 %v676, %v674
  %773 = vmatprep.subr.bf16.mxu0 %v692
  %774 = vmatpush1.bf16.msra.mxu0 %v691
  %775 = vmatprep.subr.bf16.mxu0 %v690
  %776 = vmatpush1.bf16.msra.mxu0 %v689
  %777 = vmatprep.subr.bf16.mxu0 %v688
  %778 = vmatpush1.bf16.msra.mxu0 %v687
  %779 = vmatprep.subr.bf16.mxu0 %v686
  %780 = vmatpush1.bf16.msra.mxu0 %v685
  %781 = vmatprep.subr.bf16.mxu0 %v684
  %782 = vmatpush1.bf16.msra.mxu0 %v683
  %783 = vmatprep.subr.bf16.mxu0 %v682
  %784 = vmatpush1.bf16.msra.mxu0 %v681
  %785 = vmatprep.subr.bf16.mxu0 %v680
  %786 = vmatpush1.bf16.msra.mxu0 %v679
  %787 = vmatprep.subr.bf16.mxu0 %v678
  %788 = vmatpush1.bf16.msra.mxu0 %v677
  %789 = vmatprep.subr.bf16.mxu0 %v708
  %790 = vmatpush2.bf16.msra.mxu0 %v707
  %791 = vmatprep.subr.bf16.mxu0 %v706
  %792 = vmatpush2.bf16.msra.mxu0 %v705
  %793 = vmatprep.subr.bf16.mxu0 %v704
  %794 = vmatpush2.bf16.msra.mxu0 %v703
  %795 = vmatprep.subr.bf16.mxu0 %v702
  %796 = vmatpush2.bf16.msra.mxu0 %v701
  %797 = vmatprep.subr.bf16.mxu0 %v700
  %798 = vmatpush2.bf16.msra.mxu0 %v699
  %799 = vmatprep.subr.bf16.mxu0 %v698
  %800 = vmatpush2.bf16.msra.mxu0 %v697
  %801 = vmatprep.subr.bf16.mxu0 %v696
  %802 = vmatpush2.bf16.msra.mxu0 %v695
  %803 = vmatprep.subr.bf16.mxu0 %v694
  %804 = vmatpush2.bf16.msra.mxu0 %v693
  %805 = vmatprep.mubr.bf16.mxu0 %v483
  %806 = vmatmul.mubr.bf16.gmra.mxu0 %v482
  %v807 = vpop.f32.mrf.mxu0
  %v808 = vadd.f32 0.0, %v807
  %v809 = vpop.f32.mrf.mxu0
  %v810 = vadd.f32 0.0, %v809
  %v811 = vpop.f32.mrf.mxu0
  %v812 = vpop.f32.mrf.mxu0
  %813 = vdwg.mxu0
  %814 = vmatprep.subr.bf16.mxu0 %v724
  %815 = vmatpush1.bf16.msra.mxu0 %v723
  %816 = vmatprep.subr.bf16.mxu0 %v722
  %817 = vmatpush1.bf16.msra.mxu0 %v721
  %818 = vmatprep.subr.bf16.mxu0 %v720
  %819 = vmatpush1.bf16.msra.mxu0 %v719
  %820 = vmatprep.subr.bf16.mxu0 %v718
  %821 = vmatpush1.bf16.msra.mxu0 %v717
  %822 = vmatprep.subr.bf16.mxu0 %v716
  %823 = vmatpush1.bf16.msra.mxu0 %v715
  %824 = vmatprep.subr.bf16.mxu0 %v714
  %825 = vmatpush1.bf16.msra.mxu0 %v713
  %826 = vmatprep.subr.bf16.mxu0 %v712
  %827 = vmatpush1.bf16.msra.mxu0 %v711
  %828 = vmatprep.subr.bf16.mxu0 %v710
  %829 = vmatpush1.bf16.msra.mxu0 %v709
  %830 = vmatprep.subr.bf16.mxu0 0
  %831 = vmatpush2.bf16.msra.mxu0 0
  %832 = vmatprep.subr.bf16.mxu0 0
  %833 = vmatpush2.bf16.msra.mxu0 0
  %834 = vmatprep.subr.bf16.mxu0 0
  %835 = vmatpush2.bf16.msra.mxu0 0
  %836 = vmatprep.subr.bf16.mxu0 0
  %837 = vmatpush2.bf16.msra.mxu0 0
  %838 = vmatprep.subr.bf16.mxu0 0
  %839 = vmatpush2.bf16.msra.mxu0 0
  %840 = vmatprep.subr.bf16.mxu0 0
  %841 = vmatpush2.bf16.msra.mxu0 0
  %842 = vmatprep.subr.bf16.mxu0 0
  %843 = vmatpush2.bf16.msra.mxu0 0
  %844 = vmatprep.subr.bf16.mxu0 0
  %845 = vmatpush2.bf16.msra.mxu0 0
  %846 = vmatprep.mubr.bf16.mxu0 0
  %847 = vmatmul.mubr.bf16.gmra.mxu0 %v484
  %v848 = vpop.f32.mrf.mxu0
  %v849 = vadd.f32 %v808, %v848
  %v850 = vpop.f32.mrf.mxu0
  %v851 = vadd.f32 %v810, %v850
  %v852 = vpop.f32.mrf.mxu0
  %v853 = vpop.f32.mrf.mxu0
  %854 = vdwg.mxu0
  %v857 = vcombine.low %v849, %v851
  %v859 = vunpack.c.l.s4 1966171168
  %v860 = vunpack.c.0.s8 %v859
  %v861 = vlaneseq
  %v862 = vshrl.u32 %v861, 7
  %v863 = vsub.s32 %v860, %v862
  %v864 = vrot.slane %v857, %v863
  %v866 = vunpack.c.l.s4 1966171168
  %v867 = vunpack.c.0.s8 %v866
  %v868 = vlaneseq
  %v869 = vshrl.u32 %v868, 7
  %v870 = vsub.s32 %v867, %v869
  %v871 = vrot.slane %v864, %v870
  %v873 = vmul.f32 %v21, %v871
  %v874 = vld [vmem:[%s4] sm:$0x3]
  %v875 = vmul.f32 %v873, %v874
  %v876 = vlaneseq
  %vm877 = vcmp.ge.s32.totalorder %v876, 0
  %vm878 = vcmp.lt.s32.totalorder %v876, 256
  %vm879 = vmand %vm877, %vm878
  %880 = vst.msk [vmem:[%s5] sm:$0x3] %vm879, %v875
  // Predicated region
  $region22: #{mlem_cnn_forward.24} parent=0 // pred_check
    _
  $region23: #{mlem_cnn_forward.24} parent=0 // pred_check_branch
    %882 = sbr.rel (0) target = $region25
  $region24: #{mlem_cnn_forward.24} parent=0 // pred_region
    _
  $region25: #{mlem_cnn_forward.24} parent=0 // pred_fallthru
    _
  // Predicated region
  $region26: #{mlem_cnn_forward.24} parent=0 // pred_check
    _
  $region27: #{mlem_cnn_forward.24} parent=0 // pred_check_branch
    %884 = sbr.rel (0) target = $region29
  $region28: #{mlem_cnn_forward.24} parent=0 // pred_region
    _
  $region29: #{mlem_cnn_forward.24} parent=0 // pred_fallthru
    _

// kernel: mlem_cnn_forward.23
$region0: #{mlem_cnn_forward.23}
  #allocation0 [shape = 'u32[]', space=smem, size = 0x4, offset = 0x4, fixed_abs, tag = 'smem constant byte address 0x4 - core index']
  #allocation1 [shape = 'u32[144,128]{1,0:T(1,128)}', space=vmem, size = 0x12000, scoped, tag = 'internal scratch']
  #allocation2 [shape = 'f32[1,1]{1,0:T(1,128)S(1)}', space=vmem, size = 0x200, scoped, tag = 'scoped memory for mlem_cnn_forward.23']
  #allocation3 [shape = 'f32[1]{0:T(128)S(6)}', space=smem, size = 0x200, scoped, tag = 'scoped memory for mlem_cnn_forward.23']
  %s0 = inlined_call_operand.vmem [shape: bf16[1,400], index: 0, kind: input, shape index: {}]
  %s1 = inlined_call_operand.vmem [shape: bf16[400,256], index: 1, kind: input, shape index: {}]
  %s2 = inlined_call_operand.<no memory space> [shape: f32[1,1], index: 2, kind: input, shape index: {}]
  %s3 = inlined_call_operand.<no memory space> [shape: f32[1], index: 3, kind: input, shape index: {}]
  %s4 = inlined_call_operand.vmem [shape: f32[1,256], index: 4, kind: input, shape index: {}]
  %s5 = inlined_call_operand.vmem [shape: f32[1,256], index: 5, kind: output, shape index: {}]
  %s6 = sld [smem:[#allocation0]]
  $region30: #{mlem_cnn_forward.23} parent=0
    _
  %s8 = ssub.s32 1, %s6
  %s9 = scalar_select 0, %s8, %s6
  %v10 = vstv %s2
  %11 = vst [vmem:[#allocation2] sm:$0x1] %v10
  %12 = sst [smem:[#allocation3]] %s3
  // Predicated region
  $region2: #{mlem_cnn_forward.23} parent=0 // pred_check
    _
  $region3: #{mlem_cnn_forward.23} parent=0 // pred_check_branch
    %14 = sbr.rel (0) target = $region5
  $region4: #{mlem_cnn_forward.23} parent=0 // pred_region
    _
  $region5: #{mlem_cnn_forward.23} parent=0 // pred_fallthru
    _
  // Predicated region
  $region6: #{mlem_cnn_forward.23} parent=0 // pred_check
    _
  $region7: #{mlem_cnn_forward.23} parent=0 // pred_check_branch
    %16 = sbr.rel (0) target = $region9
  $region8: #{mlem_cnn_forward.23} parent=0 // pred_region
    _
  $region9: #{mlem_cnn_forward.23} parent=0 // pred_fallthru
    _
  // Predicated region
  $region10: #{mlem_cnn_forward.23} parent=0 // pred_check
    _
  $region11: #{mlem_cnn_forward.23} parent=0 // pred_check_branch
    %18 = sbr.rel (0) target = $region13
  $region12: #{mlem_cnn_forward.23} parent=0 // pred_region
    _
  $region13: #{mlem_cnn_forward.23} parent=0 // pred_fallthru
    _
  // Predicated region
  $region14: #{mlem_cnn_forward.23} parent=0 // pred_check
    _
  $region15: #{mlem_cnn_forward.23} parent=0 // pred_check_branch
    %20 = sbr.rel (0) target = $region17
  $region16: #{mlem_cnn_forward.23} parent=0 // pred_region
    _
  $region17: #{mlem_cnn_forward.23} parent=0 // pred_fallthru
    _
  // Predicated region
  $region18: #{mlem_cnn_forward.23} parent=0 // pred_check
    _
  $region19: #{mlem_cnn_forward.23} parent=0 // pred_check_branch
    %22 = sbr.rel (0) target = $region21
  $region20: #{mlem_cnn_forward.23} parent=0 // pred_region
    _
  $region21: #{mlem_cnn_forward.23} parent=0 // pred_fallthru
    _
  %v24 = vld [vmem:[%s0] sm:$0xf]
  %v25 = vld [vmem:[%s1] sm:$0xff]
  %v26 = vld [vmem:[%s1 + $0x8] sm:$0xff]
  %v27 = vld [vmem:[%s1 + $0x10] sm:$0xff]
  %v28 = vld [vmem:[%s1 + $0x18] sm:$0xff]
  %v29 = vld [vmem:[%s1 + $0x20] sm:$0xff]
  %v30 = vld [vmem:[%s1 + $0x28] sm:$0xff]
  %v31 = vld [vmem:[%s1 + $0x30] sm:$0xff]
  %v32 = vld [vmem:[%s1 + $0x38] sm:$0xff]
  %v33 = vld [vmem:[%s1 + $0x40] sm:$0xff]
  %v34 = vld [vmem:[%s1 + $0x48] sm:$0xff]
  %v35 = vld [vmem:[%s1 + $0x50] sm:$0xff]
  %v36 = vld [vmem:[%s1 + $0x58] sm:$0xff]
  %v37 = vld [vmem:[%s1 + $0x60] sm:$0xff]
  %v38 = vld [vmem:[%s1 + $0x68] sm:$0xff]
  %v39 = vld [vmem:[%s1 + $0x70] sm:$0xff]
  %v40 = vld [vmem:[%s1 + $0x78] sm:$0xff]
  %v41 = vld [vmem:[%s1 + $0x80] sm:$0xff]
  %v42 = vld [vmem:[%s1 + $0x88] sm:$0xff]
  %v43 = vld [vmem:[%s1 + $0x90] sm:$0xff]
  %v44 = vld [vmem:[%s1 + $0x98] sm:$0xff]
  %v45 = vld [vmem:[%s1 + $0xa0] sm:$0xff]
  %v46 = vld [vmem:[%s1 + $0xa8] sm:$0xff]
  %v47 = vld [vmem:[%s1 + $0xb0] sm:$0xff]
  %v48 = vld [vmem:[%s1 + $0xb8] sm:$0xff]
  %v49 = vld [vmem:[%s1 + $0xc0] sm:$0xff]
  %v50 = vld [vmem:[%s1 + $0xc8] sm:$0xff]
  %v51 = vld [vmem:[%s1 + $0xd0] sm:$0xff]
  %v52 = vld [vmem:[%s1 + $0xd8] sm:$0xff]
  %v53 = vld [vmem:[%s1 + $0xe0] sm:$0xff]
  %v54 = vld [vmem:[%s1 + $0xe8] sm:$0xff]
  %v55 = vld [vmem:[%s1 + $0xf0] sm:$0xff]
  %v56 = vld [vmem:[%s1 + $0xf8] sm:$0xff]
  %v57 = vld [vmem:[%s1 + $0x100] sm:$0xff]
  %v58 = vld [vmem:[%s1 + $0x108] sm:$0xff]
  %v59 = vld [vmem:[%s1 + $0x110] sm:$0xff]
  %v60 = vld [vmem:[%s1 + $0x118] sm:$0xff]
  %v61 = vld [vmem:[%s1 + $0x120] sm:$0xff]
  %v62 = vld [vmem:[%s1 + $0x128] sm:$0xff]
  %v63 = vld [vmem:[%s1 + $0x130] sm:$0xff]
  %v64 = vld [vmem:[%s1 + $0x138] sm:$0xff]
  %v65 = vld [vmem:[%s1 + $0x140] sm:$0xff]
  %v66 = vld [vmem:[%s1 + $0x148] sm:$0xff]
  %v67 = vld [vmem:[%s1 + $0x150] sm:$0xff]
  %v68 = vld [vmem:[%s1 + $0x158] sm:$0xff]
  %v69 = vld [vmem:[%s1 + $0x160] sm:$0xff]
  %v70 = vld [vmem:[%s1 + $0x168] sm:$0xff]
  %v71 = vld [vmem:[%s1 + $0x170] sm:$0xff]
  %v72 = vld [vmem:[%s1 + $0x178] sm:$0xff]
  %v73 = vld [vmem:[%s1 + $0x180] sm:$0xff]
  %v74 = vld [vmem:[%s1 + $0x188] sm:$0xff]
  %v75 = vld [vmem:[#allocation2] sm:$0x1]
  %77 = vset.pattern.permute.xlu0 0
  %78 = vperm.xlu0 %77, %v75
  %v79 = vpop.permute.xlu0 %78
  %v81 = vlaneseq
  %v82 = vshrl.u32 %v81, 7
  %v83 = vsub.s32 0, %v82
  %v84 = vrot.slane %v79, %v83
  %v87 = vunpack.c.l.s4 1966171168
  %v88 = vunpack.c.0.s8 %v87
  %v89 = vlaneseq
  %v90 = vshrl.u32 %v89, 7
  %v91 = vsub.s32 %v88, %v90
  %v92 = vrot.slane %v24, %v91
  %v93 = vcombine.high %v92, %v92
  %v95 = vunpack.c.l.s4 1966171168
  %v96 = vunpack.c.0.s8 %v95
  %v97 = vlaneseq
  %v98 = vshrl.u32 %v97, 7
  %v99 = vsub.s32 %v96, %v98
  %v100 = vrot.slane %v92, %v99
  %v102 = vunpack.c.l.s4 1966171168
  %v103 = vunpack.c.0.s8 %v102
  %v104 = vlaneseq
  %v105 = vshrl.u32 %v104, 7
  %v106 = vsub.s32 %v103, %v105
  %v107 = vrot.slane %v93, %v106
  %v108 = vcombine.high %v100, %v100
  %v109 = vcombine.high %v107, %v107
  %v163 = vunpack.c.l.b16 %v25
  %v164 = vunpack.c.h.b16 %v25
  %v165 = vunpack.c.l.b16 %v26
  %v166 = vunpack.c.h.b16 %v26
  %v167 = vunpack.c.l.b16 %v27
  %v168 = vunpack.c.h.b16 %v27
  %v169 = vunpack.c.l.b16 %v28
  %v170 = vunpack.c.h.b16 %v28
  %v171 = vunpack.c.l.b16 %v29
  %v172 = vunpack.c.h.b16 %v29
  %v173 = vunpack.c.l.b16 %v30
  %v174 = vunpack.c.h.b16 %v30
  %v175 = vunpack.c.l.b16 %v31
  %v176 = vunpack.c.h.b16 %v31
  %v177 = vunpack.c.l.b16 %v32
  %v178 = vunpack.c.h.b16 %v32
  %v179 = vunpack.c.l.b16 %v33
  %v180 = vunpack.c.h.b16 %v33
  %v181 = vunpack.c.l.b16 %v34
  %v182 = vunpack.c.h.b16 %v34
  %v183 = vunpack.c.l.b16 %v35
  %v184 = vunpack.c.h.b16 %v35
  %v185 = vunpack.c.l.b16 %v36
  %v186 = vunpack.c.h.b16 %v36
  %v187 = vunpack.c.l.b16 %v37
  %v188 = vunpack.c.h.b16 %v37
  %v189 = vunpack.c.l.b16 %v38
  %v190 = vunpack.c.h.b16 %v38
  %v191 = vunpack.c.l.b16 %v39
  %v192 = vunpack.c.h.b16 %v39
  %v193 = vunpack.c.l.b16 %v40
  %v194 = vunpack.c.h.b16 %v40
  %v195 = vunpack.c.l.b16 %v41
  %v196 = vunpack.c.h.b16 %v41
  %v197 = vunpack.c.l.b16 %v42
  %v198 = vunpack.c.h.b16 %v42
  %v199 = vunpack.c.l.b16 %v43
  %v200 = vunpack.c.h.b16 %v43
  %v201 = vunpack.c.l.b16 %v44
  %v202 = vunpack.c.h.b16 %v44
  %v203 = vunpack.c.l.b16 %v45
  %v204 = vunpack.c.h.b16 %v45
  %v205 = vunpack.c.l.b16 %v46
  %v206 = vunpack.c.h.b16 %v46
  %v207 = vunpack.c.l.b16 %v47
  %v208 = vunpack.c.h.b16 %v47
  %v209 = vunpack.c.l.b16 %v48
  %v210 = vunpack.c.h.b16 %v48
  %v211 = vunpack.c.l.b16 %v49
  %v212 = vunpack.c.h.b16 %v49
  %v213 = vunpack.c.l.b16 %v50
  %v214 = vunpack.c.h.b16 %v50
  %v215 = vunpack.c.l.b16 %v51
  %v216 = vunpack.c.h.b16 %v51
  %v217 = vunpack.c.l.b16 %v52
  %v218 = vunpack.c.h.b16 %v52
  %v219 = vunpack.c.l.b16 %v53
  %v220 = vunpack.c.h.b16 %v53
  %v221 = vunpack.c.l.b16 %v54
  %v222 = vunpack.c.h.b16 %v54
  %v223 = vunpack.c.l.b16 %v55
  %v224 = vunpack.c.h.b16 %v55
  %v225 = vunpack.c.l.b16 %v56
  %v226 = vunpack.c.h.b16 %v56
  %v227 = vunpack.c.l.b16 %v57
  %v228 = vunpack.c.h.b16 %v57
  %v229 = vunpack.c.l.b16 %v58
  %v230 = vunpack.c.h.b16 %v58
  %v231 = vunpack.c.l.b16 %v59
  %v232 = vunpack.c.h.b16 %v59
  %v233 = vunpack.c.l.b16 %v60
  %v234 = vunpack.c.h.b16 %v60
  %v235 = vunpack.c.l.b16 %v61
  %v236 = vunpack.c.h.b16 %v61
  %v237 = vunpack.c.l.b16 %v62
  %v238 = vunpack.c.h.b16 %v62
  %v239 = vunpack.c.l.b16 %v63
  %v240 = vunpack.c.h.b16 %v63
  %v241 = vunpack.c.l.b16 %v64
  %v242 = vunpack.c.h.b16 %v64
  %v243 = vunpack.c.l.b16 %v65
  %v244 = vunpack.c.h.b16 %v65
  %v245 = vunpack.c.l.b16 %v66
  %v246 = vunpack.c.h.b16 %v66
  %v247 = vunpack.c.l.b16 %v67
  %v248 = vunpack.c.h.b16 %v67
  %v249 = vunpack.c.l.b16 %v68
  %v250 = vunpack.c.h.b16 %v68
  %v251 = vunpack.c.l.b16 %v69
  %v252 = vunpack.c.h.b16 %v69
  %v253 = vunpack.c.l.b16 %v70
  %v254 = vunpack.c.h.b16 %v70
  %v255 = vunpack.c.l.b16 %v71
  %v256 = vunpack.c.h.b16 %v71
  %v257 = vunpack.c.l.b16 %v72
  %v258 = vunpack.c.h.b16 %v72
  %v259 = vunpack.c.l.b16 %v73
  %v260 = vunpack.c.h.b16 %v73
  %v261 = vunpack.c.l.b16 %v74
  %v262 = vunpack.c.h.b16 %v74
  %v263 = vpack.c.b16 %v165, %v163
  %v264 = vpack.c.b16 %v166, %v164
  %v265 = vpack.c.b16 %v169, %v167
  %v266 = vpack.c.b16 %v170, %v168
  %v267 = vpack.c.b16 %v173, %v171
  %v268 = vpack.c.b16 %v174, %v172
  %v269 = vpack.c.b16 %v177, %v175
  %v270 = vpack.c.b16 %v178, %v176
  %v271 = vpack.c.b16 %v181, %v179
  %v272 = vpack.c.b16 %v182, %v180
  %v273 = vpack.c.b16 %v185, %v183
  %v274 = vpack.c.b16 %v186, %v184
  %v275 = vpack.c.b16 %v189, %v187
  %v276 = vpack.c.b16 %v190, %v188
  %v277 = vpack.c.b16 %v193, %v191
  %v278 = vpack.c.b16 %v194, %v192
  %v279 = vpack.c.b16 %v197, %v195
  %v280 = vpack.c.b16 %v198, %v196
  %v281 = vpack.c.b16 %v201, %v199
  %v282 = vpack.c.b16 %v202, %v200
  %v283 = vpack.c.b16 %v205, %v203
  %v284 = vpack.c.b16 %v206, %v204
  %v285 = vpack.c.b16 %v209, %v207
  %v286 = vpack.c.b16 %v210, %v208
  %v287 = vpack.c.b16 %v213, %v211
  %v288 = vpack.c.b16 %v214, %v212
  %v289 = vpack.c.b16 %v217, %v215
  %v290 = vpack.c.b16 %v218, %v216
  %v291 = vpack.c.b16 %v221, %v219
  %v292 = vpack.c.b16 %v222, %v220
  %v293 = vpack.c.b16 %v225, %v223
  %v294 = vpack.c.b16 %v226, %v224
  %v295 = vpack.c.b16 %v229, %v227
  %v296 = vpack.c.b16 %v230, %v228
  %v297 = vpack.c.b16 %v233, %v231
  %v298 = vpack.c.b16 %v234, %v232
  %v299 = vpack.c.b16 %v237, %v235
  %v300 = vpack.c.b16 %v238, %v236
  %v301 = vpack.c.b16 %v241, %v239
  %v302 = vpack.c.b16 %v242, %v240
  %v303 = vpack.c.b16 %v245, %v243
  %v304 = vpack.c.b16 %v246, %v244
  %v305 = vpack.c.b16 %v249, %v247
  %v306 = vpack.c.b16 %v250, %v248
  %v307 = vpack.c.b16 %v253, %v251
  %v308 = vpack.c.b16 %v254, %v252
  %v309 = vpack.c.b16 %v257, %v255
  %v310 = vpack.c.b16 %v258, %v256
  %v311 = vpack.c.b16 %v261, %v259
  %v312 = vpack.c.b16 %v262, %v260
  %vm363 = vcmask 130048
  %v365 = vsel %vm363, %v109, 0
  %367 = vmatprep.subr.bf16.mxu0 %v278
  %368 = vmatpush1.bf16.msra.mxu0 %v277
  %369 = vmatprep.subr.bf16.mxu0 %v276
  %370 = vmatpush1.bf16.msra.mxu0 %v275
  %371 = vmatprep.subr.bf16.mxu0 %v274
  %372 = vmatpush1.bf16.msra.mxu0 %v273
  %373 = vmatprep.subr.bf16.mxu0 %v272
  %374 = vmatpush1.bf16.msra.mxu0 %v271
  %375 = vmatprep.subr.bf16.mxu0 %v270
  %376 = vmatpush1.bf16.msra.mxu0 %v269
  %377 = vmatprep.subr.bf16.mxu0 %v268
  %378 = vmatpush1.bf16.msra.mxu0 %v267
  %379 = vmatprep.subr.bf16.mxu0 %v266
  %380 = vmatpush1.bf16.msra.mxu0 %v265
  %381 = vmatprep.subr.bf16.mxu0 %v264
  %382 = vmatpush1.bf16.msra.mxu0 %v263
  %383 = vmatprep.subr.bf16.mxu0 %v294
  %384 = vmatpush2.bf16.msra.mxu0 %v293
  %385 = vmatprep.subr.bf16.mxu0 %v292
  %386 = vmatpush2.bf16.msra.mxu0 %v291
  %387 = vmatprep.subr.bf16.mxu0 %v290
  %388 = vmatpush2.bf16.msra.mxu0 %v289
  %389 = vmatprep.subr.bf16.mxu0 %v288
  %390 = vmatpush2.bf16.msra.mxu0 %v287
  %391 = vmatprep.subr.bf16.mxu0 %v286
  %392 = vmatpush2.bf16.msra.mxu0 %v285
  %393 = vmatprep.subr.bf16.mxu0 %v284
  %394 = vmatpush2.bf16.msra.mxu0 %v283
  %395 = vmatprep.subr.bf16.mxu0 %v282
  %396 = vmatpush2.bf16.msra.mxu0 %v281
  %397 = vmatprep.subr.bf16.mxu0 %v280
  %398 = vmatpush2.bf16.msra.mxu0 %v279
  %399 = vmatprep.mubr.bf16.mxu0 %v107
  %400 = vmatmul.mubr.bf16.gmra.mxu0 %v100
  %v401 = vpop.f32.mrf.mxu0
  %v402 = vadd.f32 %v84, %v401
  %v403 = vpop.f32.mrf.mxu0
  %v404 = vadd.f32 %v84, %v403
  %v405 = vpop.f32.mrf.mxu0
  %v406 = vpop.f32.mrf.mxu0
  %407 = vdwg.mxu0
  %408 = vmatprep.subr.bf16.mxu0 %v310
  %409 = vmatpush1.bf16.msra.mxu0 %v309
  %410 = vmatprep.subr.bf16.mxu0 %v308
  %411 = vmatpush1.bf16.msra.mxu0 %v307
  %412 = vmatprep.subr.bf16.mxu0 %v306
  %413 = vmatpush1.bf16.msra.mxu0 %v305
  %414 = vmatprep.subr.bf16.mxu0 %v304
  %415 = vmatpush1.bf16.msra.mxu0 %v303
  %416 = vmatprep.subr.bf16.mxu0 %v302
  %417 = vmatpush1.bf16.msra.mxu0 %v301
  %418 = vmatprep.subr.bf16.mxu0 %v300
  %419 = vmatpush1.bf16.msra.mxu0 %v299
  %420 = vmatprep.subr.bf16.mxu0 %v298
  %421 = vmatpush1.bf16.msra.mxu0 %v297
  %422 = vmatprep.subr.bf16.mxu0 %v296
  %423 = vmatpush1.bf16.msra.mxu0 %v295
  %424 = vmatprep.subr.bf16.mxu0 0
  %425 = vmatpush2.bf16.msra.mxu0 0
  %426 = vmatprep.subr.bf16.mxu0 0
  %427 = vmatpush2.bf16.msra.mxu0 0
  %428 = vmatprep.subr.bf16.mxu0 0
  %429 = vmatpush2.bf16.msra.mxu0 0
  %430 = vmatprep.subr.bf16.mxu0 0
  %431 = vmatpush2.bf16.msra.mxu0 0
  %432 = vmatprep.subr.bf16.mxu0 0
  %433 = vmatpush2.bf16.msra.mxu0 0
  %434 = vmatprep.subr.bf16.mxu0 0
  %435 = vmatpush2.bf16.msra.mxu0 0
  %436 = vmatprep.subr.bf16.mxu0 0
  %437 = vmatpush2.bf16.msra.mxu0 0
  %438 = vmatprep.subr.bf16.mxu0 %v312
  %439 = vmatpush2.bf16.msra.mxu0 %v311
  %440 = vmatprep.mubr.bf16.mxu0 %v365
  %441 = vmatmul.mubr.bf16.gmra.mxu0 %v108
  %v442 = vpop.f32.mrf.mxu0
  %v443 = vadd.f32 %v402, %v442
  %v444 = vpop.f32.mrf.mxu0
  %v445 = vadd.f32 %v404, %v444
  %v446 = vpop.f32.mrf.mxu0
  %v447 = vpop.f32.mrf.mxu0
  %448 = vdwg.mxu0
  %s449 = sld [smem:[#allocation3]]
  %vm450 = vcmp.ge.f32.partialorder %v443, 0.0
  %vm451 = vcmp.ge.f32.partialorder %v445, 0.0
  %v452 = vstv %s449
  %v453 = vmul.f32 %v452, %v443
  %v454 = vmul.f32 %v452, %v445
  %v455 = vsel %vm450, %v443, %v453
  %v456 = vsel %vm451, %v445, %v454
  %v457 = vld [vmem:[%s4] sm:$0x3]
  %v460 = vcombine.low %v455, %v456
  %v462 = vunpack.c.l.s4 1966171168
  %v463 = vunpack.c.0.s8 %v462
  %v464 = vlaneseq
  %v465 = vshrl.u32 %v464, 7
  %v466 = vsub.s32 %v463, %v465
  %v467 = vrot.slane %v460, %v466
  %v469 = vunpack.c.l.s4 1966171168
  %v470 = vunpack.c.0.s8 %v469
  %v471 = vlaneseq
  %v472 = vshrl.u32 %v471, 7
  %v473 = vsub.s32 %v470, %v472
  %v474 = vrot.slane %v467, %v473
  %v476 = vadd.f32 %v457, %v474
  %v477 = vand.u32 2147483647, %v476
  %v478 = vlaneseq
  %vm479 = vcmp.ge.s32.totalorder %v478, 0
  %vm480 = vcmp.lt.s32.totalorder %v478, 256
  %vm481 = vmand %vm479, %vm480
  %482 = vst.msk [vmem:[%s5] sm:$0x3] %vm481, %v477
  // Predicated region
  $region22: #{mlem_cnn_forward.23} parent=0 // pred_check
    _
  $region23: #{mlem_cnn_forward.23} parent=0 // pred_check_branch
    %484 = sbr.rel (0) target = $region25
  $region24: #{mlem_cnn_forward.23} parent=0 // pred_region
    _
  $region25: #{mlem_cnn_forward.23} parent=0 // pred_fallthru
    _
  // Predicated region
  $region26: #{mlem_cnn_forward.23} parent=0 // pred_check
    _
  $region27: #{mlem_cnn_forward.23} parent=0 // pred_check_branch
    %486 = sbr.rel (0) target = $region29
  $region28: #{mlem_cnn_forward.23} parent=0 // pred_region
    _
  $region29: #{mlem_cnn_forward.23} parent=0 // pred_fallthru
    _

</llo_original>
